<compile_context>
chip_gen: v5e
topology: v5e:2x2
jax: 0.10.0
libtpu: 0.0.40
codegen_flags: <defaults>
</compile_context>

<pallas_src>
import functools

import jax
import jax.numpy as jnp
import numpy as np
from jax.experimental import pallas as pl
from jax.experimental.pallas import tpu as pltpu


# ----------------------------------------------------------------------------
# Host-side (NumPy) glue: rectangular basis, ridge projection G, psi table.
# These depend only on static hyper-parameters -> computed once and cached.
# ----------------------------------------------------------------------------
def _rect_basis_np(nb_basis):
    width = np.full((nb_basis,), 1.0 / nb_basis, dtype=np.float64)
    edges = np.linspace(0.0, 1.0, nb_basis + 1, dtype=np.float64)
    mu = (edges[:-1] + edges[1:]) / 2.0
    return mu, width


def _psi_at_np(t, mu, width):
    # (num_points, nb_basis); half-open upper bound, matching the PyTorch module.
    lo = mu - width / 2.0
    hi = mu + width / 2.0
    return ((t[:, None] >= lo[None, :]) & (t[:, None] < hi[None, :])).astype(np.float64)


@functools.lru_cache(maxsize=None)
def _compute_G_np(klen, nb_basis, ridge_penalty=0.5):
    # TODO(synk): the ridge-regression solve (matrix inverse) has no clean
    # Pallas equivalent; it depends only on (klen, nb_basis, ridge) so it is
    # computed host-side once (solve instead of inverse) and cached.
    mu, width = _rect_basis_np(nb_basis)
    if klen % 2:
        shift = 1.0 / float(klen)
        positions = np.linspace(-0.5 + shift, 1.5 - shift, 2 * klen - 1)
    else:
        shift = 1.0 / float(2 * klen)
        positions = np.linspace(-0.5 + shift, 1.5 - shift, 2 * klen)
    F = _psi_at_np(positions, mu, width).T                         # (nb, P)
    A = F @ F.T + ridge_penalty * np.eye(nb_basis)
    G = np.linalg.solve(A, F).T                                    # (P, nb) == F^T A^{-1}
    if klen % 2:
        G = G[(klen - 1) // 2: -((klen - 1) // 2), :]
    else:
        G = G[klen // 2: -(klen // 2), :]
    return np.ascontiguousarray(G)                                 # (klen, nb) float64


@functools.lru_cache(maxsize=None)
def _psi_table_np(num_points, nb_basis):
    mu, width = _rect_basis_np(nb_basis)
    t = np.linspace(0.0, 1.0, num_points)
    return _psi_at_np(t, mu, width)                                # (np, nb) float64


def _trapz_weights_np(num_points):
    dt = 1.0 / float(num_points - 1)
    w = np.full((num_points,), dt, dtype=np.float64)
    w[0] = dt / 2.0
    w[-1] = dt / 2.0
    return w[None, :]                                              # (1, np)


def _round_up(x, m):
    return (x + m - 1) // m * m


def _device_kind():
    try:
        return jax.devices()[0].device_kind.lower()
    except Exception:
        return ""


def _bf16_eup_ok():
    # v2-v5 have no bf16 VPU/EUP path -> keep the exp in f32 there.
    kind = _device_kind()
    if not kind:
        return False
    return not any(s in kind for s in ("v2", "v3", "v4", "v5"))


def _tensorcores_per_device():
    # v7x exposes 2 TensorCores/chip; the "parallel" grid axis shards across them.
    return 2 if "7x" in _device_kind() else 1


# ----------------------------------------------------------------------------
# Pallas kernel: the iterative hot loop, fully VMEM-resident per query tile.
# ----------------------------------------------------------------------------
def hopfield_kernel(q_ref, kp_ref, vp_ref, out_ref, *,
                    num_iters, matmul_dtype, exp_dtype, approx_recip, mxu_precision):
    num_points = kp_ref.shape[1]

    Q = q_ref[...]                                   # (tq, d)  f32
    KP = kp_ref[...]                                 # (d, np)  matmul_dtype, beta folded in
    VP = vp_ref[...]                                 # (np, d)  matmul_dtype

    # Trapezoid weights as a single (1, np) row (one vreg); the multiply below
    # broadcasts along sublanes, so no (tq, np) weight plane is kept live.
    dt = np.float32(1.0 / (num_points - 1))
    lane = jax.lax.broadcasted_iota(jnp.int32, (1, num_points), 1)
    wb = jnp.where((lane == 0) | (lane == num_points - 1),
                   np.float32(0.5) * dt, dt).astype(exp_dtype)

    def step(Qc):
        # scores z(t) at the quadrature points (beta pre-folded into KP)
        S = jnp.dot(Qc.astype(matmul_dtype), KP,
                    preferred_element_type=jnp.float32,
                    precision=mxu_precision)                        # (tq, np) f32
        S = S - jnp.max(S, axis=-1, keepdims=True)
        # exp in bf16 on v6e/v7x (EUP is the binding slot at steady state);
        # f32 in accuracy mode / on v5e.  Result feeds the matmul directly.
        Ew = jnp.exp(S.astype(exp_dtype)) * wb                      # (tq, np)
        Z = jnp.sum(Ew.astype(jnp.float32), axis=-1, keepdims=True)  # (tq, 1) f32
        # E_p[V(t)] collapsed into one matmul against VP; normalize the narrow
        # (tq, d) result instead of the (tq, np) probabilities.
        num = jnp.dot(Ew.astype(matmul_dtype), VP,
                      preferred_element_type=jnp.float32,
                      precision=mxu_precision)                      # (tq, d) f32
        return num * pl.reciprocal(Z, approx=approx_recip)

    if num_iters <= 8:
        # small static trip count -> fully unrolled so MXU pushes overlap the
        # exp / reduce work of neighbouring iterations.
        for _ in range(num_iters):
            Q = step(Q)
    else:
        Q = jax.lax.fori_loop(0, num_iters, lambda _, Qc: step(Qc), Q, unroll=2)

    out_ref[...] = Q.astype(out_ref.dtype)


# ----------------------------------------------------------------------------
# Wrapper: host precompute + pipelined, megacore-parallel pallas_call.
# ----------------------------------------------------------------------------
def continuous_hopfield_forward(k, q, *, beta, nb_basis, num_iters, num_points,
                                tile_q=256, matmul_dtype=jnp.bfloat16,
                                fast_exp=None, min_tiles=None):
    """ContinuousHopfieldNet.forward: k (klen, d), q (nq, d) -> (nq, d) f32.

    matmul_dtype=bfloat16 (default): fast path -- native single-pass MXU
    operands with f32 accumulation, bf16 exp on v6e/v7x, approx reciprocal.
    matmul_dtype=float32: accuracy mode -- multi-pass f32 MXU, f32 exp,
    exact reciprocal.  tile_q: 256-512 suits v6e/v7x, 128-256 suits v5e.
    """
    klen, d = k.shape
    nq = q.shape[0]
    k = k.astype(jnp.float32)
    q = q.astype(jnp.float32)
    matmul_dtype = jnp.dtype(matmul_dtype)
    use_bf16 = matmul_dtype == jnp.dtype(jnp.bfloat16)

    if fast_exp is None:
        fast_exp = use_bf16 and _bf16_eup_ok()
    exp_dtype = jnp.bfloat16 if (use_bf16 and fast_exp) else jnp.float32
    approx_recip = bool(use_bf16)
    mxu_precision = None if use_bf16 else jax.lax.Precision.HIGHEST

    # Iteration-invariant projections, computed once here (NOT per grid step)
    # and already cast to the MXU operand dtype -> no per-grid-step casts in
    # the kernel and half the constant DMA / resident-VMEM bytes in bf16 mode.
    hp = jax.lax.Precision.HIGHEST
    G = jnp.asarray(_compute_G_np(klen, nb_basis), dtype=jnp.float32)        # (klen, nb)
    psi = jnp.asarray(_psi_table_np(num_points, nb_basis), dtype=jnp.float32)  # (np, nb)
    B = jnp.matmul(G.T, k, precision=hp)                                     # (nb, d)
    VP32 = jnp.matmul(psi, B, precision=hp)                                  # (np, d)
    VP = VP32.astype(matmul_dtype)
    KP = (jnp.float32(beta) * VP32).T.astype(matmul_dtype)                   # (d, np)
    # TODO(synk): at very large num_points*d, KP duplicates VP's data; drop it
    # (transpose VP once into VMEM scratch) and/or use pipeline_mode=
    # pl.Buffered(1) on the constant blocks to fit v7x's 64 MiB VMEM.

    # Query-axis tiling: one sublane-aligned tile for small nq (no per-step
    # overhead, no narrow-M MXU tiles); >= min_tiles tiles so v7x's two
    # TensorCores both get work via the "parallel" grid axis.
    if min_tiles is None:
        min_tiles = _tensorcores_per_device()
    nq8 = _round_up(nq, 8)
    tq = min(int(tile_q), nq8)
    if min_tiles > 1 and nq8 > 8:
        tq = min(tq, _round_up(pl.cdiv(nq8, min_tiles), 8))
    tq = max(8, _round_up(tq, 8))
    q_pad = _round_up(nq, tq)
    if q_pad != nq:
        q = jnp.pad(q, ((0, q_pad - nq), (0, 0)))

    # Explicit scoped-VMEM budget (defaults are only 16 MiB on v5e / 32 MiB on
    # v6e-v7x), derived from the actual resident blocks with 2x headroom and
    # capped at v7x's 64 MiB physical VMEM.
    const_bytes = 2 * 2 * d * num_points * matmul_dtype.itemsize   # KP+VP, double-buffered
    tile_bytes = 2 * 2 * tq * d * 4                                # q-in + out, double-buffered
    work_bytes = 8 * tq * num_points * 4                           # S/E/Ew temporaries headroom
    vmem_limit = int(min(64 << 20,
                         max(32 << 20, 2 * (const_bytes + tile_bytes + work_bytes))))

    kern = functools.partial(
        hopfield_kernel, num_iters=num_iters, matmul_dtype=matmul_dtype,
        exp_dtype=exp_dtype, approx_recip=approx_recip, mxu_precision=mxu_precision)

    out = pl.pallas_call(
        kern,
        out_shape=jax.ShapeDtypeStruct((q_pad, d), jnp.float32),
        grid=(q_pad // tq,),
        in_specs=[
            pl.BlockSpec((tq, d), lambda i: (i, 0)),                # q tile (pipelined)
            pl.BlockSpec((d, num_points), lambda i: (0, 0)),        # KP (VMEM-resident)
            pl.BlockSpec((num_points, d), lambda i: (0, 0)),        # VP (VMEM-resident)
        ],
        out_specs=pl.BlockSpec((tq, d), lambda i: (i, 0)),
        compiler_params=pltpu.CompilerParams(
            dimension_semantics=("parallel",),                      # megacore / v7x dual-TC
            vmem_limit_bytes=vmem_limit),
    )(q, KP, VP)
    return out[:nq]


# ----------------------------------------------------------------------------
# Pure-NumPy float64 reference using the original (un-collapsed) formulation.
# ----------------------------------------------------------------------------
def _reference_np(k, q, *, beta, nb_basis, num_iters, num_points):
    k = np.asarray(k, dtype=np.float64)
    q = np.asarray(q, dtype=np.float64)
    klen = k.shape[0]
    G = _compute_G_np(klen, nb_basis)                      # (klen, nb) f64
    psi = _psi_table_np(num_points, nb_basis)              # (np, nb)   f64
    w = _trapz_weights_np(num_points)                      # (1, np)    f64
    B = G.T @ k                                            # (nb, d)
    KP = B.T @ psi.T                                       # (d, np)
    Q = q
    for _ in range(num_iters):
        S = beta * (Q @ KP)
        m = S.max(axis=-1, keepdims=True)
        E = np.exp(S - m)
        Z = np.sum(E * w, axis=-1, keepdims=True)
        P = E / Z
        I = (P * w) @ psi                                  # (nq, nb)
        Q = I @ B
    return Q


if __name__ == "__main__":
    # Small, lane-dense shapes consistent with the module: klen=16 memories of
    # dim d=128, nq=48 queries, nb_basis=16 rectangular basis functions,
    # num_points=128 quadrature points, 3 Hopfield iterations.
    klen, d, nq = 16, 128, 48
    beta, nb_basis, num_iters, num_points = 1.0, 16, 3, 128

    key = jax.random.PRNGKey(0)
    kk, kq = jax.random.split(key)
    k = jax.random.normal(kk, (klen, d), dtype=jnp.float32)
    q = jax.random.normal(kq, (nq, d), dtype=jnp.float32)

    ref = _reference_np(np.asarray(k), np.asarray(q), beta=beta, nb_basis=nb_basis,
                        num_iters=num_iters, num_points=num_points)

    # 1) Accuracy mode (f32 MXU / f32 exp / exact recip): tight correctness gate.
    out_f32 = continuous_hopfield_forward(
        k, q, beta=beta, nb_basis=nb_basis, num_iters=num_iters,
        num_points=num_points, matmul_dtype=jnp.float32)
    out_f32 = jax.block_until_ready(out_f32)
    assert out_f32.shape == (nq, d)
    np.testing.assert_allclose(np.asarray(out_f32), ref, rtol=3e-3, atol=3e-3)

    # 2) Default fast mode (bf16 MXU operands, bf16 exp on v6e/v7x, approx recip).
    #    Near-tied queries may legitimately settle on a slightly different memory
    #    mixture after 3 recurrent iterations at reduced precision (exp(beta*S)
    #    amplifies operand rounding), so gate the fast path on robust statistics.
    out_fast = continuous_hopfield_forward(
        k, q, beta=beta, nb_basis=nb_basis, num_iters=num_iters,
        num_points=num_points)
    out_fast = jax.block_until_ready(out_fast)
    assert out_fast.shape == (nq, d)
    out_fast_np = np.asarray(out_fast)
    assert np.all(np.isfinite(out_fast_np))
    assert float(np.median(np.abs(out_fast_np - ref))) < 1e-2

    print("KERNEL_OK")
</pallas_src>

<mosaic_0001>
module attributes {stable_mosaic.version = 11 : i64} {
  func.func @hopfield_kernel(%arg0: i32, %arg1: memref<48x128xf32, #tpu.memory_space<vmem>>, %arg2: memref<128x128xf32, #tpu.memory_space<vmem>>, %arg3: memref<128x128xf32, #tpu.memory_space<vmem>>, %arg4: memref<48x128xf32, #tpu.memory_space<vmem>>) attributes {dimension_semantics = [#tpu.dimension_semantics<parallel>], iteration_bounds = array<i64: 1>, scalar_prefetch = 0 : i64, scratch_operands = 0 : i64, tpu.core_type = #tpu.core_type<tc>, window_params = [{transform_indices = @transform_0, window_bounds = array<i64: 48, 128>}, {pipeline_mode = #tpu.pipeline_mode<synchronous>, transform_indices = @transform_1, window_bounds = array<i64: 128, 128>}, {pipeline_mode = #tpu.pipeline_mode<synchronous>, transform_indices = @transform_2, window_bounds = array<i64: 128, 128>}, {transform_indices = @transform_3, window_bounds = array<i64: 48, 128>}]} {
    %c0 = arith.constant 0 : index
    %c0_0 = arith.constant 0 : index
    %0 = vector.load %arg1[%c0, %c0_0] : memref<48x128xf32, #tpu.memory_space<vmem>>, vector<48x128xf32>
    %c0_1 = arith.constant 0 : index
    %c0_2 = arith.constant 0 : index
    %1 = vector.load %arg2[%c0_1, %c0_2] : memref<128x128xf32, #tpu.memory_space<vmem>>, vector<128x128xf32>
    %c0_3 = arith.constant 0 : index
    %c0_4 = arith.constant 0 : index
    %2 = vector.load %arg3[%c0_3, %c0_4] : memref<128x128xf32, #tpu.memory_space<vmem>>, vector<128x128xf32>
    %3 = tpu.iota {dimensions = array<i32: 1>} : vector<1x128xi32>
    %c0_i32 = arith.constant 0 : i32
    %4 = vector.broadcast %c0_i32 : i32 to vector<1x128xi32>
    %5 = arith.cmpi eq, %3, %4 : vector<1x128xi32>
    %c127_i32 = arith.constant 127 : i32
    %6 = vector.broadcast %c127_i32 : i32 to vector<1x128xi32>
    %7 = arith.cmpi eq, %3, %6 : vector<1x128xi32>
    %8 = arith.ori %5, %7 : vector<1x128xi1>
    %cst = arith.constant 0.00393700786 : f32
    %cst_5 = arith.constant 0.00787401571 : f32
    %9 = vector.broadcast %cst : f32 to vector<1x128xf32>
    %10 = vector.broadcast %cst_5 : f32 to vector<1x128xf32>
    %11 = arith.select %8, %9, %10 : vector<1x128xi1>, vector<1x128xf32>
    %cst_6 = arith.constant dense<0.000000e+00> : vector<48x128xf32>
    %12 = tpu.matmul %0, %1, %cst_6 {dimension_numbers = #tpu.dot_dimension_numbers<[1], [0], [0], [1], [0, 0, 1, 1], [], []>, precision = #tpu.contract_precision<fp32>} : vector<48x128xf32>, vector<128x128xf32>, vector<48x128xf32> -> vector<48x128xf32>
    %cst_7 = arith.constant dense<0xFF800000> : vector<48xf32>
    %13 = vector.multi_reduction <maximumf>, %12, %cst_7 [1] : vector<48x128xf32> to vector<48xf32>
    %14 = vector.shape_cast %13 : vector<48xf32> to vector<48x1xf32>
    %15 = vector.broadcast %14 : vector<48x1xf32> to vector<48x128xf32>
    %16 = arith.subf %12, %15 : vector<48x128xf32>
    %17 = math.exp %16 : vector<48x128xf32>
    %18 = vector.broadcast %11 : vector<1x128xf32> to vector<48x128xf32>
    %19 = arith.mulf %17, %18 : vector<48x128xf32>
    %cst_8 = arith.constant dense<0.000000e+00> : vector<48xf32>
    %20 = vector.multi_reduction <add>, %19, %cst_8 [1] : vector<48x128xf32> to vector<48xf32>
    %21 = vector.shape_cast %20 : vector<48xf32> to vector<48x1xf32>
    %cst_9 = arith.constant dense<0.000000e+00> : vector<48x128xf32>
    %22 = tpu.matmul %19, %2, %cst_9 {dimension_numbers = #tpu.dot_dimension_numbers<[1], [0], [0], [1], [0, 0, 1, 1], [], []>, precision = #tpu.contract_precision<fp32>} : vector<48x128xf32>, vector<128x128xf32>, vector<48x128xf32> -> vector<48x128xf32>
    %23 = tpu.reciprocal %21 : vector<48x1xf32> -> vector<48x1xf32>
    %24 = vector.broadcast %23 : vector<48x1xf32> to vector<48x128xf32>
    %25 = arith.mulf %22, %24 : vector<48x128xf32>
    %cst_10 = arith.constant dense<0.000000e+00> : vector<48x128xf32>
    %26 = tpu.matmul %25, %1, %cst_10 {dimension_numbers = #tpu.dot_dimension_numbers<[1], [0], [0], [1], [0, 0, 1, 1], [], []>, precision = #tpu.contract_precision<fp32>} : vector<48x128xf32>, vector<128x128xf32>, vector<48x128xf32> -> vector<48x128xf32>
    %cst_11 = arith.constant dense<0xFF800000> : vector<48xf32>
    %27 = vector.multi_reduction <maximumf>, %26, %cst_11 [1] : vector<48x128xf32> to vector<48xf32>
    %28 = vector.shape_cast %27 : vector<48xf32> to vector<48x1xf32>
    %29 = vector.broadcast %28 : vector<48x1xf32> to vector<48x128xf32>
    %30 = arith.subf %26, %29 : vector<48x128xf32>
    %31 = math.exp %30 : vector<48x128xf32>
    %32 = vector.broadcast %11 : vector<1x128xf32> to vector<48x128xf32>
    %33 = arith.mulf %31, %32 : vector<48x128xf32>
    %cst_12 = arith.constant dense<0.000000e+00> : vector<48xf32>
    %34 = vector.multi_reduction <add>, %33, %cst_12 [1] : vector<48x128xf32> to vector<48xf32>
    %35 = vector.shape_cast %34 : vector<48xf32> to vector<48x1xf32>
    %cst_13 = arith.constant dense<0.000000e+00> : vector<48x128xf32>
    %36 = tpu.matmul %33, %2, %cst_13 {dimension_numbers = #tpu.dot_dimension_numbers<[1], [0], [0], [1], [0, 0, 1, 1], [], []>, precision = #tpu.contract_precision<fp32>} : vector<48x128xf32>, vector<128x128xf32>, vector<48x128xf32> -> vector<48x128xf32>
    %37 = tpu.reciprocal %35 : vector<48x1xf32> -> vector<48x1xf32>
    %38 = vector.broadcast %37 : vector<48x1xf32> to vector<48x128xf32>
    %39 = arith.mulf %36, %38 : vector<48x128xf32>
    %cst_14 = arith.constant dense<0.000000e+00> : vector<48x128xf32>
    %40 = tpu.matmul %39, %1, %cst_14 {dimension_numbers = #tpu.dot_dimension_numbers<[1], [0], [0], [1], [0, 0, 1, 1], [], []>, precision = #tpu.contract_precision<fp32>} : vector<48x128xf32>, vector<128x128xf32>, vector<48x128xf32> -> vector<48x128xf32>
    %cst_15 = arith.constant dense<0xFF800000> : vector<48xf32>
    %41 = vector.multi_reduction <maximumf>, %40, %cst_15 [1] : vector<48x128xf32> to vector<48xf32>
    %42 = vector.shape_cast %41 : vector<48xf32> to vector<48x1xf32>
    %43 = vector.broadcast %42 : vector<48x1xf32> to vector<48x128xf32>
    %44 = arith.subf %40, %43 : vector<48x128xf32>
    %45 = math.exp %44 : vector<48x128xf32>
    %46 = vector.broadcast %11 : vector<1x128xf32> to vector<48x128xf32>
    %47 = arith.mulf %45, %46 : vector<48x128xf32>
    %cst_16 = arith.constant dense<0.000000e+00> : vector<48xf32>
    %48 = vector.multi_reduction <add>, %47, %cst_16 [1] : vector<48x128xf32> to vector<48xf32>
    %49 = vector.shape_cast %48 : vector<48xf32> to vector<48x1xf32>
    %cst_17 = arith.constant dense<0.000000e+00> : vector<48x128xf32>
    %50 = tpu.matmul %47, %2, %cst_17 {dimension_numbers = #tpu.dot_dimension_numbers<[1], [0], [0], [1], [0, 0, 1, 1], [], []>, precision = #tpu.contract_precision<fp32>} : vector<48x128xf32>, vector<128x128xf32>, vector<48x128xf32> -> vector<48x128xf32>
    %51 = tpu.reciprocal %49 : vector<48x1xf32> -> vector<48x1xf32>
    %52 = vector.broadcast %51 : vector<48x1xf32> to vector<48x128xf32>
    %53 = arith.mulf %50, %52 : vector<48x128xf32>
    %c0_18 = arith.constant 0 : index
    %c0_19 = arith.constant 0 : index
    %54 = vector.load %arg4[%c0_18, %c0_19] : memref<48x128xf32, #tpu.memory_space<vmem>>, vector<48x128xf32>
    tpu.vector_store %arg4[%c0_18, %c0_19], %53 {strides = array<i32>} : memref<48x128xf32, #tpu.memory_space<vmem>>, vector<48x128xf32>,
    return
  }
  func.func @transform_0(%arg0: i32) -> (i32, i32) {
    %c0_i32 = arith.constant 0 : i32
    %c0_i32_0 = arith.constant 0 : i32
    return %arg0, %c0_i32 : i32, i32
  }
  func.func @transform_1(%arg0: i32) -> (i32, i32) {
    %c0_i32 = arith.constant 0 : i32
    %c0_i32_0 = arith.constant 0 : i32
    %c0_i32_1 = arith.constant 0 : i32
    return %c0_i32, %c0_i32_0 : i32, i32
  }
  func.func @transform_2(%arg0: i32) -> (i32, i32) {
    %c0_i32 = arith.constant 0 : i32
    %c0_i32_0 = arith.constant 0 : i32
    %c0_i32_1 = arith.constant 0 : i32
    return %c0_i32, %c0_i32_0 : i32, i32
  }
  func.func @transform_3(%arg0: i32) -> (i32, i32) {
    %c0_i32 = arith.constant 0 : i32
    %c0_i32_0 = arith.constant 0 : i32
    return %arg0, %c0_i32 : i32, i32
  }
}

</mosaic_0001>

<llo_original>
// kernel: tpu_custom_call.1
$region0: #{tpu_custom_call.1}
  #allocation0 [shape = 'u32[]', space=smem, size = 0x4, offset = 0x4, fixed_abs, tag = 'smem constant byte address 0x4 - core index']
  #allocation1 [shape = 'u32[72,128]{1,0:T(1,128)}', space=vmem, size = 0x9000, scoped, tag = 'internal scratch']
  %s0 = inlined_call_operand.hbm [shape: f32[48,128], index: 0, kind: input, shape index: {}]
  %s1 = inlined_call_operand.hbm [shape: f32[128,128], index: 1, kind: input, shape index: {}]
  %s2 = inlined_call_operand.hbm [shape: f32[128,128], index: 2, kind: input, shape index: {}]
  %s3 = inlined_call_operand.hbm [shape: f32[48,128], index: 3, kind: output, shape index: {}]
  %s4 = sld [smem:[#allocation0]]
  $region34: #{tpu_custom_call.1} parent=0
    _
  %s6 = ssub.s32 1, %s4
  %s7 = scalar_select 0, %s6, %s4
  $region1: #{tpu_custom_call.1} parent=0
    #allocation2 [shape = 'u8[24576]{0}', space=vmem, size = 0x6000, scoped, tag = 'input window, operand 0, single buffered']
    #allocation3 [shape = 's32[1]{0}', space=sflag, size = 0x4, scoped, tag = 'scoped memory for tpu_custom_call.1']
    #allocation4 [shape = 's32[1]{0}', space=sflag, size = 0x4, scoped, tag = 'scoped memory for tpu_custom_call.1']
    #allocation5 [shape = 'u8[65536]{0}', space=vmem, size = 0x10000, scoped, tag = 'input window, operand 1, single buffered']
    #allocation6 [shape = 's32[1]{0}', space=sflag, size = 0x4, scoped, tag = 'scoped memory for tpu_custom_call.1']
    #allocation7 [shape = 'u8[65536]{0}', space=vmem, size = 0x10000, scoped, tag = 'input window, operand 2, single buffered']
    #allocation8 [shape = 'u8[24576]{0}', space=vmem, size = 0x6000, scoped, tag = 'output window, operand 0, single buffered']
    %8 = vsyncpa [#allocation3], 0
    %9 = vsyncpa [#allocation6], 0
    %10 = vsyncpa [#allocation4], 0
    // Predicated region
    $region2: #{tpu_custom_call.1} parent=1 // pred_check
      _
    $region3: #{tpu_custom_call.1} parent=1 // pred_check_branch
      %12 = sbr.rel (0) target = $region5
    $region4: #{tpu_custom_call.1} parent=1 // pred_region
      %14 = vsyncadd [#allocation3], 0
      %s15 = sshll.u32 %s0, 4
      %s16 = int_to_ptr.hbm [resolvable:$true] %s15
      %s17 = sshll.u32 [#allocation2], 4
      %s18 = int_to_ptr.vmem [resolvable:$true] %s17
      %23 = dma.hbm_to_vmem [thread:$0]  %s16, 768, %s18, [#allocation3], 128, 128, 8
    $region5: #{tpu_custom_call.1} parent=1 // pred_fallthru
      _
    // Predicated region
    $region6: #{tpu_custom_call.1} parent=1 // pred_check
      _
    $region7: #{tpu_custom_call.1} parent=1 // pred_check_branch
      %25 = sbr.rel (0) target = $region9
    $region8: #{tpu_custom_call.1} parent=1 // pred_region
      %27 = vsyncadd [#allocation6], 0
      %s28 = sshll.u32 %s1, 4
      %s29 = int_to_ptr.hbm [resolvable:$true] %s28
      %s30 = sshll.u32 [#allocation5], 4
      %s31 = int_to_ptr.vmem [resolvable:$true] %s30
      %36 = dma.hbm_to_vmem [thread:$0]  %s29, 2048, %s31, [#allocation6], 128, 128, 8
    $region9: #{tpu_custom_call.1} parent=1 // pred_fallthru
      _
    // Predicated region
    $region10: #{tpu_custom_call.1} parent=1 // pred_check
      _
    $region11: #{tpu_custom_call.1} parent=1 // pred_check_branch
      %38 = sbr.rel (0) target = $region13
    $region12: #{tpu_custom_call.1} parent=1 // pred_region
      %40 = vsyncadd [#allocation6], 0
      %s41 = sshll.u32 %s2, 4
      %s42 = int_to_ptr.hbm [resolvable:$true] %s41
      %s43 = sshll.u32 [#allocation7], 4
      %s44 = int_to_ptr.vmem [resolvable:$true] %s43
      %49 = dma.hbm_to_vmem [thread:$0]  %s42, 2048, %s44, [#allocation6], 128, 128, 8
    $region13: #{tpu_custom_call.1} parent=1 // pred_fallthru
      _
    // Predicated region
    $region14: #{tpu_custom_call.1} parent=1 // pred_check
      _
    $region15: #{tpu_custom_call.1} parent=1 // pred_check_branch
      %51 = sbr.rel (0) target = $region17
    $region16: #{tpu_custom_call.1} parent=1 // pred_region
      %53 = dma.done [#allocation3], 768
    $region17: #{tpu_custom_call.1} parent=1 // pred_fallthru
      _
    // Predicated region
    $region18: #{tpu_custom_call.1} parent=1 // pred_check
      _
    $region19: #{tpu_custom_call.1} parent=1 // pred_check_branch
      %55 = sbr.rel (0) target = $region21
    $region20: #{tpu_custom_call.1} parent=1 // pred_region
      %57 = dma.done [#allocation6], 2048
    $region21: #{tpu_custom_call.1} parent=1 // pred_fallthru
      _
    // Predicated region
    $region22: #{tpu_custom_call.1} parent=1 // pred_check
      _
    $region23: #{tpu_custom_call.1} parent=1 // pred_check_branch
      %59 = sbr.rel (0) target = $region25
    $region24: #{tpu_custom_call.1} parent=1 // pred_region
      %61 = dma.done [#allocation6], 2048
    $region25: #{tpu_custom_call.1} parent=1 // pred_fallthru
      _
    %v62 = vld [vmem:[#allocation2] sm:$0xff]
    %v63 = vld [vmem:[#allocation2 + $0x8] sm:$0xff]
    %v64 = vld [vmem:[#allocation2 + $0x10] sm:$0xff]
    %v65 = vld [vmem:[#allocation2 + $0x18] sm:$0xff]
    %v66 = vld [vmem:[#allocation2 + $0x20] sm:$0xff]
    %v67 = vld [vmem:[#allocation2 + $0x28] sm:$0xff]
    %v68 = vld [vmem:[#allocation5] sm:$0xff]
    %v69 = vld [vmem:[#allocation5 + $0x8] sm:$0xff]
    %v70 = vld [vmem:[#allocation5 + $0x10] sm:$0xff]
    %v71 = vld [vmem:[#allocation5 + $0x18] sm:$0xff]
    %v72 = vld [vmem:[#allocation5 + $0x20] sm:$0xff]
    %v73 = vld [vmem:[#allocation5 + $0x28] sm:$0xff]
    %v74 = vld [vmem:[#allocation5 + $0x30] sm:$0xff]
    %v75 = vld [vmem:[#allocation5 + $0x38] sm:$0xff]
    %v76 = vld [vmem:[#allocation5 + $0x40] sm:$0xff]
    %v77 = vld [vmem:[#allocation5 + $0x48] sm:$0xff]
    %v78 = vld [vmem:[#allocation5 + $0x50] sm:$0xff]
    %v79 = vld [vmem:[#allocation5 + $0x58] sm:$0xff]
    %v80 = vld [vmem:[#allocation5 + $0x60] sm:$0xff]
    %v81 = vld [vmem:[#allocation5 + $0x68] sm:$0xff]
    %v82 = vld [vmem:[#allocation5 + $0x70] sm:$0xff]
    %v83 = vld [vmem:[#allocation5 + $0x78] sm:$0xff]
    %v84 = vld [vmem:[#allocation7] sm:$0xff]
    %v85 = vld [vmem:[#allocation7 + $0x8] sm:$0xff]
    %v86 = vld [vmem:[#allocation7 + $0x10] sm:$0xff]
    %v87 = vld [vmem:[#allocation7 + $0x18] sm:$0xff]
    %v88 = vld [vmem:[#allocation7 + $0x20] sm:$0xff]
    %v89 = vld [vmem:[#allocation7 + $0x28] sm:$0xff]
    %v90 = vld [vmem:[#allocation7 + $0x30] sm:$0xff]
    %v91 = vld [vmem:[#allocation7 + $0x38] sm:$0xff]
    %v92 = vld [vmem:[#allocation7 + $0x40] sm:$0xff]
    %v93 = vld [vmem:[#allocation7 + $0x48] sm:$0xff]
    %v94 = vld [vmem:[#allocation7 + $0x50] sm:$0xff]
    %v95 = vld [vmem:[#allocation7 + $0x58] sm:$0xff]
    %v96 = vld [vmem:[#allocation7 + $0x60] sm:$0xff]
    %v97 = vld [vmem:[#allocation7 + $0x68] sm:$0xff]
    %v98 = vld [vmem:[#allocation7 + $0x70] sm:$0xff]
    %v99 = vld [vmem:[#allocation7 + $0x78] sm:$0xff]
    %v100 = vlaneseq
    %v101 = vand.u32 %v100, 127
    %vm102 = vcmp.eq.s32.totalorder %v101, 0
    %vm103 = vcmp.eq.s32.totalorder %v101, 127
    %vm104 = vmor %vm102, %vm103
    %v105 = vsel %vm104, 0.003937008, 0.007874016
    %v106 = vand.u32 %v83, 4294901760
    %107 = vmatpush.msra.mxu0 %v106
    %v108 = vand.u32 %v82, 4294901760
    %109 = vmatpush.msra.mxu0 %v108
    %v110 = vand.u32 %v81, 4294901760
    %111 = vmatpush.msra.mxu0 %v110
    %v112 = vand.u32 %v80, 4294901760
    %113 = vmatpush.msra.mxu0 %v112
    %v114 = vand.u32 %v79, 4294901760
    %115 = vmatpush.msra.mxu0 %v114
    %v116 = vand.u32 %v78, 4294901760
    %117 = vmatpush.msra.mxu0 %v116
    %v118 = vand.u32 %v77, 4294901760
    %119 = vmatpush.msra.mxu0 %v118
    %v120 = vand.u32 %v76, 4294901760
    %121 = vmatpush.msra.mxu0 %v120
    %v122 = vand.u32 %v75, 4294901760
    %123 = vmatpush.msra.mxu0 %v122
    %v124 = vand.u32 %v74, 4294901760
    %125 = vmatpush.msra.mxu0 %v124
    %v126 = vand.u32 %v73, 4294901760
    %127 = vmatpush.msra.mxu0 %v126
    %v128 = vand.u32 %v72, 4294901760
    %129 = vmatpush.msra.mxu0 %v128
    %v130 = vand.u32 %v71, 4294901760
    %131 = vmatpush.msra.mxu0 %v130
    %v132 = vand.u32 %v70, 4294901760
    %133 = vmatpush.msra.mxu0 %v132
    %v134 = vand.u32 %v69, 4294901760
    %135 = vmatpush.msra.mxu0 %v134
    %v136 = vand.u32 %v68, 4294901760
    %137 = vmatpush.msra.mxu0 %v136
    %v138 = vand.u32 %v62, 4294901760
    %v139 = vsub.f32 %v62, %v138
    %v140 = vand.u32 %v139, 4294901760
    %v141 = vsub.f32 %v139, %v140
    %v142 = vand.u32 %v141, 4294901760
    %143 = vmatmul.f32.gmra.mxu0 %v142
    %v144 = vpop.f32.mrf.mxu0
    %v145 = vadd.f32 0.0, %v144
    %v146 = vand.u32 %v63, 4294901760
    %v147 = vsub.f32 %v63, %v146
    %v148 = vand.u32 %v147, 4294901760
    %v149 = vsub.f32 %v147, %v148
    %v150 = vand.u32 %v149, 4294901760
    %151 = vmatmul.f32.gmra.mxu0 %v150
    %v152 = vpop.f32.mrf.mxu0
    %v153 = vadd.f32 0.0, %v152
    %v154 = vand.u32 %v64, 4294901760
    %v155 = vsub.f32 %v64, %v154
    %v156 = vand.u32 %v155, 4294901760
    %v157 = vsub.f32 %v155, %v156
    %v158 = vand.u32 %v157, 4294901760
    %159 = vmatmul.f32.gmra.mxu0 %v158
    %v160 = vpop.f32.mrf.mxu0
    %v161 = vadd.f32 0.0, %v160
    %v162 = vand.u32 %v65, 4294901760
    %v163 = vsub.f32 %v65, %v162
    %v164 = vand.u32 %v163, 4294901760
    %v165 = vsub.f32 %v163, %v164
    %v166 = vand.u32 %v165, 4294901760
    %167 = vmatmul.f32.gmra.mxu0 %v166
    %v168 = vpop.f32.mrf.mxu0
    %v169 = vadd.f32 0.0, %v168
    %v170 = vand.u32 %v66, 4294901760
    %v171 = vsub.f32 %v66, %v170
    %v172 = vand.u32 %v171, 4294901760
    %v173 = vsub.f32 %v171, %v172
    %v174 = vand.u32 %v173, 4294901760
    %175 = vmatmul.f32.gmra.mxu0 %v174
    %v176 = vpop.f32.mrf.mxu0
    %v177 = vadd.f32 0.0, %v176
    %v178 = vand.u32 %v67, 4294901760
    %v179 = vsub.f32 %v67, %v178
    %v180 = vand.u32 %v179, 4294901760
    %v181 = vsub.f32 %v179, %v180
    %v182 = vand.u32 %v181, 4294901760
    %183 = vmatmul.f32.gmra.mxu0 %v182
    %v184 = vpop.f32.mrf.mxu0
    %v185 = vadd.f32 0.0, %v184
    %186 = vdwg.mxu0
    %v187 = vand.u32 %v83, 4294901760
    %v188 = vsub.f32 %v83, %v187
    %v189 = vand.u32 %v188, 4294901760
    %v190 = vsub.f32 %v188, %v189
    %v191 = vand.u32 %v190, 4294901760
    %192 = vmatpush.msra.mxu0 %v191
    %v193 = vand.u32 %v82, 4294901760
    %v194 = vsub.f32 %v82, %v193
    %v195 = vand.u32 %v194, 4294901760
    %v196 = vsub.f32 %v194, %v195
    %v197 = vand.u32 %v196, 4294901760
    %198 = vmatpush.msra.mxu0 %v197
    %v199 = vand.u32 %v81, 4294901760
    %v200 = vsub.f32 %v81, %v199
    %v201 = vand.u32 %v200, 4294901760
    %v202 = vsub.f32 %v200, %v201
    %v203 = vand.u32 %v202, 4294901760
    %204 = vmatpush.msra.mxu0 %v203
    %v205 = vand.u32 %v80, 4294901760
    %v206 = vsub.f32 %v80, %v205
    %v207 = vand.u32 %v206, 4294901760
    %v208 = vsub.f32 %v206, %v207
    %v209 = vand.u32 %v208, 4294901760
    %210 = vmatpush.msra.mxu0 %v209
    %v211 = vand.u32 %v79, 4294901760
    %v212 = vsub.f32 %v79, %v211
    %v213 = vand.u32 %v212, 4294901760
    %v214 = vsub.f32 %v212, %v213
    %v215 = vand.u32 %v214, 4294901760
    %216 = vmatpush.msra.mxu0 %v215
    %v217 = vand.u32 %v78, 4294901760
    %v218 = vsub.f32 %v78, %v217
    %v219 = vand.u32 %v218, 4294901760
    %v220 = vsub.f32 %v218, %v219
    %v221 = vand.u32 %v220, 4294901760
    %222 = vmatpush.msra.mxu0 %v221
    %v223 = vand.u32 %v77, 4294901760
    %v224 = vsub.f32 %v77, %v223
    %v225 = vand.u32 %v224, 4294901760
    %v226 = vsub.f32 %v224, %v225
    %v227 = vand.u32 %v226, 4294901760
    %228 = vmatpush.msra.mxu0 %v227
    %v229 = vand.u32 %v76, 4294901760
    %v230 = vsub.f32 %v76, %v229
    %v231 = vand.u32 %v230, 4294901760
    %v232 = vsub.f32 %v230, %v231
    %v233 = vand.u32 %v232, 4294901760
    %234 = vmatpush.msra.mxu0 %v233
    %v235 = vand.u32 %v75, 4294901760
    %v236 = vsub.f32 %v75, %v235
    %v237 = vand.u32 %v236, 4294901760
    %v238 = vsub.f32 %v236, %v237
    %v239 = vand.u32 %v238, 4294901760
    %240 = vmatpush.msra.mxu0 %v239
    %v241 = vand.u32 %v74, 4294901760
    %v242 = vsub.f32 %v74, %v241
    %v243 = vand.u32 %v242, 4294901760
    %v244 = vsub.f32 %v242, %v243
    %v245 = vand.u32 %v244, 4294901760
    %246 = vmatpush.msra.mxu0 %v245
    %v247 = vand.u32 %v73, 4294901760
    %v248 = vsub.f32 %v73, %v247
    %v249 = vand.u32 %v248, 4294901760
    %v250 = vsub.f32 %v248, %v249
    %v251 = vand.u32 %v250, 4294901760
    %252 = vmatpush.msra.mxu0 %v251
    %v253 = vand.u32 %v72, 4294901760
    %v254 = vsub.f32 %v72, %v253
    %v255 = vand.u32 %v254, 4294901760
    %v256 = vsub.f32 %v254, %v255
    %v257 = vand.u32 %v256, 4294901760
    %258 = vmatpush.msra.mxu0 %v257
    %v259 = vand.u32 %v71, 4294901760
    %v260 = vsub.f32 %v71, %v259
    %v261 = vand.u32 %v260, 4294901760
    %v262 = vsub.f32 %v260, %v261
    %v263 = vand.u32 %v262, 4294901760
    %264 = vmatpush.msra.mxu0 %v263
    %v265 = vand.u32 %v70, 4294901760
    %v266 = vsub.f32 %v70, %v265
    %v267 = vand.u32 %v266, 4294901760
    %v268 = vsub.f32 %v266, %v267
    %v269 = vand.u32 %v268, 4294901760
    %270 = vmatpush.msra.mxu0 %v269
    %v271 = vand.u32 %v69, 4294901760
    %v272 = vsub.f32 %v69, %v271
    %v273 = vand.u32 %v272, 4294901760
    %v274 = vsub.f32 %v272, %v273
    %v275 = vand.u32 %v274, 4294901760
    %276 = vmatpush.msra.mxu0 %v275
    %v277 = vand.u32 %v68, 4294901760
    %v278 = vsub.f32 %v68, %v277
    %v279 = vand.u32 %v278, 4294901760
    %v280 = vsub.f32 %v278, %v279
    %v281 = vand.u32 %v280, 4294901760
    %282 = vmatpush.msra.mxu0 %v281
    %v283 = vand.u32 %v62, 4294901760
    %284 = vmatmul.f32.gmra.mxu0 %v283
    %v285 = vpop.f32.mrf.mxu0
    %v286 = vadd.f32 %v145, %v285
    %v287 = vand.u32 %v63, 4294901760
    %288 = vmatmul.f32.gmra.mxu0 %v287
    %v289 = vpop.f32.mrf.mxu0
    %v290 = vadd.f32 %v153, %v289
    %v291 = vand.u32 %v64, 4294901760
    %292 = vmatmul.f32.gmra.mxu0 %v291
    %v293 = vpop.f32.mrf.mxu0
    %v294 = vadd.f32 %v161, %v293
    %v295 = vand.u32 %v65, 4294901760
    %296 = vmatmul.f32.gmra.mxu0 %v295
    %v297 = vpop.f32.mrf.mxu0
    %v298 = vadd.f32 %v169, %v297
    %v299 = vand.u32 %v66, 4294901760
    %300 = vmatmul.f32.gmra.mxu0 %v299
    %v301 = vpop.f32.mrf.mxu0
    %v302 = vadd.f32 %v177, %v301
    %v303 = vand.u32 %v67, 4294901760
    %304 = vmatmul.f32.gmra.mxu0 %v303
    %v305 = vpop.f32.mrf.mxu0
    %v306 = vadd.f32 %v185, %v305
    %307 = vdwg.mxu0
    %v308 = vand.u32 %v83, 4294901760
    %v309 = vsub.f32 %v83, %v308
    %310 = vmatpush.msra.mxu0 %v309
    %v311 = vand.u32 %v82, 4294901760
    %v312 = vsub.f32 %v82, %v311
    %313 = vmatpush.msra.mxu0 %v312
    %v314 = vand.u32 %v81, 4294901760
    %v315 = vsub.f32 %v81, %v314
    %316 = vmatpush.msra.mxu0 %v315
    %v317 = vand.u32 %v80, 4294901760
    %v318 = vsub.f32 %v80, %v317
    %319 = vmatpush.msra.mxu0 %v318
    %v320 = vand.u32 %v79, 4294901760
    %v321 = vsub.f32 %v79, %v320
    %322 = vmatpush.msra.mxu0 %v321
    %v323 = vand.u32 %v78, 4294901760
    %v324 = vsub.f32 %v78, %v323
    %325 = vmatpush.msra.mxu0 %v324
    %v326 = vand.u32 %v77, 4294901760
    %v327 = vsub.f32 %v77, %v326
    %328 = vmatpush.msra.mxu0 %v327
    %v329 = vand.u32 %v76, 4294901760
    %v330 = vsub.f32 %v76, %v329
    %331 = vmatpush.msra.mxu0 %v330
    %v332 = vand.u32 %v75, 4294901760
    %v333 = vsub.f32 %v75, %v332
    %334 = vmatpush.msra.mxu0 %v333
    %v335 = vand.u32 %v74, 4294901760
    %v336 = vsub.f32 %v74, %v335
    %337 = vmatpush.msra.mxu0 %v336
    %v338 = vand.u32 %v73, 4294901760
    %v339 = vsub.f32 %v73, %v338
    %340 = vmatpush.msra.mxu0 %v339
    %v341 = vand.u32 %v72, 4294901760
    %v342 = vsub.f32 %v72, %v341
    %343 = vmatpush.msra.mxu0 %v342
    %v344 = vand.u32 %v71, 4294901760
    %v345 = vsub.f32 %v71, %v344
    %346 = vmatpush.msra.mxu0 %v345
    %v347 = vand.u32 %v70, 4294901760
    %v348 = vsub.f32 %v70, %v347
    %349 = vmatpush.msra.mxu0 %v348
    %v350 = vand.u32 %v69, 4294901760
    %v351 = vsub.f32 %v69, %v350
    %352 = vmatpush.msra.mxu0 %v351
    %v353 = vand.u32 %v68, 4294901760
    %v354 = vsub.f32 %v68, %v353
    %355 = vmatpush.msra.mxu0 %v354
    %v356 = vand.u32 %v62, 4294901760
    %v357 = vsub.f32 %v62, %v356
    %358 = vmatmul.f32.gmra.mxu0 %v357
    %v359 = vpop.f32.mrf.mxu0
    %v360 = vadd.f32 %v286, %v359
    %v361 = vand.u32 %v63, 4294901760
    %v362 = vsub.f32 %v63, %v361
    %363 = vmatmul.f32.gmra.mxu0 %v362
    %v364 = vpop.f32.mrf.mxu0
    %v365 = vadd.f32 %v290, %v364
    %v366 = vand.u32 %v64, 4294901760
    %v367 = vsub.f32 %v64, %v366
    %368 = vmatmul.f32.gmra.mxu0 %v367
    %v369 = vpop.f32.mrf.mxu0
    %v370 = vadd.f32 %v294, %v369
    %v371 = vand.u32 %v65, 4294901760
    %v372 = vsub.f32 %v65, %v371
    %373 = vmatmul.f32.gmra.mxu0 %v372
    %v374 = vpop.f32.mrf.mxu0
    %v375 = vadd.f32 %v298, %v374
    %v376 = vand.u32 %v66, 4294901760
    %v377 = vsub.f32 %v66, %v376
    %378 = vmatmul.f32.gmra.mxu0 %v377
    %v379 = vpop.f32.mrf.mxu0
    %v380 = vadd.f32 %v302, %v379
    %v381 = vand.u32 %v67, 4294901760
    %v382 = vsub.f32 %v67, %v381
    %383 = vmatmul.f32.gmra.mxu0 %v382
    %v384 = vpop.f32.mrf.mxu0
    %v385 = vadd.f32 %v306, %v384
    %386 = vdwg.mxu0
    %v387 = vand.u32 %v83, 4294901760
    %388 = vmatpush.msra.mxu0 %v387
    %v389 = vand.u32 %v82, 4294901760
    %390 = vmatpush.msra.mxu0 %v389
    %v391 = vand.u32 %v81, 4294901760
    %392 = vmatpush.msra.mxu0 %v391
    %v393 = vand.u32 %v80, 4294901760
    %394 = vmatpush.msra.mxu0 %v393
    %v395 = vand.u32 %v79, 4294901760
    %396 = vmatpush.msra.mxu0 %v395
    %v397 = vand.u32 %v78, 4294901760
    %398 = vmatpush.msra.mxu0 %v397
    %v399 = vand.u32 %v77, 4294901760
    %400 = vmatpush.msra.mxu0 %v399
    %v401 = vand.u32 %v76, 4294901760
    %402 = vmatpush.msra.mxu0 %v401
    %v403 = vand.u32 %v75, 4294901760
    %404 = vmatpush.msra.mxu0 %v403
    %v405 = vand.u32 %v74, 4294901760
    %406 = vmatpush.msra.mxu0 %v405
    %v407 = vand.u32 %v73, 4294901760
    %408 = vmatpush.msra.mxu0 %v407
    %v409 = vand.u32 %v72, 4294901760
    %410 = vmatpush.msra.mxu0 %v409
    %v411 = vand.u32 %v71, 4294901760
    %412 = vmatpush.msra.mxu0 %v411
    %v413 = vand.u32 %v70, 4294901760
    %414 = vmatpush.msra.mxu0 %v413
    %v415 = vand.u32 %v69, 4294901760
    %416 = vmatpush.msra.mxu0 %v415
    %v417 = vand.u32 %v68, 4294901760
    %418 = vmatpush.msra.mxu0 %v417
    %v419 = vand.u32 %v62, 4294901760
    %v420 = vsub.f32 %v62, %v419
    %v421 = vand.u32 %v420, 4294901760
    %422 = vmatmul.f32.gmra.mxu0 %v421
    %v423 = vpop.f32.mrf.mxu0
    %v424 = vadd.f32 %v360, %v423
    %v425 = vand.u32 %v63, 4294901760
    %v426 = vsub.f32 %v63, %v425
    %v427 = vand.u32 %v426, 4294901760
    %428 = vmatmul.f32.gmra.mxu0 %v427
    %v429 = vpop.f32.mrf.mxu0
    %v430 = vadd.f32 %v365, %v429
    %v431 = vand.u32 %v64, 4294901760
    %v432 = vsub.f32 %v64, %v431
    %v433 = vand.u32 %v432, 4294901760
    %434 = vmatmul.f32.gmra.mxu0 %v433
    %v435 = vpop.f32.mrf.mxu0
    %v436 = vadd.f32 %v370, %v435
    %v437 = vand.u32 %v65, 4294901760
    %v438 = vsub.f32 %v65, %v437
    %v439 = vand.u32 %v438, 4294901760
    %440 = vmatmul.f32.gmra.mxu0 %v439
    %v441 = vpop.f32.mrf.mxu0
    %v442 = vadd.f32 %v375, %v441
    %v443 = vand.u32 %v66, 4294901760
    %v444 = vsub.f32 %v66, %v443
    %v445 = vand.u32 %v444, 4294901760
    %446 = vmatmul.f32.gmra.mxu0 %v445
    %v447 = vpop.f32.mrf.mxu0
    %v448 = vadd.f32 %v380, %v447
    %v449 = vand.u32 %v67, 4294901760
    %v450 = vsub.f32 %v67, %v449
    %v451 = vand.u32 %v450, 4294901760
    %452 = vmatmul.f32.gmra.mxu0 %v451
    %v453 = vpop.f32.mrf.mxu0
    %v454 = vadd.f32 %v385, %v453
    %455 = vdwg.mxu0
    %v456 = vand.u32 %v83, 4294901760
    %v457 = vsub.f32 %v83, %v456
    %v458 = vand.u32 %v457, 4294901760
    %459 = vmatpush.msra.mxu0 %v458
    %v460 = vand.u32 %v82, 4294901760
    %v461 = vsub.f32 %v82, %v460
    %v462 = vand.u32 %v461, 4294901760
    %463 = vmatpush.msra.mxu0 %v462
    %v464 = vand.u32 %v81, 4294901760
    %v465 = vsub.f32 %v81, %v464
    %v466 = vand.u32 %v465, 4294901760
    %467 = vmatpush.msra.mxu0 %v466
    %v468 = vand.u32 %v80, 4294901760
    %v469 = vsub.f32 %v80, %v468
    %v470 = vand.u32 %v469, 4294901760
    %471 = vmatpush.msra.mxu0 %v470
    %v472 = vand.u32 %v79, 4294901760
    %v473 = vsub.f32 %v79, %v472
    %v474 = vand.u32 %v473, 4294901760
    %475 = vmatpush.msra.mxu0 %v474
    %v476 = vand.u32 %v78, 4294901760
    %v477 = vsub.f32 %v78, %v476
    %v478 = vand.u32 %v477, 4294901760
    %479 = vmatpush.msra.mxu0 %v478
    %v480 = vand.u32 %v77, 4294901760
    %v481 = vsub.f32 %v77, %v480
    %v482 = vand.u32 %v481, 4294901760
    %483 = vmatpush.msra.mxu0 %v482
    %v484 = vand.u32 %v76, 4294901760
    %v485 = vsub.f32 %v76, %v484
    %v486 = vand.u32 %v485, 4294901760
    %487 = vmatpush.msra.mxu0 %v486
    %v488 = vand.u32 %v75, 4294901760
    %v489 = vsub.f32 %v75, %v488
    %v490 = vand.u32 %v489, 4294901760
    %491 = vmatpush.msra.mxu0 %v490
    %v492 = vand.u32 %v74, 4294901760
    %v493 = vsub.f32 %v74, %v492
    %v494 = vand.u32 %v493, 4294901760
    %495 = vmatpush.msra.mxu0 %v494
    %v496 = vand.u32 %v73, 4294901760
    %v497 = vsub.f32 %v73, %v496
    %v498 = vand.u32 %v497, 4294901760
    %499 = vmatpush.msra.mxu0 %v498
    %v500 = vand.u32 %v72, 4294901760
    %v501 = vsub.f32 %v72, %v500
    %v502 = vand.u32 %v501, 4294901760
    %503 = vmatpush.msra.mxu0 %v502
    %v504 = vand.u32 %v71, 4294901760
    %v505 = vsub.f32 %v71, %v504
    %v506 = vand.u32 %v505, 4294901760
    %507 = vmatpush.msra.mxu0 %v506
    %v508 = vand.u32 %v70, 4294901760
    %v509 = vsub.f32 %v70, %v508
    %v510 = vand.u32 %v509, 4294901760
    %511 = vmatpush.msra.mxu0 %v510
    %v512 = vand.u32 %v69, 4294901760
    %v513 = vsub.f32 %v69, %v512
    %v514 = vand.u32 %v513, 4294901760
    %515 = vmatpush.msra.mxu0 %v514
    %v516 = vand.u32 %v68, 4294901760
    %v517 = vsub.f32 %v68, %v516
    %v518 = vand.u32 %v517, 4294901760
    %519 = vmatpush.msra.mxu0 %v518
    %v520 = vand.u32 %v62, 4294901760
    %521 = vmatmul.f32.gmra.mxu0 %v520
    %v522 = vpop.f32.mrf.mxu0
    %v523 = vadd.f32 %v424, %v522
    %v524 = vand.u32 %v63, 4294901760
    %525 = vmatmul.f32.gmra.mxu0 %v524
    %v526 = vpop.f32.mrf.mxu0
    %v527 = vadd.f32 %v430, %v526
    %v528 = vand.u32 %v64, 4294901760
    %529 = vmatmul.f32.gmra.mxu0 %v528
    %v530 = vpop.f32.mrf.mxu0
    %v531 = vadd.f32 %v436, %v530
    %v532 = vand.u32 %v65, 4294901760
    %533 = vmatmul.f32.gmra.mxu0 %v532
    %v534 = vpop.f32.mrf.mxu0
    %v535 = vadd.f32 %v442, %v534
    %v536 = vand.u32 %v66, 4294901760
    %537 = vmatmul.f32.gmra.mxu0 %v536
    %v538 = vpop.f32.mrf.mxu0
    %v539 = vadd.f32 %v448, %v538
    %v540 = vand.u32 %v67, 4294901760
    %541 = vmatmul.f32.gmra.mxu0 %v540
    %v542 = vpop.f32.mrf.mxu0
    %v543 = vadd.f32 %v454, %v542
    %544 = vdwg.mxu0
    %v545 = vand.u32 %v83, 4294901760
    %546 = vmatpush.msra.mxu0 %v545
    %v547 = vand.u32 %v82, 4294901760
    %548 = vmatpush.msra.mxu0 %v547
    %v549 = vand.u32 %v81, 4294901760
    %550 = vmatpush.msra.mxu0 %v549
    %v551 = vand.u32 %v80, 4294901760
    %552 = vmatpush.msra.mxu0 %v551
    %v553 = vand.u32 %v79, 4294901760
    %554 = vmatpush.msra.mxu0 %v553
    %v555 = vand.u32 %v78, 4294901760
    %556 = vmatpush.msra.mxu0 %v555
    %v557 = vand.u32 %v77, 4294901760
    %558 = vmatpush.msra.mxu0 %v557
    %v559 = vand.u32 %v76, 4294901760
    %560 = vmatpush.msra.mxu0 %v559
    %v561 = vand.u32 %v75, 4294901760
    %562 = vmatpush.msra.mxu0 %v561
    %v563 = vand.u32 %v74, 4294901760
    %564 = vmatpush.msra.mxu0 %v563
    %v565 = vand.u32 %v73, 4294901760
    %566 = vmatpush.msra.mxu0 %v565
    %v567 = vand.u32 %v72, 4294901760
    %568 = vmatpush.msra.mxu0 %v567
    %v569 = vand.u32 %v71, 4294901760
    %570 = vmatpush.msra.mxu0 %v569
    %v571 = vand.u32 %v70, 4294901760
    %572 = vmatpush.msra.mxu0 %v571
    %v573 = vand.u32 %v69, 4294901760
    %574 = vmatpush.msra.mxu0 %v573
    %v575 = vand.u32 %v68, 4294901760
    %576 = vmatpush.msra.mxu0 %v575
    %v577 = vand.u32 %v62, 4294901760
    %578 = vmatmul.f32.gmra.mxu0 %v577
    %v579 = vpop.f32.mrf.mxu0
    %v580 = vadd.f32 %v523, %v579
    %v581 = vand.u32 %v63, 4294901760
    %582 = vmatmul.f32.gmra.mxu0 %v581
    %v583 = vpop.f32.mrf.mxu0
    %v584 = vadd.f32 %v527, %v583
    %v585 = vand.u32 %v64, 4294901760
    %586 = vmatmul.f32.gmra.mxu0 %v585
    %v587 = vpop.f32.mrf.mxu0
    %v588 = vadd.f32 %v531, %v587
    %v589 = vand.u32 %v65, 4294901760
    %590 = vmatmul.f32.gmra.mxu0 %v589
    %v591 = vpop.f32.mrf.mxu0
    %v592 = vadd.f32 %v535, %v591
    %v593 = vand.u32 %v66, 4294901760
    %594 = vmatmul.f32.gmra.mxu0 %v593
    %v595 = vpop.f32.mrf.mxu0
    %v596 = vadd.f32 %v539, %v595
    %v597 = vand.u32 %v67, 4294901760
    %598 = vmatmul.f32.gmra.mxu0 %v597
    %v599 = vpop.f32.mrf.mxu0
    %v600 = vadd.f32 %v543, %v599
    %601 = vdwg.mxu0
    %602 = vmax.xlane.f32.xlu0 %v580
    %v603 = vpop.xlane.xlu0 %602
    %604 = vmax.xlane.f32.xlu0 %v584
    %v605 = vpop.xlane.xlu0 %604
    %606 = vmax.xlane.f32.xlu0 %v588
    %v607 = vpop.xlane.xlu0 %606
    %608 = vmax.xlane.f32.xlu0 %v592
    %v609 = vpop.xlane.xlu0 %608
    %610 = vmax.xlane.f32.xlu0 %v596
    %v611 = vpop.xlane.xlu0 %610
    %612 = vmax.xlane.f32.xlu0 %v600
    %v613 = vpop.xlane.xlu0 %612
    %v614 = vsub.f32 %v580, %v603
    %v615 = vsub.f32 %v584, %v605
    %v616 = vsub.f32 %v588, %v607
    %v617 = vsub.f32 %v592, %v609
    %v618 = vsub.f32 %v596, %v611
    %v619 = vsub.f32 %v600, %v613
    %v620 = vmul.f32 %v614, 1.442695
    %v621 = vpow.pop %v620
    %v622 = vmul.f32 %v615, 1.442695
    %v623 = vpow.pop %v622
    %v624 = vmul.f32 %v616, 1.442695
    %v625 = vpow.pop %v624
    %v626 = vmul.f32 %v617, 1.442695
    %v627 = vpow.pop %v626
    %v628 = vmul.f32 %v618, 1.442695
    %v629 = vpow.pop %v628
    %v630 = vmul.f32 %v619, 1.442695
    %v631 = vpow.pop %v630
    %v632 = vmul.f32 %v621, %v105
    %v633 = vmul.f32 %v623, %v105
    %v634 = vmul.f32 %v625, %v105
    %v635 = vmul.f32 %v627, %v105
    %v636 = vmul.f32 %v629, %v105
    %v637 = vmul.f32 %v631, %v105
    %638 = vadd.xlane.f32.xlu0 %v632
    %v639 = vpop.xlane.xlu0 %638
    %640 = vadd.xlane.f32.xlu0 %v633
    %v641 = vpop.xlane.xlu0 %640
    %642 = vadd.xlane.f32.xlu0 %v634
    %v643 = vpop.xlane.xlu0 %642
    %644 = vadd.xlane.f32.xlu0 %v635
    %v645 = vpop.xlane.xlu0 %644
    %646 = vadd.xlane.f32.xlu0 %v636
    %v647 = vpop.xlane.xlu0 %646
    %648 = vadd.xlane.f32.xlu0 %v637
    %v649 = vpop.xlane.xlu0 %648
    %v650 = vand.u32 %v99, 4294901760
    %651 = vmatpush.msra.mxu0 %v650
    %v652 = vand.u32 %v98, 4294901760
    %653 = vmatpush.msra.mxu0 %v652
    %v654 = vand.u32 %v97, 4294901760
    %655 = vmatpush.msra.mxu0 %v654
    %v656 = vand.u32 %v96, 4294901760
    %657 = vmatpush.msra.mxu0 %v656
    %v658 = vand.u32 %v95, 4294901760
    %659 = vmatpush.msra.mxu0 %v658
    %v660 = vand.u32 %v94, 4294901760
    %661 = vmatpush.msra.mxu0 %v660
    %v662 = vand.u32 %v93, 4294901760
    %663 = vmatpush.msra.mxu0 %v662
    %v664 = vand.u32 %v92, 4294901760
    %665 = vmatpush.msra.mxu0 %v664
    %v666 = vand.u32 %v91, 4294901760
    %667 = vmatpush.msra.mxu0 %v666
    %v668 = vand.u32 %v90, 4294901760
    %669 = vmatpush.msra.mxu0 %v668
    %v670 = vand.u32 %v89, 4294901760
    %671 = vmatpush.msra.mxu0 %v670
    %v672 = vand.u32 %v88, 4294901760
    %673 = vmatpush.msra.mxu0 %v672
    %v674 = vand.u32 %v87, 4294901760
    %675 = vmatpush.msra.mxu0 %v674
    %v676 = vand.u32 %v86, 4294901760
    %677 = vmatpush.msra.mxu0 %v676
    %v678 = vand.u32 %v85, 4294901760
    %679 = vmatpush.msra.mxu0 %v678
    %v680 = vand.u32 %v84, 4294901760
    %681 = vmatpush.msra.mxu0 %v680
    %v682 = vand.u32 %v632, 4294901760
    %v683 = vsub.f32 %v632, %v682
    %v684 = vand.u32 %v683, 4294901760
    %v685 = vsub.f32 %v683, %v684
    %v686 = vand.u32 %v685, 4294901760
    %687 = vmatmul.f32.gmra.mxu0 %v686
    %v688 = vpop.f32.mrf.mxu0
    %v689 = vadd.f32 0.0, %v688
    %v690 = vand.u32 %v633, 4294901760
    %v691 = vsub.f32 %v633, %v690
    %v692 = vand.u32 %v691, 4294901760
    %v693 = vsub.f32 %v691, %v692
    %v694 = vand.u32 %v693, 4294901760
    %695 = vmatmul.f32.gmra.mxu0 %v694
    %v696 = vpop.f32.mrf.mxu0
    %v697 = vadd.f32 0.0, %v696
    %v698 = vand.u32 %v634, 4294901760
    %v699 = vsub.f32 %v634, %v698
    %v700 = vand.u32 %v699, 4294901760
    %v701 = vsub.f32 %v699, %v700
    %v702 = vand.u32 %v701, 4294901760
    %703 = vmatmul.f32.gmra.mxu0 %v702
    %v704 = vpop.f32.mrf.mxu0
    %v705 = vadd.f32 0.0, %v704
    %v706 = vand.u32 %v635, 4294901760
    %v707 = vsub.f32 %v635, %v706
    %v708 = vand.u32 %v707, 4294901760
    %v709 = vsub.f32 %v707, %v708
    %v710 = vand.u32 %v709, 4294901760
    %711 = vmatmul.f32.gmra.mxu0 %v710
    %v712 = vpop.f32.mrf.mxu0
    %v713 = vadd.f32 0.0, %v712
    %v714 = vand.u32 %v636, 4294901760
    %v715 = vsub.f32 %v636, %v714
    %v716 = vand.u32 %v715, 4294901760
    %v717 = vsub.f32 %v715, %v716
    %v718 = vand.u32 %v717, 4294901760
    %719 = vmatmul.f32.gmra.mxu0 %v718
    %v720 = vpop.f32.mrf.mxu0
    %v721 = vadd.f32 0.0, %v720
    %v722 = vand.u32 %v637, 4294901760
    %v723 = vsub.f32 %v637, %v722
    %v724 = vand.u32 %v723, 4294901760
    %v725 = vsub.f32 %v723, %v724
    %v726 = vand.u32 %v725, 4294901760
    %727 = vmatmul.f32.gmra.mxu0 %v726
    %v728 = vpop.f32.mrf.mxu0
    %v729 = vadd.f32 0.0, %v728
    %730 = vdwg.mxu0
    %v731 = vand.u32 %v99, 4294901760
    %v732 = vsub.f32 %v99, %v731
    %v733 = vand.u32 %v732, 4294901760
    %v734 = vsub.f32 %v732, %v733
    %v735 = vand.u32 %v734, 4294901760
    %736 = vmatpush.msra.mxu0 %v735
    %v737 = vand.u32 %v98, 4294901760
    %v738 = vsub.f32 %v98, %v737
    %v739 = vand.u32 %v738, 4294901760
    %v740 = vsub.f32 %v738, %v739
    %v741 = vand.u32 %v740, 4294901760
    %742 = vmatpush.msra.mxu0 %v741
    %v743 = vand.u32 %v97, 4294901760
    %v744 = vsub.f32 %v97, %v743
    %v745 = vand.u32 %v744, 4294901760
    %v746 = vsub.f32 %v744, %v745
    %v747 = vand.u32 %v746, 4294901760
    %748 = vmatpush.msra.mxu0 %v747
    %v749 = vand.u32 %v96, 4294901760
    %v750 = vsub.f32 %v96, %v749
    %v751 = vand.u32 %v750, 4294901760
    %v752 = vsub.f32 %v750, %v751
    %v753 = vand.u32 %v752, 4294901760
    %754 = vmatpush.msra.mxu0 %v753
    %v755 = vand.u32 %v95, 4294901760
    %v756 = vsub.f32 %v95, %v755
    %v757 = vand.u32 %v756, 4294901760
    %v758 = vsub.f32 %v756, %v757
    %v759 = vand.u32 %v758, 4294901760
    %760 = vmatpush.msra.mxu0 %v759
    %v761 = vand.u32 %v94, 4294901760
    %v762 = vsub.f32 %v94, %v761
    %v763 = vand.u32 %v762, 4294901760
    %v764 = vsub.f32 %v762, %v763
    %v765 = vand.u32 %v764, 4294901760
    %766 = vmatpush.msra.mxu0 %v765
    %v767 = vand.u32 %v93, 4294901760
    %v768 = vsub.f32 %v93, %v767
    %v769 = vand.u32 %v768, 4294901760
    %v770 = vsub.f32 %v768, %v769
    %v771 = vand.u32 %v770, 4294901760
    %772 = vmatpush.msra.mxu0 %v771
    %v773 = vand.u32 %v92, 4294901760
    %v774 = vsub.f32 %v92, %v773
    %v775 = vand.u32 %v774, 4294901760
    %v776 = vsub.f32 %v774, %v775
    %v777 = vand.u32 %v776, 4294901760
    %778 = vmatpush.msra.mxu0 %v777
    %v779 = vand.u32 %v91, 4294901760
    %v780 = vsub.f32 %v91, %v779
    %v781 = vand.u32 %v780, 4294901760
    %v782 = vsub.f32 %v780, %v781
    %v783 = vand.u32 %v782, 4294901760
    %784 = vmatpush.msra.mxu0 %v783
    %v785 = vand.u32 %v90, 4294901760
    %v786 = vsub.f32 %v90, %v785
    %v787 = vand.u32 %v786, 4294901760
    %v788 = vsub.f32 %v786, %v787
    %v789 = vand.u32 %v788, 4294901760
    %790 = vmatpush.msra.mxu0 %v789
    %v791 = vand.u32 %v89, 4294901760
    %v792 = vsub.f32 %v89, %v791
    %v793 = vand.u32 %v792, 4294901760
    %v794 = vsub.f32 %v792, %v793
    %v795 = vand.u32 %v794, 4294901760
    %796 = vmatpush.msra.mxu0 %v795
    %v797 = vand.u32 %v88, 4294901760
    %v798 = vsub.f32 %v88, %v797
    %v799 = vand.u32 %v798, 4294901760
    %v800 = vsub.f32 %v798, %v799
    %v801 = vand.u32 %v800, 4294901760
    %802 = vmatpush.msra.mxu0 %v801
    %v803 = vand.u32 %v87, 4294901760
    %v804 = vsub.f32 %v87, %v803
    %v805 = vand.u32 %v804, 4294901760
    %v806 = vsub.f32 %v804, %v805
    %v807 = vand.u32 %v806, 4294901760
    %808 = vmatpush.msra.mxu0 %v807
    %v809 = vand.u32 %v86, 4294901760
    %v810 = vsub.f32 %v86, %v809
    %v811 = vand.u32 %v810, 4294901760
    %v812 = vsub.f32 %v810, %v811
    %v813 = vand.u32 %v812, 4294901760
    %814 = vmatpush.msra.mxu0 %v813
    %v815 = vand.u32 %v85, 4294901760
    %v816 = vsub.f32 %v85, %v815
    %v817 = vand.u32 %v816, 4294901760
    %v818 = vsub.f32 %v816, %v817
    %v819 = vand.u32 %v818, 4294901760
    %820 = vmatpush.msra.mxu0 %v819
    %v821 = vand.u32 %v84, 4294901760
    %v822 = vsub.f32 %v84, %v821
    %v823 = vand.u32 %v822, 4294901760
    %v824 = vsub.f32 %v822, %v823
    %v825 = vand.u32 %v824, 4294901760
    %826 = vmatpush.msra.mxu0 %v825
    %v827 = vand.u32 %v632, 4294901760
    %828 = vmatmul.f32.gmra.mxu0 %v827
    %v829 = vpop.f32.mrf.mxu0
    %v830 = vadd.f32 %v689, %v829
    %v831 = vand.u32 %v633, 4294901760
    %832 = vmatmul.f32.gmra.mxu0 %v831
    %v833 = vpop.f32.mrf.mxu0
    %v834 = vadd.f32 %v697, %v833
    %v835 = vand.u32 %v634, 4294901760
    %836 = vmatmul.f32.gmra.mxu0 %v835
    %v837 = vpop.f32.mrf.mxu0
    %v838 = vadd.f32 %v705, %v837
    %v839 = vand.u32 %v635, 4294901760
    %840 = vmatmul.f32.gmra.mxu0 %v839
    %v841 = vpop.f32.mrf.mxu0
    %v842 = vadd.f32 %v713, %v841
    %v843 = vand.u32 %v636, 4294901760
    %844 = vmatmul.f32.gmra.mxu0 %v843
    %v845 = vpop.f32.mrf.mxu0
    %v846 = vadd.f32 %v721, %v845
    %v847 = vand.u32 %v637, 4294901760
    %848 = vmatmul.f32.gmra.mxu0 %v847
    %v849 = vpop.f32.mrf.mxu0
    %v850 = vadd.f32 %v729, %v849
    %851 = vdwg.mxu0
    %v852 = vand.u32 %v99, 4294901760
    %v853 = vsub.f32 %v99, %v852
    %854 = vmatpush.msra.mxu0 %v853
    %v855 = vand.u32 %v98, 4294901760
    %v856 = vsub.f32 %v98, %v855
    %857 = vmatpush.msra.mxu0 %v856
    %v858 = vand.u32 %v97, 4294901760
    %v859 = vsub.f32 %v97, %v858
    %860 = vmatpush.msra.mxu0 %v859
    %v861 = vand.u32 %v96, 4294901760
    %v862 = vsub.f32 %v96, %v861
    %863 = vmatpush.msra.mxu0 %v862
    %v864 = vand.u32 %v95, 4294901760
    %v865 = vsub.f32 %v95, %v864
    %866 = vmatpush.msra.mxu0 %v865
    %v867 = vand.u32 %v94, 4294901760
    %v868 = vsub.f32 %v94, %v867
    %869 = vmatpush.msra.mxu0 %v868
    %v870 = vand.u32 %v93, 4294901760
    %v871 = vsub.f32 %v93, %v870
    %872 = vmatpush.msra.mxu0 %v871
    %v873 = vand.u32 %v92, 4294901760
    %v874 = vsub.f32 %v92, %v873
    %875 = vmatpush.msra.mxu0 %v874
    %v876 = vand.u32 %v91, 4294901760
    %v877 = vsub.f32 %v91, %v876
    %878 = vmatpush.msra.mxu0 %v877
    %v879 = vand.u32 %v90, 4294901760
    %v880 = vsub.f32 %v90, %v879
    %881 = vmatpush.msra.mxu0 %v880
    %v882 = vand.u32 %v89, 4294901760
    %v883 = vsub.f32 %v89, %v882
    %884 = vmatpush.msra.mxu0 %v883
    %v885 = vand.u32 %v88, 4294901760
    %v886 = vsub.f32 %v88, %v885
    %887 = vmatpush.msra.mxu0 %v886
    %v888 = vand.u32 %v87, 4294901760
    %v889 = vsub.f32 %v87, %v888
    %890 = vmatpush.msra.mxu0 %v889
    %v891 = vand.u32 %v86, 4294901760
    %v892 = vsub.f32 %v86, %v891
    %893 = vmatpush.msra.mxu0 %v892
    %v894 = vand.u32 %v85, 4294901760
    %v895 = vsub.f32 %v85, %v894
    %896 = vmatpush.msra.mxu0 %v895
    %v897 = vand.u32 %v84, 4294901760
    %v898 = vsub.f32 %v84, %v897
    %899 = vmatpush.msra.mxu0 %v898
    %v900 = vand.u32 %v632, 4294901760
    %v901 = vsub.f32 %v632, %v900
    %902 = vmatmul.f32.gmra.mxu0 %v901
    %v903 = vpop.f32.mrf.mxu0
    %v904 = vadd.f32 %v830, %v903
    %v905 = vand.u32 %v633, 4294901760
    %v906 = vsub.f32 %v633, %v905
    %907 = vmatmul.f32.gmra.mxu0 %v906
    %v908 = vpop.f32.mrf.mxu0
    %v909 = vadd.f32 %v834, %v908
    %v910 = vand.u32 %v634, 4294901760
    %v911 = vsub.f32 %v634, %v910
    %912 = vmatmul.f32.gmra.mxu0 %v911
    %v913 = vpop.f32.mrf.mxu0
    %v914 = vadd.f32 %v838, %v913
    %v915 = vand.u32 %v635, 4294901760
    %v916 = vsub.f32 %v635, %v915
    %917 = vmatmul.f32.gmra.mxu0 %v916
    %v918 = vpop.f32.mrf.mxu0
    %v919 = vadd.f32 %v842, %v918
    %v920 = vand.u32 %v636, 4294901760
    %v921 = vsub.f32 %v636, %v920
    %922 = vmatmul.f32.gmra.mxu0 %v921
    %v923 = vpop.f32.mrf.mxu0
    %v924 = vadd.f32 %v846, %v923
    %v925 = vand.u32 %v637, 4294901760
    %v926 = vsub.f32 %v637, %v925
    %927 = vmatmul.f32.gmra.mxu0 %v926
    %v928 = vpop.f32.mrf.mxu0
    %v929 = vadd.f32 %v850, %v928
    %930 = vdwg.mxu0
    %v931 = vand.u32 %v99, 4294901760
    %932 = vmatpush.msra.mxu0 %v931
    %v933 = vand.u32 %v98, 4294901760
    %934 = vmatpush.msra.mxu0 %v933
    %v935 = vand.u32 %v97, 4294901760
    %936 = vmatpush.msra.mxu0 %v935
    %v937 = vand.u32 %v96, 4294901760
    %938 = vmatpush.msra.mxu0 %v937
    %v939 = vand.u32 %v95, 4294901760
    %940 = vmatpush.msra.mxu0 %v939
    %v941 = vand.u32 %v94, 4294901760
    %942 = vmatpush.msra.mxu0 %v941
    %v943 = vand.u32 %v93, 4294901760
    %944 = vmatpush.msra.mxu0 %v943
    %v945 = vand.u32 %v92, 4294901760
    %946 = vmatpush.msra.mxu0 %v945
    %v947 = vand.u32 %v91, 4294901760
    %948 = vmatpush.msra.mxu0 %v947
    %v949 = vand.u32 %v90, 4294901760
    %950 = vmatpush.msra.mxu0 %v949
    %v951 = vand.u32 %v89, 4294901760
    %952 = vmatpush.msra.mxu0 %v951
    %v953 = vand.u32 %v88, 4294901760
    %954 = vmatpush.msra.mxu0 %v953
    %v955 = vand.u32 %v87, 4294901760
    %956 = vmatpush.msra.mxu0 %v955
    %v957 = vand.u32 %v86, 4294901760
    %958 = vmatpush.msra.mxu0 %v957
    %v959 = vand.u32 %v85, 4294901760
    %960 = vmatpush.msra.mxu0 %v959
    %v961 = vand.u32 %v84, 4294901760
    %962 = vmatpush.msra.mxu0 %v961
    %v963 = vand.u32 %v632, 4294901760
    %v964 = vsub.f32 %v632, %v963
    %v965 = vand.u32 %v964, 4294901760
    %966 = vmatmul.f32.gmra.mxu0 %v965
    %v967 = vpop.f32.mrf.mxu0
    %v968 = vadd.f32 %v904, %v967
    %v969 = vand.u32 %v633, 4294901760
    %v970 = vsub.f32 %v633, %v969
    %v971 = vand.u32 %v970, 4294901760
    %972 = vmatmul.f32.gmra.mxu0 %v971
    %v973 = vpop.f32.mrf.mxu0
    %v974 = vadd.f32 %v909, %v973
    %v975 = vand.u32 %v634, 4294901760
    %v976 = vsub.f32 %v634, %v975
    %v977 = vand.u32 %v976, 4294901760
    %978 = vmatmul.f32.gmra.mxu0 %v977
    %v979 = vpop.f32.mrf.mxu0
    %v980 = vadd.f32 %v914, %v979
    %v981 = vand.u32 %v635, 4294901760
    %v982 = vsub.f32 %v635, %v981
    %v983 = vand.u32 %v982, 4294901760
    %984 = vmatmul.f32.gmra.mxu0 %v983
    %v985 = vpop.f32.mrf.mxu0
    %v986 = vadd.f32 %v919, %v985
    %v987 = vand.u32 %v636, 4294901760
    %v988 = vsub.f32 %v636, %v987
    %v989 = vand.u32 %v988, 4294901760
    %990 = vmatmul.f32.gmra.mxu0 %v989
    %v991 = vpop.f32.mrf.mxu0
    %v992 = vadd.f32 %v924, %v991
    %v993 = vand.u32 %v637, 4294901760
    %v994 = vsub.f32 %v637, %v993
    %v995 = vand.u32 %v994, 4294901760
    %996 = vmatmul.f32.gmra.mxu0 %v995
    %v997 = vpop.f32.mrf.mxu0
    %v998 = vadd.f32 %v929, %v997
    %999 = vdwg.mxu0
    %v1000 = vand.u32 %v99, 4294901760
    %v1001 = vsub.f32 %v99, %v1000
    %v1002 = vand.u32 %v1001, 4294901760
    %1003 = vmatpush.msra.mxu0 %v1002
    %v1004 = vand.u32 %v98, 4294901760
    %v1005 = vsub.f32 %v98, %v1004
    %v1006 = vand.u32 %v1005, 4294901760
    %1007 = vmatpush.msra.mxu0 %v1006
    %v1008 = vand.u32 %v97, 4294901760
    %v1009 = vsub.f32 %v97, %v1008
    %v1010 = vand.u32 %v1009, 4294901760
    %1011 = vmatpush.msra.mxu0 %v1010
    %v1012 = vand.u32 %v96, 4294901760
    %v1013 = vsub.f32 %v96, %v1012
    %v1014 = vand.u32 %v1013, 4294901760
    %1015 = vmatpush.msra.mxu0 %v1014
    %v1016 = vand.u32 %v95, 4294901760
    %v1017 = vsub.f32 %v95, %v1016
    %v1018 = vand.u32 %v1017, 4294901760
    %1019 = vmatpush.msra.mxu0 %v1018
    %v1020 = vand.u32 %v94, 4294901760
    %v1021 = vsub.f32 %v94, %v1020
    %v1022 = vand.u32 %v1021, 4294901760
    %1023 = vmatpush.msra.mxu0 %v1022
    %v1024 = vand.u32 %v93, 4294901760
    %v1025 = vsub.f32 %v93, %v1024
    %v1026 = vand.u32 %v1025, 4294901760
    %1027 = vmatpush.msra.mxu0 %v1026
    %v1028 = vand.u32 %v92, 4294901760
    %v1029 = vsub.f32 %v92, %v1028
    %v1030 = vand.u32 %v1029, 4294901760
    %1031 = vmatpush.msra.mxu0 %v1030
    %v1032 = vand.u32 %v91, 4294901760
    %v1033 = vsub.f32 %v91, %v1032
    %v1034 = vand.u32 %v1033, 4294901760
    %1035 = vmatpush.msra.mxu0 %v1034
    %v1036 = vand.u32 %v90, 4294901760
    %v1037 = vsub.f32 %v90, %v1036
    %v1038 = vand.u32 %v1037, 4294901760
    %1039 = vmatpush.msra.mxu0 %v1038
    %v1040 = vand.u32 %v89, 4294901760
    %v1041 = vsub.f32 %v89, %v1040
    %v1042 = vand.u32 %v1041, 4294901760
    %1043 = vmatpush.msra.mxu0 %v1042
    %v1044 = vand.u32 %v88, 4294901760
    %v1045 = vsub.f32 %v88, %v1044
    %v1046 = vand.u32 %v1045, 4294901760
    %1047 = vmatpush.msra.mxu0 %v1046
    %v1048 = vand.u32 %v87, 4294901760
    %v1049 = vsub.f32 %v87, %v1048
    %v1050 = vand.u32 %v1049, 4294901760
    %1051 = vmatpush.msra.mxu0 %v1050
    %v1052 = vand.u32 %v86, 4294901760
    %v1053 = vsub.f32 %v86, %v1052
    %v1054 = vand.u32 %v1053, 4294901760
    %1055 = vmatpush.msra.mxu0 %v1054
    %v1056 = vand.u32 %v85, 4294901760
    %v1057 = vsub.f32 %v85, %v1056
    %v1058 = vand.u32 %v1057, 4294901760
    %1059 = vmatpush.msra.mxu0 %v1058
    %v1060 = vand.u32 %v84, 4294901760
    %v1061 = vsub.f32 %v84, %v1060
    %v1062 = vand.u32 %v1061, 4294901760
    %1063 = vmatpush.msra.mxu0 %v1062
    %v1064 = vand.u32 %v632, 4294901760
    %1065 = vmatmul.f32.gmra.mxu0 %v1064
    %v1066 = vpop.f32.mrf.mxu0
    %v1067 = vadd.f32 %v968, %v1066
    %v1068 = vand.u32 %v633, 4294901760
    %1069 = vmatmul.f32.gmra.mxu0 %v1068
    %v1070 = vpop.f32.mrf.mxu0
    %v1071 = vadd.f32 %v974, %v1070
    %v1072 = vand.u32 %v634, 4294901760
    %1073 = vmatmul.f32.gmra.mxu0 %v1072
    %v1074 = vpop.f32.mrf.mxu0
    %v1075 = vadd.f32 %v980, %v1074
    %v1076 = vand.u32 %v635, 4294901760
    %1077 = vmatmul.f32.gmra.mxu0 %v1076
    %v1078 = vpop.f32.mrf.mxu0
    %v1079 = vadd.f32 %v986, %v1078
    %v1080 = vand.u32 %v636, 4294901760
    %1081 = vmatmul.f32.gmra.mxu0 %v1080
    %v1082 = vpop.f32.mrf.mxu0
    %v1083 = vadd.f32 %v992, %v1082
    %v1084 = vand.u32 %v637, 4294901760
    %1085 = vmatmul.f32.gmra.mxu0 %v1084
    %v1086 = vpop.f32.mrf.mxu0
    %v1087 = vadd.f32 %v998, %v1086
    %1088 = vdwg.mxu0
    %v1089 = vand.u32 %v99, 4294901760
    %1090 = vmatpush.msra.mxu0 %v1089
    %v1091 = vand.u32 %v98, 4294901760
    %1092 = vmatpush.msra.mxu0 %v1091
    %v1093 = vand.u32 %v97, 4294901760
    %1094 = vmatpush.msra.mxu0 %v1093
    %v1095 = vand.u32 %v96, 4294901760
    %1096 = vmatpush.msra.mxu0 %v1095
    %v1097 = vand.u32 %v95, 4294901760
    %1098 = vmatpush.msra.mxu0 %v1097
    %v1099 = vand.u32 %v94, 4294901760
    %1100 = vmatpush.msra.mxu0 %v1099
    %v1101 = vand.u32 %v93, 4294901760
    %1102 = vmatpush.msra.mxu0 %v1101
    %v1103 = vand.u32 %v92, 4294901760
    %1104 = vmatpush.msra.mxu0 %v1103
    %v1105 = vand.u32 %v91, 4294901760
    %1106 = vmatpush.msra.mxu0 %v1105
    %v1107 = vand.u32 %v90, 4294901760
    %1108 = vmatpush.msra.mxu0 %v1107
    %v1109 = vand.u32 %v89, 4294901760
    %1110 = vmatpush.msra.mxu0 %v1109
    %v1111 = vand.u32 %v88, 4294901760
    %1112 = vmatpush.msra.mxu0 %v1111
    %v1113 = vand.u32 %v87, 4294901760
    %1114 = vmatpush.msra.mxu0 %v1113
    %v1115 = vand.u32 %v86, 4294901760
    %1116 = vmatpush.msra.mxu0 %v1115
    %v1117 = vand.u32 %v85, 4294901760
    %1118 = vmatpush.msra.mxu0 %v1117
    %v1119 = vand.u32 %v84, 4294901760
    %1120 = vmatpush.msra.mxu0 %v1119
    %v1121 = vand.u32 %v632, 4294901760
    %1122 = vmatmul.f32.gmra.mxu0 %v1121
    %v1123 = vpop.f32.mrf.mxu0
    %v1124 = vadd.f32 %v1067, %v1123
    %v1125 = vand.u32 %v633, 4294901760
    %1126 = vmatmul.f32.gmra.mxu0 %v1125
    %v1127 = vpop.f32.mrf.mxu0
    %v1128 = vadd.f32 %v1071, %v1127
    %v1129 = vand.u32 %v634, 4294901760
    %1130 = vmatmul.f32.gmra.mxu0 %v1129
    %v1131 = vpop.f32.mrf.mxu0
    %v1132 = vadd.f32 %v1075, %v1131
    %v1133 = vand.u32 %v635, 4294901760
    %1134 = vmatmul.f32.gmra.mxu0 %v1133
    %v1135 = vpop.f32.mrf.mxu0
    %v1136 = vadd.f32 %v1079, %v1135
    %v1137 = vand.u32 %v636, 4294901760
    %1138 = vmatmul.f32.gmra.mxu0 %v1137
    %v1139 = vpop.f32.mrf.mxu0
    %v1140 = vadd.f32 %v1083, %v1139
    %v1141 = vand.u32 %v637, 4294901760
    %1142 = vmatmul.f32.gmra.mxu0 %v1141
    %v1143 = vpop.f32.mrf.mxu0
    %v1144 = vadd.f32 %v1087, %v1143
    %1145 = vdwg.mxu0
    %v1146 = vrcp.pop %v639
    %v1147 = vmul.f32 %v639, %v1146
    %v1148 = vsub.f32 1.0, %v1147
    %v1149 = vmul.f32 %v1146, %v1148
    %v1150 = vadd.f32 %v1146, %v1149
    %vm1151 = vweird.f32 %v639
    %vm1152 = vweird.f32 %v1146
    %vm1153 = vmor %vm1151, %vm1152
    %v1154 = vsel %vm1153, %v1146, %v1150
    %v1155 = vand.u32 2147483647, %v639
    %vm1156 = vcmp.eq.f32.partialorder %v1155, 8.507059e+37
    %v1157 = vand.u32 %v639, 2147483648
    %v1158 = vor.u32 1.1754944e-38, %v1157
    %v1159 = vsel %vm1156, %v1158, %v1154
    %v1160 = vrcp.pop %v641
    %v1161 = vmul.f32 %v641, %v1160
    %v1162 = vsub.f32 1.0, %v1161
    %v1163 = vmul.f32 %v1160, %v1162
    %v1164 = vadd.f32 %v1160, %v1163
    %vm1165 = vweird.f32 %v641
    %vm1166 = vweird.f32 %v1160
    %vm1167 = vmor %vm1165, %vm1166
    %v1168 = vsel %vm1167, %v1160, %v1164
    %v1169 = vand.u32 2147483647, %v641
    %vm1170 = vcmp.eq.f32.partialorder %v1169, 8.507059e+37
    %v1171 = vand.u32 %v641, 2147483648
    %v1172 = vor.u32 1.1754944e-38, %v1171
    %v1173 = vsel %vm1170, %v1172, %v1168
    %v1174 = vrcp.pop %v643
    %v1175 = vmul.f32 %v643, %v1174
    %v1176 = vsub.f32 1.0, %v1175
    %v1177 = vmul.f32 %v1174, %v1176
    %v1178 = vadd.f32 %v1174, %v1177
    %vm1179 = vweird.f32 %v643
    %vm1180 = vweird.f32 %v1174
    %vm1181 = vmor %vm1179, %vm1180
    %v1182 = vsel %vm1181, %v1174, %v1178
    %v1183 = vand.u32 2147483647, %v643
    %vm1184 = vcmp.eq.f32.partialorder %v1183, 8.507059e+37
    %v1185 = vand.u32 %v643, 2147483648
    %v1186 = vor.u32 1.1754944e-38, %v1185
    %v1187 = vsel %vm1184, %v1186, %v1182
    %v1188 = vrcp.pop %v645
    %v1189 = vmul.f32 %v645, %v1188
    %v1190 = vsub.f32 1.0, %v1189
    %v1191 = vmul.f32 %v1188, %v1190
    %v1192 = vadd.f32 %v1188, %v1191
    %vm1193 = vweird.f32 %v645
    %vm1194 = vweird.f32 %v1188
    %vm1195 = vmor %vm1193, %vm1194
    %v1196 = vsel %vm1195, %v1188, %v1192
    %v1197 = vand.u32 2147483647, %v645
    %vm1198 = vcmp.eq.f32.partialorder %v1197, 8.507059e+37
    %v1199 = vand.u32 %v645, 2147483648
    %v1200 = vor.u32 1.1754944e-38, %v1199
    %v1201 = vsel %vm1198, %v1200, %v1196
    %v1202 = vrcp.pop %v647
    %v1203 = vmul.f32 %v647, %v1202
    %v1204 = vsub.f32 1.0, %v1203
    %v1205 = vmul.f32 %v1202, %v1204
    %v1206 = vadd.f32 %v1202, %v1205
    %vm1207 = vweird.f32 %v647
    %vm1208 = vweird.f32 %v1202
    %vm1209 = vmor %vm1207, %vm1208
    %v1210 = vsel %vm1209, %v1202, %v1206
    %v1211 = vand.u32 2147483647, %v647
    %vm1212 = vcmp.eq.f32.partialorder %v1211, 8.507059e+37
    %v1213 = vand.u32 %v647, 2147483648
    %v1214 = vor.u32 1.1754944e-38, %v1213
    %v1215 = vsel %vm1212, %v1214, %v1210
    %v1216 = vrcp.pop %v649
    %v1217 = vmul.f32 %v649, %v1216
    %v1218 = vsub.f32 1.0, %v1217
    %v1219 = vmul.f32 %v1216, %v1218
    %v1220 = vadd.f32 %v1216, %v1219
    %vm1221 = vweird.f32 %v649
    %vm1222 = vweird.f32 %v1216
    %vm1223 = vmor %vm1221, %vm1222
    %v1224 = vsel %vm1223, %v1216, %v1220
    %v1225 = vand.u32 2147483647, %v649
    %vm1226 = vcmp.eq.f32.partialorder %v1225, 8.507059e+37
    %v1227 = vand.u32 %v649, 2147483648
    %v1228 = vor.u32 1.1754944e-38, %v1227
    %v1229 = vsel %vm1226, %v1228, %v1224
    %v1230 = vmul.f32 %v1124, %v1159
    %v1231 = vmul.f32 %v1128, %v1173
    %v1232 = vmul.f32 %v1132, %v1187
    %v1233 = vmul.f32 %v1136, %v1201
    %v1234 = vmul.f32 %v1140, %v1215
    %v1235 = vmul.f32 %v1144, %v1229
    %v1236 = vand.u32 %v83, 4294901760
    %1237 = vmatpush.msra.mxu0 %v1236
    %v1238 = vand.u32 %v82, 4294901760
    %1239 = vmatpush.msra.mxu0 %v1238
    %v1240 = vand.u32 %v81, 4294901760
    %1241 = vmatpush.msra.mxu0 %v1240
    %v1242 = vand.u32 %v80, 4294901760
    %1243 = vmatpush.msra.mxu0 %v1242
    %v1244 = vand.u32 %v79, 4294901760
    %1245 = vmatpush.msra.mxu0 %v1244
    %v1246 = vand.u32 %v78, 4294901760
    %1247 = vmatpush.msra.mxu0 %v1246
    %v1248 = vand.u32 %v77, 4294901760
    %1249 = vmatpush.msra.mxu0 %v1248
    %v1250 = vand.u32 %v76, 4294901760
    %1251 = vmatpush.msra.mxu0 %v1250
    %v1252 = vand.u32 %v75, 4294901760
    %1253 = vmatpush.msra.mxu0 %v1252
    %v1254 = vand.u32 %v74, 4294901760
    %1255 = vmatpush.msra.mxu0 %v1254
    %v1256 = vand.u32 %v73, 4294901760
    %1257 = vmatpush.msra.mxu0 %v1256
    %v1258 = vand.u32 %v72, 4294901760
    %1259 = vmatpush.msra.mxu0 %v1258
    %v1260 = vand.u32 %v71, 4294901760
    %1261 = vmatpush.msra.mxu0 %v1260
    %v1262 = vand.u32 %v70, 4294901760
    %1263 = vmatpush.msra.mxu0 %v1262
    %v1264 = vand.u32 %v69, 4294901760
    %1265 = vmatpush.msra.mxu0 %v1264
    %v1266 = vand.u32 %v68, 4294901760
    %1267 = vmatpush.msra.mxu0 %v1266
    %v1268 = vand.u32 %v1230, 4294901760
    %v1269 = vsub.f32 %v1230, %v1268
    %v1270 = vand.u32 %v1269, 4294901760
    %v1271 = vsub.f32 %v1269, %v1270
    %v1272 = vand.u32 %v1271, 4294901760
    %1273 = vmatmul.f32.gmra.mxu0 %v1272
    %v1274 = vpop.f32.mrf.mxu0
    %v1275 = vadd.f32 0.0, %v1274
    %v1276 = vand.u32 %v1231, 4294901760
    %v1277 = vsub.f32 %v1231, %v1276
    %v1278 = vand.u32 %v1277, 4294901760
    %v1279 = vsub.f32 %v1277, %v1278
    %v1280 = vand.u32 %v1279, 4294901760
    %1281 = vmatmul.f32.gmra.mxu0 %v1280
    %v1282 = vpop.f32.mrf.mxu0
    %v1283 = vadd.f32 0.0, %v1282
    %v1284 = vand.u32 %v1232, 4294901760
    %v1285 = vsub.f32 %v1232, %v1284
    %v1286 = vand.u32 %v1285, 4294901760
    %v1287 = vsub.f32 %v1285, %v1286
    %v1288 = vand.u32 %v1287, 4294901760
    %1289 = vmatmul.f32.gmra.mxu0 %v1288
    %v1290 = vpop.f32.mrf.mxu0
    %v1291 = vadd.f32 0.0, %v1290
    %v1292 = vand.u32 %v1233, 4294901760
    %v1293 = vsub.f32 %v1233, %v1292
    %v1294 = vand.u32 %v1293, 4294901760
    %v1295 = vsub.f32 %v1293, %v1294
    %v1296 = vand.u32 %v1295, 4294901760
    %1297 = vmatmul.f32.gmra.mxu0 %v1296
    %v1298 = vpop.f32.mrf.mxu0
    %v1299 = vadd.f32 0.0, %v1298
    %v1300 = vand.u32 %v1234, 4294901760
    %v1301 = vsub.f32 %v1234, %v1300
    %v1302 = vand.u32 %v1301, 4294901760
    %v1303 = vsub.f32 %v1301, %v1302
    %v1304 = vand.u32 %v1303, 4294901760
    %1305 = vmatmul.f32.gmra.mxu0 %v1304
    %v1306 = vpop.f32.mrf.mxu0
    %v1307 = vadd.f32 0.0, %v1306
    %v1308 = vand.u32 %v1235, 4294901760
    %v1309 = vsub.f32 %v1235, %v1308
    %v1310 = vand.u32 %v1309, 4294901760
    %v1311 = vsub.f32 %v1309, %v1310
    %v1312 = vand.u32 %v1311, 4294901760
    %1313 = vmatmul.f32.gmra.mxu0 %v1312
    %v1314 = vpop.f32.mrf.mxu0
    %v1315 = vadd.f32 0.0, %v1314
    %1316 = vdwg.mxu0
    %v1317 = vand.u32 %v83, 4294901760
    %v1318 = vsub.f32 %v83, %v1317
    %v1319 = vand.u32 %v1318, 4294901760
    %v1320 = vsub.f32 %v1318, %v1319
    %v1321 = vand.u32 %v1320, 4294901760
    %1322 = vmatpush.msra.mxu0 %v1321
    %v1323 = vand.u32 %v82, 4294901760
    %v1324 = vsub.f32 %v82, %v1323
    %v1325 = vand.u32 %v1324, 4294901760
    %v1326 = vsub.f32 %v1324, %v1325
    %v1327 = vand.u32 %v1326, 4294901760
    %1328 = vmatpush.msra.mxu0 %v1327
    %v1329 = vand.u32 %v81, 4294901760
    %v1330 = vsub.f32 %v81, %v1329
    %v1331 = vand.u32 %v1330, 4294901760
    %v1332 = vsub.f32 %v1330, %v1331
    %v1333 = vand.u32 %v1332, 4294901760
    %1334 = vmatpush.msra.mxu0 %v1333
    %v1335 = vand.u32 %v80, 4294901760
    %v1336 = vsub.f32 %v80, %v1335
    %v1337 = vand.u32 %v1336, 4294901760
    %v1338 = vsub.f32 %v1336, %v1337
    %v1339 = vand.u32 %v1338, 4294901760
    %1340 = vmatpush.msra.mxu0 %v1339
    %v1341 = vand.u32 %v79, 4294901760
    %v1342 = vsub.f32 %v79, %v1341
    %v1343 = vand.u32 %v1342, 4294901760
    %v1344 = vsub.f32 %v1342, %v1343
    %v1345 = vand.u32 %v1344, 4294901760
    %1346 = vmatpush.msra.mxu0 %v1345
    %v1347 = vand.u32 %v78, 4294901760
    %v1348 = vsub.f32 %v78, %v1347
    %v1349 = vand.u32 %v1348, 4294901760
    %v1350 = vsub.f32 %v1348, %v1349
    %v1351 = vand.u32 %v1350, 4294901760
    %1352 = vmatpush.msra.mxu0 %v1351
    %v1353 = vand.u32 %v77, 4294901760
    %v1354 = vsub.f32 %v77, %v1353
    %v1355 = vand.u32 %v1354, 4294901760
    %v1356 = vsub.f32 %v1354, %v1355
    %v1357 = vand.u32 %v1356, 4294901760
    %1358 = vmatpush.msra.mxu0 %v1357
    %v1359 = vand.u32 %v76, 4294901760
    %v1360 = vsub.f32 %v76, %v1359
    %v1361 = vand.u32 %v1360, 4294901760
    %v1362 = vsub.f32 %v1360, %v1361
    %v1363 = vand.u32 %v1362, 4294901760
    %1364 = vmatpush.msra.mxu0 %v1363
    %v1365 = vand.u32 %v75, 4294901760
    %v1366 = vsub.f32 %v75, %v1365
    %v1367 = vand.u32 %v1366, 4294901760
    %v1368 = vsub.f32 %v1366, %v1367
    %v1369 = vand.u32 %v1368, 4294901760
    %1370 = vmatpush.msra.mxu0 %v1369
    %v1371 = vand.u32 %v74, 4294901760
    %v1372 = vsub.f32 %v74, %v1371
    %v1373 = vand.u32 %v1372, 4294901760
    %v1374 = vsub.f32 %v1372, %v1373
    %v1375 = vand.u32 %v1374, 4294901760
    %1376 = vmatpush.msra.mxu0 %v1375
    %v1377 = vand.u32 %v73, 4294901760
    %v1378 = vsub.f32 %v73, %v1377
    %v1379 = vand.u32 %v1378, 4294901760
    %v1380 = vsub.f32 %v1378, %v1379
    %v1381 = vand.u32 %v1380, 4294901760
    %1382 = vmatpush.msra.mxu0 %v1381
    %v1383 = vand.u32 %v72, 4294901760
    %v1384 = vsub.f32 %v72, %v1383
    %v1385 = vand.u32 %v1384, 4294901760
    %v1386 = vsub.f32 %v1384, %v1385
    %v1387 = vand.u32 %v1386, 4294901760
    %1388 = vmatpush.msra.mxu0 %v1387
    %v1389 = vand.u32 %v71, 4294901760
    %v1390 = vsub.f32 %v71, %v1389
    %v1391 = vand.u32 %v1390, 4294901760
    %v1392 = vsub.f32 %v1390, %v1391
    %v1393 = vand.u32 %v1392, 4294901760
    %1394 = vmatpush.msra.mxu0 %v1393
    %v1395 = vand.u32 %v70, 4294901760
    %v1396 = vsub.f32 %v70, %v1395
    %v1397 = vand.u32 %v1396, 4294901760
    %v1398 = vsub.f32 %v1396, %v1397
    %v1399 = vand.u32 %v1398, 4294901760
    %1400 = vmatpush.msra.mxu0 %v1399
    %v1401 = vand.u32 %v69, 4294901760
    %v1402 = vsub.f32 %v69, %v1401
    %v1403 = vand.u32 %v1402, 4294901760
    %v1404 = vsub.f32 %v1402, %v1403
    %v1405 = vand.u32 %v1404, 4294901760
    %1406 = vmatpush.msra.mxu0 %v1405
    %v1407 = vand.u32 %v68, 4294901760
    %v1408 = vsub.f32 %v68, %v1407
    %v1409 = vand.u32 %v1408, 4294901760
    %v1410 = vsub.f32 %v1408, %v1409
    %v1411 = vand.u32 %v1410, 4294901760
    %1412 = vmatpush.msra.mxu0 %v1411
    %v1413 = vand.u32 %v1230, 4294901760
    %1414 = vmatmul.f32.gmra.mxu0 %v1413
    %v1415 = vpop.f32.mrf.mxu0
    %v1416 = vadd.f32 %v1275, %v1415
    %v1417 = vand.u32 %v1231, 4294901760
    %1418 = vmatmul.f32.gmra.mxu0 %v1417
    %v1419 = vpop.f32.mrf.mxu0
    %v1420 = vadd.f32 %v1283, %v1419
    %v1421 = vand.u32 %v1232, 4294901760
    %1422 = vmatmul.f32.gmra.mxu0 %v1421
    %v1423 = vpop.f32.mrf.mxu0
    %v1424 = vadd.f32 %v1291, %v1423
    %v1425 = vand.u32 %v1233, 4294901760
    %1426 = vmatmul.f32.gmra.mxu0 %v1425
    %v1427 = vpop.f32.mrf.mxu0
    %v1428 = vadd.f32 %v1299, %v1427
    %v1429 = vand.u32 %v1234, 4294901760
    %1430 = vmatmul.f32.gmra.mxu0 %v1429
    %v1431 = vpop.f32.mrf.mxu0
    %v1432 = vadd.f32 %v1307, %v1431
    %v1433 = vand.u32 %v1235, 4294901760
    %1434 = vmatmul.f32.gmra.mxu0 %v1433
    %v1435 = vpop.f32.mrf.mxu0
    %v1436 = vadd.f32 %v1315, %v1435
    %1437 = vdwg.mxu0
    %v1438 = vand.u32 %v83, 4294901760
    %v1439 = vsub.f32 %v83, %v1438
    %1440 = vmatpush.msra.mxu0 %v1439
    %v1441 = vand.u32 %v82, 4294901760
    %v1442 = vsub.f32 %v82, %v1441
    %1443 = vmatpush.msra.mxu0 %v1442
    %v1444 = vand.u32 %v81, 4294901760
    %v1445 = vsub.f32 %v81, %v1444
    %1446 = vmatpush.msra.mxu0 %v1445
    %v1447 = vand.u32 %v80, 4294901760
    %v1448 = vsub.f32 %v80, %v1447
    %1449 = vmatpush.msra.mxu0 %v1448
    %v1450 = vand.u32 %v79, 4294901760
    %v1451 = vsub.f32 %v79, %v1450
    %1452 = vmatpush.msra.mxu0 %v1451
    %v1453 = vand.u32 %v78, 4294901760
    %v1454 = vsub.f32 %v78, %v1453
    %1455 = vmatpush.msra.mxu0 %v1454
    %v1456 = vand.u32 %v77, 4294901760
    %v1457 = vsub.f32 %v77, %v1456
    %1458 = vmatpush.msra.mxu0 %v1457
    %v1459 = vand.u32 %v76, 4294901760
    %v1460 = vsub.f32 %v76, %v1459
    %1461 = vmatpush.msra.mxu0 %v1460
    %v1462 = vand.u32 %v75, 4294901760
    %v1463 = vsub.f32 %v75, %v1462
    %1464 = vmatpush.msra.mxu0 %v1463
    %v1465 = vand.u32 %v74, 4294901760
    %v1466 = vsub.f32 %v74, %v1465
    %1467 = vmatpush.msra.mxu0 %v1466
    %v1468 = vand.u32 %v73, 4294901760
    %v1469 = vsub.f32 %v73, %v1468
    %1470 = vmatpush.msra.mxu0 %v1469
    %v1471 = vand.u32 %v72, 4294901760
    %v1472 = vsub.f32 %v72, %v1471
    %1473 = vmatpush.msra.mxu0 %v1472
    %v1474 = vand.u32 %v71, 4294901760
    %v1475 = vsub.f32 %v71, %v1474
    %1476 = vmatpush.msra.mxu0 %v1475
    %v1477 = vand.u32 %v70, 4294901760
    %v1478 = vsub.f32 %v70, %v1477
    %1479 = vmatpush.msra.mxu0 %v1478
    %v1480 = vand.u32 %v69, 4294901760
    %v1481 = vsub.f32 %v69, %v1480
    %1482 = vmatpush.msra.mxu0 %v1481
    %v1483 = vand.u32 %v68, 4294901760
    %v1484 = vsub.f32 %v68, %v1483
    %1485 = vmatpush.msra.mxu0 %v1484
    %v1486 = vand.u32 %v1230, 4294901760
    %v1487 = vsub.f32 %v1230, %v1486
    %1488 = vmatmul.f32.gmra.mxu0 %v1487
    %v1489 = vpop.f32.mrf.mxu0
    %v1490 = vadd.f32 %v1416, %v1489
    %v1491 = vand.u32 %v1231, 4294901760
    %v1492 = vsub.f32 %v1231, %v1491
    %1493 = vmatmul.f32.gmra.mxu0 %v1492
    %v1494 = vpop.f32.mrf.mxu0
    %v1495 = vadd.f32 %v1420, %v1494
    %v1496 = vand.u32 %v1232, 4294901760
    %v1497 = vsub.f32 %v1232, %v1496
    %1498 = vmatmul.f32.gmra.mxu0 %v1497
    %v1499 = vpop.f32.mrf.mxu0
    %v1500 = vadd.f32 %v1424, %v1499
    %v1501 = vand.u32 %v1233, 4294901760
    %v1502 = vsub.f32 %v1233, %v1501
    %1503 = vmatmul.f32.gmra.mxu0 %v1502
    %v1504 = vpop.f32.mrf.mxu0
    %v1505 = vadd.f32 %v1428, %v1504
    %v1506 = vand.u32 %v1234, 4294901760
    %v1507 = vsub.f32 %v1234, %v1506
    %1508 = vmatmul.f32.gmra.mxu0 %v1507
    %v1509 = vpop.f32.mrf.mxu0
    %v1510 = vadd.f32 %v1432, %v1509
    %v1511 = vand.u32 %v1235, 4294901760
    %v1512 = vsub.f32 %v1235, %v1511
    %1513 = vmatmul.f32.gmra.mxu0 %v1512
    %v1514 = vpop.f32.mrf.mxu0
    %v1515 = vadd.f32 %v1436, %v1514
    %1516 = vdwg.mxu0
    %v1517 = vand.u32 %v83, 4294901760
    %1518 = vmatpush.msra.mxu0 %v1517
    %v1519 = vand.u32 %v82, 4294901760
    %1520 = vmatpush.msra.mxu0 %v1519
    %v1521 = vand.u32 %v81, 4294901760
    %1522 = vmatpush.msra.mxu0 %v1521
    %v1523 = vand.u32 %v80, 4294901760
    %1524 = vmatpush.msra.mxu0 %v1523
    %v1525 = vand.u32 %v79, 4294901760
    %1526 = vmatpush.msra.mxu0 %v1525
    %v1527 = vand.u32 %v78, 4294901760
    %1528 = vmatpush.msra.mxu0 %v1527
    %v1529 = vand.u32 %v77, 4294901760
    %1530 = vmatpush.msra.mxu0 %v1529
    %v1531 = vand.u32 %v76, 4294901760
    %1532 = vmatpush.msra.mxu0 %v1531
    %v1533 = vand.u32 %v75, 4294901760
    %1534 = vmatpush.msra.mxu0 %v1533
    %v1535 = vand.u32 %v74, 4294901760
    %1536 = vmatpush.msra.mxu0 %v1535
    %v1537 = vand.u32 %v73, 4294901760
    %1538 = vmatpush.msra.mxu0 %v1537
    %v1539 = vand.u32 %v72, 4294901760
    %1540 = vmatpush.msra.mxu0 %v1539
    %v1541 = vand.u32 %v71, 4294901760
    %1542 = vmatpush.msra.mxu0 %v1541
    %v1543 = vand.u32 %v70, 4294901760
    %1544 = vmatpush.msra.mxu0 %v1543
    %v1545 = vand.u32 %v69, 4294901760
    %1546 = vmatpush.msra.mxu0 %v1545
    %v1547 = vand.u32 %v68, 4294901760
    %1548 = vmatpush.msra.mxu0 %v1547
    %v1549 = vand.u32 %v1230, 4294901760
    %v1550 = vsub.f32 %v1230, %v1549
    %v1551 = vand.u32 %v1550, 4294901760
    %1552 = vmatmul.f32.gmra.mxu0 %v1551
    %v1553 = vpop.f32.mrf.mxu0
    %v1554 = vadd.f32 %v1490, %v1553
    %v1555 = vand.u32 %v1231, 4294901760
    %v1556 = vsub.f32 %v1231, %v1555
    %v1557 = vand.u32 %v1556, 4294901760
    %1558 = vmatmul.f32.gmra.mxu0 %v1557
    %v1559 = vpop.f32.mrf.mxu0
    %v1560 = vadd.f32 %v1495, %v1559
    %v1561 = vand.u32 %v1232, 4294901760
    %v1562 = vsub.f32 %v1232, %v1561
    %v1563 = vand.u32 %v1562, 4294901760
    %1564 = vmatmul.f32.gmra.mxu0 %v1563
    %v1565 = vpop.f32.mrf.mxu0
    %v1566 = vadd.f32 %v1500, %v1565
    %v1567 = vand.u32 %v1233, 4294901760
    %v1568 = vsub.f32 %v1233, %v1567
    %v1569 = vand.u32 %v1568, 4294901760
    %1570 = vmatmul.f32.gmra.mxu0 %v1569
    %v1571 = vpop.f32.mrf.mxu0
    %v1572 = vadd.f32 %v1505, %v1571
    %v1573 = vand.u32 %v1234, 4294901760
    %v1574 = vsub.f32 %v1234, %v1573
    %v1575 = vand.u32 %v1574, 4294901760
    %1576 = vmatmul.f32.gmra.mxu0 %v1575
    %v1577 = vpop.f32.mrf.mxu0
    %v1578 = vadd.f32 %v1510, %v1577
    %v1579 = vand.u32 %v1235, 4294901760
    %v1580 = vsub.f32 %v1235, %v1579
    %v1581 = vand.u32 %v1580, 4294901760
    %1582 = vmatmul.f32.gmra.mxu0 %v1581
    %v1583 = vpop.f32.mrf.mxu0
    %v1584 = vadd.f32 %v1515, %v1583
    %1585 = vdwg.mxu0
    %v1586 = vand.u32 %v83, 4294901760
    %v1587 = vsub.f32 %v83, %v1586
    %v1588 = vand.u32 %v1587, 4294901760
    %1589 = vmatpush.msra.mxu0 %v1588
    %v1590 = vand.u32 %v82, 4294901760
    %v1591 = vsub.f32 %v82, %v1590
    %v1592 = vand.u32 %v1591, 4294901760
    %1593 = vmatpush.msra.mxu0 %v1592
    %v1594 = vand.u32 %v81, 4294901760
    %v1595 = vsub.f32 %v81, %v1594
    %v1596 = vand.u32 %v1595, 4294901760
    %1597 = vmatpush.msra.mxu0 %v1596
    %v1598 = vand.u32 %v80, 4294901760
    %v1599 = vsub.f32 %v80, %v1598
    %v1600 = vand.u32 %v1599, 4294901760
    %1601 = vmatpush.msra.mxu0 %v1600
    %v1602 = vand.u32 %v79, 4294901760
    %v1603 = vsub.f32 %v79, %v1602
    %v1604 = vand.u32 %v1603, 4294901760
    %1605 = vmatpush.msra.mxu0 %v1604
    %v1606 = vand.u32 %v78, 4294901760
    %v1607 = vsub.f32 %v78, %v1606
    %v1608 = vand.u32 %v1607, 4294901760
    %1609 = vmatpush.msra.mxu0 %v1608
    %v1610 = vand.u32 %v77, 4294901760
    %v1611 = vsub.f32 %v77, %v1610
    %v1612 = vand.u32 %v1611, 4294901760
    %1613 = vmatpush.msra.mxu0 %v1612
    %v1614 = vand.u32 %v76, 4294901760
    %v1615 = vsub.f32 %v76, %v1614
    %v1616 = vand.u32 %v1615, 4294901760
    %1617 = vmatpush.msra.mxu0 %v1616
    %v1618 = vand.u32 %v75, 4294901760
    %v1619 = vsub.f32 %v75, %v1618
    %v1620 = vand.u32 %v1619, 4294901760
    %1621 = vmatpush.msra.mxu0 %v1620
    %v1622 = vand.u32 %v74, 4294901760
    %v1623 = vsub.f32 %v74, %v1622
    %v1624 = vand.u32 %v1623, 4294901760
    %1625 = vmatpush.msra.mxu0 %v1624
    %v1626 = vand.u32 %v73, 4294901760
    %v1627 = vsub.f32 %v73, %v1626
    %v1628 = vand.u32 %v1627, 4294901760
    %1629 = vmatpush.msra.mxu0 %v1628
    %v1630 = vand.u32 %v72, 4294901760
    %v1631 = vsub.f32 %v72, %v1630
    %v1632 = vand.u32 %v1631, 4294901760
    %1633 = vmatpush.msra.mxu0 %v1632
    %v1634 = vand.u32 %v71, 4294901760
    %v1635 = vsub.f32 %v71, %v1634
    %v1636 = vand.u32 %v1635, 4294901760
    %1637 = vmatpush.msra.mxu0 %v1636
    %v1638 = vand.u32 %v70, 4294901760
    %v1639 = vsub.f32 %v70, %v1638
    %v1640 = vand.u32 %v1639, 4294901760
    %1641 = vmatpush.msra.mxu0 %v1640
    %v1642 = vand.u32 %v69, 4294901760
    %v1643 = vsub.f32 %v69, %v1642
    %v1644 = vand.u32 %v1643, 4294901760
    %1645 = vmatpush.msra.mxu0 %v1644
    %v1646 = vand.u32 %v68, 4294901760
    %v1647 = vsub.f32 %v68, %v1646
    %v1648 = vand.u32 %v1647, 4294901760
    %1649 = vmatpush.msra.mxu0 %v1648
    %v1650 = vand.u32 %v1230, 4294901760
    %1651 = vmatmul.f32.gmra.mxu0 %v1650
    %v1652 = vpop.f32.mrf.mxu0
    %v1653 = vadd.f32 %v1554, %v1652
    %v1654 = vand.u32 %v1231, 4294901760
    %1655 = vmatmul.f32.gmra.mxu0 %v1654
    %v1656 = vpop.f32.mrf.mxu0
    %v1657 = vadd.f32 %v1560, %v1656
    %v1658 = vand.u32 %v1232, 4294901760
    %1659 = vmatmul.f32.gmra.mxu0 %v1658
    %v1660 = vpop.f32.mrf.mxu0
    %v1661 = vadd.f32 %v1566, %v1660
    %v1662 = vand.u32 %v1233, 4294901760
    %1663 = vmatmul.f32.gmra.mxu0 %v1662
    %v1664 = vpop.f32.mrf.mxu0
    %v1665 = vadd.f32 %v1572, %v1664
    %v1666 = vand.u32 %v1234, 4294901760
    %1667 = vmatmul.f32.gmra.mxu0 %v1666
    %v1668 = vpop.f32.mrf.mxu0
    %v1669 = vadd.f32 %v1578, %v1668
    %v1670 = vand.u32 %v1235, 4294901760
    %1671 = vmatmul.f32.gmra.mxu0 %v1670
    %v1672 = vpop.f32.mrf.mxu0
    %v1673 = vadd.f32 %v1584, %v1672
    %1674 = vdwg.mxu0
    %v1675 = vand.u32 %v83, 4294901760
    %1676 = vmatpush.msra.mxu0 %v1675
    %v1677 = vand.u32 %v82, 4294901760
    %1678 = vmatpush.msra.mxu0 %v1677
    %v1679 = vand.u32 %v81, 4294901760
    %1680 = vmatpush.msra.mxu0 %v1679
    %v1681 = vand.u32 %v80, 4294901760
    %1682 = vmatpush.msra.mxu0 %v1681
    %v1683 = vand.u32 %v79, 4294901760
    %1684 = vmatpush.msra.mxu0 %v1683
    %v1685 = vand.u32 %v78, 4294901760
    %1686 = vmatpush.msra.mxu0 %v1685
    %v1687 = vand.u32 %v77, 4294901760
    %1688 = vmatpush.msra.mxu0 %v1687
    %v1689 = vand.u32 %v76, 4294901760
    %1690 = vmatpush.msra.mxu0 %v1689
    %v1691 = vand.u32 %v75, 4294901760
    %1692 = vmatpush.msra.mxu0 %v1691
    %v1693 = vand.u32 %v74, 4294901760
    %1694 = vmatpush.msra.mxu0 %v1693
    %v1695 = vand.u32 %v73, 4294901760
    %1696 = vmatpush.msra.mxu0 %v1695
    %v1697 = vand.u32 %v72, 4294901760
    %1698 = vmatpush.msra.mxu0 %v1697
    %v1699 = vand.u32 %v71, 4294901760
    %1700 = vmatpush.msra.mxu0 %v1699
    %v1701 = vand.u32 %v70, 4294901760
    %1702 = vmatpush.msra.mxu0 %v1701
    %v1703 = vand.u32 %v69, 4294901760
    %1704 = vmatpush.msra.mxu0 %v1703
    %v1705 = vand.u32 %v68, 4294901760
    %1706 = vmatpush.msra.mxu0 %v1705
    %v1707 = vand.u32 %v1230, 4294901760
    %1708 = vmatmul.f32.gmra.mxu0 %v1707
    %v1709 = vpop.f32.mrf.mxu0
    %v1710 = vadd.f32 %v1653, %v1709
    %v1711 = vand.u32 %v1231, 4294901760
    %1712 = vmatmul.f32.gmra.mxu0 %v1711
    %v1713 = vpop.f32.mrf.mxu0
    %v1714 = vadd.f32 %v1657, %v1713
    %v1715 = vand.u32 %v1232, 4294901760
    %1716 = vmatmul.f32.gmra.mxu0 %v1715
    %v1717 = vpop.f32.mrf.mxu0
    %v1718 = vadd.f32 %v1661, %v1717
    %v1719 = vand.u32 %v1233, 4294901760
    %1720 = vmatmul.f32.gmra.mxu0 %v1719
    %v1721 = vpop.f32.mrf.mxu0
    %v1722 = vadd.f32 %v1665, %v1721
    %v1723 = vand.u32 %v1234, 4294901760
    %1724 = vmatmul.f32.gmra.mxu0 %v1723
    %v1725 = vpop.f32.mrf.mxu0
    %v1726 = vadd.f32 %v1669, %v1725
    %v1727 = vand.u32 %v1235, 4294901760
    %1728 = vmatmul.f32.gmra.mxu0 %v1727
    %v1729 = vpop.f32.mrf.mxu0
    %v1730 = vadd.f32 %v1673, %v1729
    %1731 = vdwg.mxu0
    %1732 = vmax.xlane.f32.xlu0 %v1710
    %v1733 = vpop.xlane.xlu0 %1732
    %1734 = vmax.xlane.f32.xlu0 %v1714
    %v1735 = vpop.xlane.xlu0 %1734
    %1736 = vmax.xlane.f32.xlu0 %v1718
    %v1737 = vpop.xlane.xlu0 %1736
    %1738 = vmax.xlane.f32.xlu0 %v1722
    %v1739 = vpop.xlane.xlu0 %1738
    %1740 = vmax.xlane.f32.xlu0 %v1726
    %v1741 = vpop.xlane.xlu0 %1740
    %1742 = vmax.xlane.f32.xlu0 %v1730
    %v1743 = vpop.xlane.xlu0 %1742
    %v1744 = vsub.f32 %v1710, %v1733
    %v1745 = vsub.f32 %v1714, %v1735
    %v1746 = vsub.f32 %v1718, %v1737
    %v1747 = vsub.f32 %v1722, %v1739
    %v1748 = vsub.f32 %v1726, %v1741
    %v1749 = vsub.f32 %v1730, %v1743
    %v1750 = vmul.f32 %v1744, 1.442695
    %v1751 = vpow.pop %v1750
    %v1752 = vmul.f32 %v1745, 1.442695
    %v1753 = vpow.pop %v1752
    %v1754 = vmul.f32 %v1746, 1.442695
    %v1755 = vpow.pop %v1754
    %v1756 = vmul.f32 %v1747, 1.442695
    %v1757 = vpow.pop %v1756
    %v1758 = vmul.f32 %v1748, 1.442695
    %v1759 = vpow.pop %v1758
    %v1760 = vmul.f32 %v1749, 1.442695
    %v1761 = vpow.pop %v1760
    %v1762 = vmul.f32 %v1751, %v105
    %v1763 = vmul.f32 %v1753, %v105
    %v1764 = vmul.f32 %v1755, %v105
    %v1765 = vmul.f32 %v1757, %v105
    %v1766 = vmul.f32 %v1759, %v105
    %v1767 = vmul.f32 %v1761, %v105
    %1768 = vadd.xlane.f32.xlu0 %v1762
    %v1769 = vpop.xlane.xlu0 %1768
    %1770 = vadd.xlane.f32.xlu0 %v1763
    %v1771 = vpop.xlane.xlu0 %1770
    %1772 = vadd.xlane.f32.xlu0 %v1764
    %v1773 = vpop.xlane.xlu0 %1772
    %1774 = vadd.xlane.f32.xlu0 %v1765
    %v1775 = vpop.xlane.xlu0 %1774
    %1776 = vadd.xlane.f32.xlu0 %v1766
    %v1777 = vpop.xlane.xlu0 %1776
    %1778 = vadd.xlane.f32.xlu0 %v1767
    %v1779 = vpop.xlane.xlu0 %1778
    %v1780 = vand.u32 %v99, 4294901760
    %1781 = vmatpush.msra.mxu0 %v1780
    %v1782 = vand.u32 %v98, 4294901760
    %1783 = vmatpush.msra.mxu0 %v1782
    %v1784 = vand.u32 %v97, 4294901760
    %1785 = vmatpush.msra.mxu0 %v1784
    %v1786 = vand.u32 %v96, 4294901760
    %1787 = vmatpush.msra.mxu0 %v1786
    %v1788 = vand.u32 %v95, 4294901760
    %1789 = vmatpush.msra.mxu0 %v1788
    %v1790 = vand.u32 %v94, 4294901760
    %1791 = vmatpush.msra.mxu0 %v1790
    %v1792 = vand.u32 %v93, 4294901760
    %1793 = vmatpush.msra.mxu0 %v1792
    %v1794 = vand.u32 %v92, 4294901760
    %1795 = vmatpush.msra.mxu0 %v1794
    %v1796 = vand.u32 %v91, 4294901760
    %1797 = vmatpush.msra.mxu0 %v1796
    %v1798 = vand.u32 %v90, 4294901760
    %1799 = vmatpush.msra.mxu0 %v1798
    %v1800 = vand.u32 %v89, 4294901760
    %1801 = vmatpush.msra.mxu0 %v1800
    %v1802 = vand.u32 %v88, 4294901760
    %1803 = vmatpush.msra.mxu0 %v1802
    %v1804 = vand.u32 %v87, 4294901760
    %1805 = vmatpush.msra.mxu0 %v1804
    %v1806 = vand.u32 %v86, 4294901760
    %1807 = vmatpush.msra.mxu0 %v1806
    %v1808 = vand.u32 %v85, 4294901760
    %1809 = vmatpush.msra.mxu0 %v1808
    %v1810 = vand.u32 %v84, 4294901760
    %1811 = vmatpush.msra.mxu0 %v1810
    %v1812 = vand.u32 %v1762, 4294901760
    %v1813 = vsub.f32 %v1762, %v1812
    %v1814 = vand.u32 %v1813, 4294901760
    %v1815 = vsub.f32 %v1813, %v1814
    %v1816 = vand.u32 %v1815, 4294901760
    %1817 = vmatmul.f32.gmra.mxu0 %v1816
    %v1818 = vpop.f32.mrf.mxu0
    %v1819 = vadd.f32 0.0, %v1818
    %v1820 = vand.u32 %v1763, 4294901760
    %v1821 = vsub.f32 %v1763, %v1820
    %v1822 = vand.u32 %v1821, 4294901760
    %v1823 = vsub.f32 %v1821, %v1822
    %v1824 = vand.u32 %v1823, 4294901760
    %1825 = vmatmul.f32.gmra.mxu0 %v1824
    %v1826 = vpop.f32.mrf.mxu0
    %v1827 = vadd.f32 0.0, %v1826
    %v1828 = vand.u32 %v1764, 4294901760
    %v1829 = vsub.f32 %v1764, %v1828
    %v1830 = vand.u32 %v1829, 4294901760
    %v1831 = vsub.f32 %v1829, %v1830
    %v1832 = vand.u32 %v1831, 4294901760
    %1833 = vmatmul.f32.gmra.mxu0 %v1832
    %v1834 = vpop.f32.mrf.mxu0
    %v1835 = vadd.f32 0.0, %v1834
    %v1836 = vand.u32 %v1765, 4294901760
    %v1837 = vsub.f32 %v1765, %v1836
    %v1838 = vand.u32 %v1837, 4294901760
    %v1839 = vsub.f32 %v1837, %v1838
    %v1840 = vand.u32 %v1839, 4294901760
    %1841 = vmatmul.f32.gmra.mxu0 %v1840
    %v1842 = vpop.f32.mrf.mxu0
    %v1843 = vadd.f32 0.0, %v1842
    %v1844 = vand.u32 %v1766, 4294901760
    %v1845 = vsub.f32 %v1766, %v1844
    %v1846 = vand.u32 %v1845, 4294901760
    %v1847 = vsub.f32 %v1845, %v1846
    %v1848 = vand.u32 %v1847, 4294901760
    %1849 = vmatmul.f32.gmra.mxu0 %v1848
    %v1850 = vpop.f32.mrf.mxu0
    %v1851 = vadd.f32 0.0, %v1850
    %v1852 = vand.u32 %v1767, 4294901760
    %v1853 = vsub.f32 %v1767, %v1852
    %v1854 = vand.u32 %v1853, 4294901760
    %v1855 = vsub.f32 %v1853, %v1854
    %v1856 = vand.u32 %v1855, 4294901760
    %1857 = vmatmul.f32.gmra.mxu0 %v1856
    %v1858 = vpop.f32.mrf.mxu0
    %v1859 = vadd.f32 0.0, %v1858
    %1860 = vdwg.mxu0
    %v1861 = vand.u32 %v99, 4294901760
    %v1862 = vsub.f32 %v99, %v1861
    %v1863 = vand.u32 %v1862, 4294901760
    %v1864 = vsub.f32 %v1862, %v1863
    %v1865 = vand.u32 %v1864, 4294901760
    %1866 = vmatpush.msra.mxu0 %v1865
    %v1867 = vand.u32 %v98, 4294901760
    %v1868 = vsub.f32 %v98, %v1867
    %v1869 = vand.u32 %v1868, 4294901760
    %v1870 = vsub.f32 %v1868, %v1869
    %v1871 = vand.u32 %v1870, 4294901760
    %1872 = vmatpush.msra.mxu0 %v1871
    %v1873 = vand.u32 %v97, 4294901760
    %v1874 = vsub.f32 %v97, %v1873
    %v1875 = vand.u32 %v1874, 4294901760
    %v1876 = vsub.f32 %v1874, %v1875
    %v1877 = vand.u32 %v1876, 4294901760
    %1878 = vmatpush.msra.mxu0 %v1877
    %v1879 = vand.u32 %v96, 4294901760
    %v1880 = vsub.f32 %v96, %v1879
    %v1881 = vand.u32 %v1880, 4294901760
    %v1882 = vsub.f32 %v1880, %v1881
    %v1883 = vand.u32 %v1882, 4294901760
    %1884 = vmatpush.msra.mxu0 %v1883
    %v1885 = vand.u32 %v95, 4294901760
    %v1886 = vsub.f32 %v95, %v1885
    %v1887 = vand.u32 %v1886, 4294901760
    %v1888 = vsub.f32 %v1886, %v1887
    %v1889 = vand.u32 %v1888, 4294901760
    %1890 = vmatpush.msra.mxu0 %v1889
    %v1891 = vand.u32 %v94, 4294901760
    %v1892 = vsub.f32 %v94, %v1891
    %v1893 = vand.u32 %v1892, 4294901760
    %v1894 = vsub.f32 %v1892, %v1893
    %v1895 = vand.u32 %v1894, 4294901760
    %1896 = vmatpush.msra.mxu0 %v1895
    %v1897 = vand.u32 %v93, 4294901760
    %v1898 = vsub.f32 %v93, %v1897
    %v1899 = vand.u32 %v1898, 4294901760
    %v1900 = vsub.f32 %v1898, %v1899
    %v1901 = vand.u32 %v1900, 4294901760
    %1902 = vmatpush.msra.mxu0 %v1901
    %v1903 = vand.u32 %v92, 4294901760
    %v1904 = vsub.f32 %v92, %v1903
    %v1905 = vand.u32 %v1904, 4294901760
    %v1906 = vsub.f32 %v1904, %v1905
    %v1907 = vand.u32 %v1906, 4294901760
    %1908 = vmatpush.msra.mxu0 %v1907
    %v1909 = vand.u32 %v91, 4294901760
    %v1910 = vsub.f32 %v91, %v1909
    %v1911 = vand.u32 %v1910, 4294901760
    %v1912 = vsub.f32 %v1910, %v1911
    %v1913 = vand.u32 %v1912, 4294901760
    %1914 = vmatpush.msra.mxu0 %v1913
    %v1915 = vand.u32 %v90, 4294901760
    %v1916 = vsub.f32 %v90, %v1915
    %v1917 = vand.u32 %v1916, 4294901760
    %v1918 = vsub.f32 %v1916, %v1917
    %v1919 = vand.u32 %v1918, 4294901760
    %1920 = vmatpush.msra.mxu0 %v1919
    %v1921 = vand.u32 %v89, 4294901760
    %v1922 = vsub.f32 %v89, %v1921
    %v1923 = vand.u32 %v1922, 4294901760
    %v1924 = vsub.f32 %v1922, %v1923
    %v1925 = vand.u32 %v1924, 4294901760
    %1926 = vmatpush.msra.mxu0 %v1925
    %v1927 = vand.u32 %v88, 4294901760
    %v1928 = vsub.f32 %v88, %v1927
    %v1929 = vand.u32 %v1928, 4294901760
    %v1930 = vsub.f32 %v1928, %v1929
    %v1931 = vand.u32 %v1930, 4294901760
    %1932 = vmatpush.msra.mxu0 %v1931
    %v1933 = vand.u32 %v87, 4294901760
    %v1934 = vsub.f32 %v87, %v1933
    %v1935 = vand.u32 %v1934, 4294901760
    %v1936 = vsub.f32 %v1934, %v1935
    %v1937 = vand.u32 %v1936, 4294901760
    %1938 = vmatpush.msra.mxu0 %v1937
    %v1939 = vand.u32 %v86, 4294901760
    %v1940 = vsub.f32 %v86, %v1939
    %v1941 = vand.u32 %v1940, 4294901760
    %v1942 = vsub.f32 %v1940, %v1941
    %v1943 = vand.u32 %v1942, 4294901760
    %1944 = vmatpush.msra.mxu0 %v1943
    %v1945 = vand.u32 %v85, 4294901760
    %v1946 = vsub.f32 %v85, %v1945
    %v1947 = vand.u32 %v1946, 4294901760
    %v1948 = vsub.f32 %v1946, %v1947
    %v1949 = vand.u32 %v1948, 4294901760
    %1950 = vmatpush.msra.mxu0 %v1949
    %v1951 = vand.u32 %v84, 4294901760
    %v1952 = vsub.f32 %v84, %v1951
    %v1953 = vand.u32 %v1952, 4294901760
    %v1954 = vsub.f32 %v1952, %v1953
    %v1955 = vand.u32 %v1954, 4294901760
    %1956 = vmatpush.msra.mxu0 %v1955
    %v1957 = vand.u32 %v1762, 4294901760
    %1958 = vmatmul.f32.gmra.mxu0 %v1957
    %v1959 = vpop.f32.mrf.mxu0
    %v1960 = vadd.f32 %v1819, %v1959
    %v1961 = vand.u32 %v1763, 4294901760
    %1962 = vmatmul.f32.gmra.mxu0 %v1961
    %v1963 = vpop.f32.mrf.mxu0
    %v1964 = vadd.f32 %v1827, %v1963
    %v1965 = vand.u32 %v1764, 4294901760
    %1966 = vmatmul.f32.gmra.mxu0 %v1965
    %v1967 = vpop.f32.mrf.mxu0
    %v1968 = vadd.f32 %v1835, %v1967
    %v1969 = vand.u32 %v1765, 4294901760
    %1970 = vmatmul.f32.gmra.mxu0 %v1969
    %v1971 = vpop.f32.mrf.mxu0
    %v1972 = vadd.f32 %v1843, %v1971
    %v1973 = vand.u32 %v1766, 4294901760
    %1974 = vmatmul.f32.gmra.mxu0 %v1973
    %v1975 = vpop.f32.mrf.mxu0
    %v1976 = vadd.f32 %v1851, %v1975
    %v1977 = vand.u32 %v1767, 4294901760
    %1978 = vmatmul.f32.gmra.mxu0 %v1977
    %v1979 = vpop.f32.mrf.mxu0
    %v1980 = vadd.f32 %v1859, %v1979
    %1981 = vdwg.mxu0
    %v1982 = vand.u32 %v99, 4294901760
    %v1983 = vsub.f32 %v99, %v1982
    %1984 = vmatpush.msra.mxu0 %v1983
    %v1985 = vand.u32 %v98, 4294901760
    %v1986 = vsub.f32 %v98, %v1985
    %1987 = vmatpush.msra.mxu0 %v1986
    %v1988 = vand.u32 %v97, 4294901760
    %v1989 = vsub.f32 %v97, %v1988
    %1990 = vmatpush.msra.mxu0 %v1989
    %v1991 = vand.u32 %v96, 4294901760
    %v1992 = vsub.f32 %v96, %v1991
    %1993 = vmatpush.msra.mxu0 %v1992
    %v1994 = vand.u32 %v95, 4294901760
    %v1995 = vsub.f32 %v95, %v1994
    %1996 = vmatpush.msra.mxu0 %v1995
    %v1997 = vand.u32 %v94, 4294901760
    %v1998 = vsub.f32 %v94, %v1997
    %1999 = vmatpush.msra.mxu0 %v1998
    %v2000 = vand.u32 %v93, 4294901760
    %v2001 = vsub.f32 %v93, %v2000
    %2002 = vmatpush.msra.mxu0 %v2001
    %v2003 = vand.u32 %v92, 4294901760
    %v2004 = vsub.f32 %v92, %v2003
    %2005 = vmatpush.msra.mxu0 %v2004
    %v2006 = vand.u32 %v91, 4294901760
    %v2007 = vsub.f32 %v91, %v2006
    %2008 = vmatpush.msra.mxu0 %v2007
    %v2009 = vand.u32 %v90, 4294901760
    %v2010 = vsub.f32 %v90, %v2009
    %2011 = vmatpush.msra.mxu0 %v2010
    %v2012 = vand.u32 %v89, 4294901760
    %v2013 = vsub.f32 %v89, %v2012
    %2014 = vmatpush.msra.mxu0 %v2013
    %v2015 = vand.u32 %v88, 4294901760
    %v2016 = vsub.f32 %v88, %v2015
    %2017 = vmatpush.msra.mxu0 %v2016
    %v2018 = vand.u32 %v87, 4294901760
    %v2019 = vsub.f32 %v87, %v2018
    %2020 = vmatpush.msra.mxu0 %v2019
    %v2021 = vand.u32 %v86, 4294901760
    %v2022 = vsub.f32 %v86, %v2021
    %2023 = vmatpush.msra.mxu0 %v2022
    %v2024 = vand.u32 %v85, 4294901760
    %v2025 = vsub.f32 %v85, %v2024
    %2026 = vmatpush.msra.mxu0 %v2025
    %v2027 = vand.u32 %v84, 4294901760
    %v2028 = vsub.f32 %v84, %v2027
    %2029 = vmatpush.msra.mxu0 %v2028
    %v2030 = vand.u32 %v1762, 4294901760
    %v2031 = vsub.f32 %v1762, %v2030
    %2032 = vmatmul.f32.gmra.mxu0 %v2031
    %v2033 = vpop.f32.mrf.mxu0
    %v2034 = vadd.f32 %v1960, %v2033
    %v2035 = vand.u32 %v1763, 4294901760
    %v2036 = vsub.f32 %v1763, %v2035
    %2037 = vmatmul.f32.gmra.mxu0 %v2036
    %v2038 = vpop.f32.mrf.mxu0
    %v2039 = vadd.f32 %v1964, %v2038
    %v2040 = vand.u32 %v1764, 4294901760
    %v2041 = vsub.f32 %v1764, %v2040
    %2042 = vmatmul.f32.gmra.mxu0 %v2041
    %v2043 = vpop.f32.mrf.mxu0
    %v2044 = vadd.f32 %v1968, %v2043
    %v2045 = vand.u32 %v1765, 4294901760
    %v2046 = vsub.f32 %v1765, %v2045
    %2047 = vmatmul.f32.gmra.mxu0 %v2046
    %v2048 = vpop.f32.mrf.mxu0
    %v2049 = vadd.f32 %v1972, %v2048
    %v2050 = vand.u32 %v1766, 4294901760
    %v2051 = vsub.f32 %v1766, %v2050
    %2052 = vmatmul.f32.gmra.mxu0 %v2051
    %v2053 = vpop.f32.mrf.mxu0
    %v2054 = vadd.f32 %v1976, %v2053
    %v2055 = vand.u32 %v1767, 4294901760
    %v2056 = vsub.f32 %v1767, %v2055
    %2057 = vmatmul.f32.gmra.mxu0 %v2056
    %v2058 = vpop.f32.mrf.mxu0
    %v2059 = vadd.f32 %v1980, %v2058
    %2060 = vdwg.mxu0
    %v2061 = vand.u32 %v99, 4294901760
    %2062 = vmatpush.msra.mxu0 %v2061
    %v2063 = vand.u32 %v98, 4294901760
    %2064 = vmatpush.msra.mxu0 %v2063
    %v2065 = vand.u32 %v97, 4294901760
    %2066 = vmatpush.msra.mxu0 %v2065
    %v2067 = vand.u32 %v96, 4294901760
    %2068 = vmatpush.msra.mxu0 %v2067
    %v2069 = vand.u32 %v95, 4294901760
    %2070 = vmatpush.msra.mxu0 %v2069
    %v2071 = vand.u32 %v94, 4294901760
    %2072 = vmatpush.msra.mxu0 %v2071
    %v2073 = vand.u32 %v93, 4294901760
    %2074 = vmatpush.msra.mxu0 %v2073
    %v2075 = vand.u32 %v92, 4294901760
    %2076 = vmatpush.msra.mxu0 %v2075
    %v2077 = vand.u32 %v91, 4294901760
    %2078 = vmatpush.msra.mxu0 %v2077
    %v2079 = vand.u32 %v90, 4294901760
    %2080 = vmatpush.msra.mxu0 %v2079
    %v2081 = vand.u32 %v89, 4294901760
    %2082 = vmatpush.msra.mxu0 %v2081
    %v2083 = vand.u32 %v88, 4294901760
    %2084 = vmatpush.msra.mxu0 %v2083
    %v2085 = vand.u32 %v87, 4294901760
    %2086 = vmatpush.msra.mxu0 %v2085
    %v2087 = vand.u32 %v86, 4294901760
    %2088 = vmatpush.msra.mxu0 %v2087
    %v2089 = vand.u32 %v85, 4294901760
    %2090 = vmatpush.msra.mxu0 %v2089
    %v2091 = vand.u32 %v84, 4294901760
    %2092 = vmatpush.msra.mxu0 %v2091
    %v2093 = vand.u32 %v1762, 4294901760
    %v2094 = vsub.f32 %v1762, %v2093
    %v2095 = vand.u32 %v2094, 4294901760
    %2096 = vmatmul.f32.gmra.mxu0 %v2095
    %v2097 = vpop.f32.mrf.mxu0
    %v2098 = vadd.f32 %v2034, %v2097
    %v2099 = vand.u32 %v1763, 4294901760
    %v2100 = vsub.f32 %v1763, %v2099
    %v2101 = vand.u32 %v2100, 4294901760
    %2102 = vmatmul.f32.gmra.mxu0 %v2101
    %v2103 = vpop.f32.mrf.mxu0
    %v2104 = vadd.f32 %v2039, %v2103
    %v2105 = vand.u32 %v1764, 4294901760
    %v2106 = vsub.f32 %v1764, %v2105
    %v2107 = vand.u32 %v2106, 4294901760
    %2108 = vmatmul.f32.gmra.mxu0 %v2107
    %v2109 = vpop.f32.mrf.mxu0
    %v2110 = vadd.f32 %v2044, %v2109
    %v2111 = vand.u32 %v1765, 4294901760
    %v2112 = vsub.f32 %v1765, %v2111
    %v2113 = vand.u32 %v2112, 4294901760
    %2114 = vmatmul.f32.gmra.mxu0 %v2113
    %v2115 = vpop.f32.mrf.mxu0
    %v2116 = vadd.f32 %v2049, %v2115
    %v2117 = vand.u32 %v1766, 4294901760
    %v2118 = vsub.f32 %v1766, %v2117
    %v2119 = vand.u32 %v2118, 4294901760
    %2120 = vmatmul.f32.gmra.mxu0 %v2119
    %v2121 = vpop.f32.mrf.mxu0
    %v2122 = vadd.f32 %v2054, %v2121
    %v2123 = vand.u32 %v1767, 4294901760
    %v2124 = vsub.f32 %v1767, %v2123
    %v2125 = vand.u32 %v2124, 4294901760
    %2126 = vmatmul.f32.gmra.mxu0 %v2125
    %v2127 = vpop.f32.mrf.mxu0
    %v2128 = vadd.f32 %v2059, %v2127
    %2129 = vdwg.mxu0
    %v2130 = vand.u32 %v99, 4294901760
    %v2131 = vsub.f32 %v99, %v2130
    %v2132 = vand.u32 %v2131, 4294901760
    %2133 = vmatpush.msra.mxu0 %v2132
    %v2134 = vand.u32 %v98, 4294901760
    %v2135 = vsub.f32 %v98, %v2134
    %v2136 = vand.u32 %v2135, 4294901760
    %2137 = vmatpush.msra.mxu0 %v2136
    %v2138 = vand.u32 %v97, 4294901760
    %v2139 = vsub.f32 %v97, %v2138
    %v2140 = vand.u32 %v2139, 4294901760
    %2141 = vmatpush.msra.mxu0 %v2140
    %v2142 = vand.u32 %v96, 4294901760
    %v2143 = vsub.f32 %v96, %v2142
    %v2144 = vand.u32 %v2143, 4294901760
    %2145 = vmatpush.msra.mxu0 %v2144
    %v2146 = vand.u32 %v95, 4294901760
    %v2147 = vsub.f32 %v95, %v2146
    %v2148 = vand.u32 %v2147, 4294901760
    %2149 = vmatpush.msra.mxu0 %v2148
    %v2150 = vand.u32 %v94, 4294901760
    %v2151 = vsub.f32 %v94, %v2150
    %v2152 = vand.u32 %v2151, 4294901760
    %2153 = vmatpush.msra.mxu0 %v2152
    %v2154 = vand.u32 %v93, 4294901760
    %v2155 = vsub.f32 %v93, %v2154
    %v2156 = vand.u32 %v2155, 4294901760
    %2157 = vmatpush.msra.mxu0 %v2156
    %v2158 = vand.u32 %v92, 4294901760
    %v2159 = vsub.f32 %v92, %v2158
    %v2160 = vand.u32 %v2159, 4294901760
    %2161 = vmatpush.msra.mxu0 %v2160
    %v2162 = vand.u32 %v91, 4294901760
    %v2163 = vsub.f32 %v91, %v2162
    %v2164 = vand.u32 %v2163, 4294901760
    %2165 = vmatpush.msra.mxu0 %v2164
    %v2166 = vand.u32 %v90, 4294901760
    %v2167 = vsub.f32 %v90, %v2166
    %v2168 = vand.u32 %v2167, 4294901760
    %2169 = vmatpush.msra.mxu0 %v2168
    %v2170 = vand.u32 %v89, 4294901760
    %v2171 = vsub.f32 %v89, %v2170
    %v2172 = vand.u32 %v2171, 4294901760
    %2173 = vmatpush.msra.mxu0 %v2172
    %v2174 = vand.u32 %v88, 4294901760
    %v2175 = vsub.f32 %v88, %v2174
    %v2176 = vand.u32 %v2175, 4294901760
    %2177 = vmatpush.msra.mxu0 %v2176
    %v2178 = vand.u32 %v87, 4294901760
    %v2179 = vsub.f32 %v87, %v2178
    %v2180 = vand.u32 %v2179, 4294901760
    %2181 = vmatpush.msra.mxu0 %v2180
    %v2182 = vand.u32 %v86, 4294901760
    %v2183 = vsub.f32 %v86, %v2182
    %v2184 = vand.u32 %v2183, 4294901760
    %2185 = vmatpush.msra.mxu0 %v2184
    %v2186 = vand.u32 %v85, 4294901760
    %v2187 = vsub.f32 %v85, %v2186
    %v2188 = vand.u32 %v2187, 4294901760
    %2189 = vmatpush.msra.mxu0 %v2188
    %v2190 = vand.u32 %v84, 4294901760
    %v2191 = vsub.f32 %v84, %v2190
    %v2192 = vand.u32 %v2191, 4294901760
    %2193 = vmatpush.msra.mxu0 %v2192
    %v2194 = vand.u32 %v1762, 4294901760
    %2195 = vmatmul.f32.gmra.mxu0 %v2194
    %v2196 = vpop.f32.mrf.mxu0
    %v2197 = vadd.f32 %v2098, %v2196
    %v2198 = vand.u32 %v1763, 4294901760
    %2199 = vmatmul.f32.gmra.mxu0 %v2198
    %v2200 = vpop.f32.mrf.mxu0
    %v2201 = vadd.f32 %v2104, %v2200
    %v2202 = vand.u32 %v1764, 4294901760
    %2203 = vmatmul.f32.gmra.mxu0 %v2202
    %v2204 = vpop.f32.mrf.mxu0
    %v2205 = vadd.f32 %v2110, %v2204
    %v2206 = vand.u32 %v1765, 4294901760
    %2207 = vmatmul.f32.gmra.mxu0 %v2206
    %v2208 = vpop.f32.mrf.mxu0
    %v2209 = vadd.f32 %v2116, %v2208
    %v2210 = vand.u32 %v1766, 4294901760
    %2211 = vmatmul.f32.gmra.mxu0 %v2210
    %v2212 = vpop.f32.mrf.mxu0
    %v2213 = vadd.f32 %v2122, %v2212
    %v2214 = vand.u32 %v1767, 4294901760
    %2215 = vmatmul.f32.gmra.mxu0 %v2214
    %v2216 = vpop.f32.mrf.mxu0
    %v2217 = vadd.f32 %v2128, %v2216
    %2218 = vdwg.mxu0
    %v2219 = vand.u32 %v99, 4294901760
    %2220 = vmatpush.msra.mxu0 %v2219
    %v2221 = vand.u32 %v98, 4294901760
    %2222 = vmatpush.msra.mxu0 %v2221
    %v2223 = vand.u32 %v97, 4294901760
    %2224 = vmatpush.msra.mxu0 %v2223
    %v2225 = vand.u32 %v96, 4294901760
    %2226 = vmatpush.msra.mxu0 %v2225
    %v2227 = vand.u32 %v95, 4294901760
    %2228 = vmatpush.msra.mxu0 %v2227
    %v2229 = vand.u32 %v94, 4294901760
    %2230 = vmatpush.msra.mxu0 %v2229
    %v2231 = vand.u32 %v93, 4294901760
    %2232 = vmatpush.msra.mxu0 %v2231
    %v2233 = vand.u32 %v92, 4294901760
    %2234 = vmatpush.msra.mxu0 %v2233
    %v2235 = vand.u32 %v91, 4294901760
    %2236 = vmatpush.msra.mxu0 %v2235
    %v2237 = vand.u32 %v90, 4294901760
    %2238 = vmatpush.msra.mxu0 %v2237
    %v2239 = vand.u32 %v89, 4294901760
    %2240 = vmatpush.msra.mxu0 %v2239
    %v2241 = vand.u32 %v88, 4294901760
    %2242 = vmatpush.msra.mxu0 %v2241
    %v2243 = vand.u32 %v87, 4294901760
    %2244 = vmatpush.msra.mxu0 %v2243
    %v2245 = vand.u32 %v86, 4294901760
    %2246 = vmatpush.msra.mxu0 %v2245
    %v2247 = vand.u32 %v85, 4294901760
    %2248 = vmatpush.msra.mxu0 %v2247
    %v2249 = vand.u32 %v84, 4294901760
    %2250 = vmatpush.msra.mxu0 %v2249
    %v2251 = vand.u32 %v1762, 4294901760
    %2252 = vmatmul.f32.gmra.mxu0 %v2251
    %v2253 = vpop.f32.mrf.mxu0
    %v2254 = vadd.f32 %v2197, %v2253
    %v2255 = vand.u32 %v1763, 4294901760
    %2256 = vmatmul.f32.gmra.mxu0 %v2255
    %v2257 = vpop.f32.mrf.mxu0
    %v2258 = vadd.f32 %v2201, %v2257
    %v2259 = vand.u32 %v1764, 4294901760
    %2260 = vmatmul.f32.gmra.mxu0 %v2259
    %v2261 = vpop.f32.mrf.mxu0
    %v2262 = vadd.f32 %v2205, %v2261
    %v2263 = vand.u32 %v1765, 4294901760
    %2264 = vmatmul.f32.gmra.mxu0 %v2263
    %v2265 = vpop.f32.mrf.mxu0
    %v2266 = vadd.f32 %v2209, %v2265
    %v2267 = vand.u32 %v1766, 4294901760
    %2268 = vmatmul.f32.gmra.mxu0 %v2267
    %v2269 = vpop.f32.mrf.mxu0
    %v2270 = vadd.f32 %v2213, %v2269
    %v2271 = vand.u32 %v1767, 4294901760
    %2272 = vmatmul.f32.gmra.mxu0 %v2271
    %v2273 = vpop.f32.mrf.mxu0
    %v2274 = vadd.f32 %v2217, %v2273
    %2275 = vdwg.mxu0
    %v2276 = vrcp.pop %v1769
    %v2277 = vmul.f32 %v1769, %v2276
    %v2278 = vsub.f32 1.0, %v2277
    %v2279 = vmul.f32 %v2276, %v2278
    %v2280 = vadd.f32 %v2276, %v2279
    %vm2281 = vweird.f32 %v1769
    %vm2282 = vweird.f32 %v2276
    %vm2283 = vmor %vm2281, %vm2282
    %v2284 = vsel %vm2283, %v2276, %v2280
    %v2285 = vand.u32 2147483647, %v1769
    %vm2286 = vcmp.eq.f32.partialorder %v2285, 8.507059e+37
    %v2287 = vand.u32 %v1769, 2147483648
    %v2288 = vor.u32 1.1754944e-38, %v2287
    %v2289 = vsel %vm2286, %v2288, %v2284
    %v2290 = vrcp.pop %v1771
    %v2291 = vmul.f32 %v1771, %v2290
    %v2292 = vsub.f32 1.0, %v2291
    %v2293 = vmul.f32 %v2290, %v2292
    %v2294 = vadd.f32 %v2290, %v2293
    %vm2295 = vweird.f32 %v1771
    %vm2296 = vweird.f32 %v2290
    %vm2297 = vmor %vm2295, %vm2296
    %v2298 = vsel %vm2297, %v2290, %v2294
    %v2299 = vand.u32 2147483647, %v1771
    %vm2300 = vcmp.eq.f32.partialorder %v2299, 8.507059e+37
    %v2301 = vand.u32 %v1771, 2147483648
    %v2302 = vor.u32 1.1754944e-38, %v2301
    %v2303 = vsel %vm2300, %v2302, %v2298
    %v2304 = vrcp.pop %v1773
    %v2305 = vmul.f32 %v1773, %v2304
    %v2306 = vsub.f32 1.0, %v2305
    %v2307 = vmul.f32 %v2304, %v2306
    %v2308 = vadd.f32 %v2304, %v2307
    %vm2309 = vweird.f32 %v1773
    %vm2310 = vweird.f32 %v2304
    %vm2311 = vmor %vm2309, %vm2310
    %v2312 = vsel %vm2311, %v2304, %v2308
    %v2313 = vand.u32 2147483647, %v1773
    %vm2314 = vcmp.eq.f32.partialorder %v2313, 8.507059e+37
    %v2315 = vand.u32 %v1773, 2147483648
    %v2316 = vor.u32 1.1754944e-38, %v2315
    %v2317 = vsel %vm2314, %v2316, %v2312
    %v2318 = vrcp.pop %v1775
    %v2319 = vmul.f32 %v1775, %v2318
    %v2320 = vsub.f32 1.0, %v2319
    %v2321 = vmul.f32 %v2318, %v2320
    %v2322 = vadd.f32 %v2318, %v2321
    %vm2323 = vweird.f32 %v1775
    %vm2324 = vweird.f32 %v2318
    %vm2325 = vmor %vm2323, %vm2324
    %v2326 = vsel %vm2325, %v2318, %v2322
    %v2327 = vand.u32 2147483647, %v1775
    %vm2328 = vcmp.eq.f32.partialorder %v2327, 8.507059e+37
    %v2329 = vand.u32 %v1775, 2147483648
    %v2330 = vor.u32 1.1754944e-38, %v2329
    %v2331 = vsel %vm2328, %v2330, %v2326
    %v2332 = vrcp.pop %v1777
    %v2333 = vmul.f32 %v1777, %v2332
    %v2334 = vsub.f32 1.0, %v2333
    %v2335 = vmul.f32 %v2332, %v2334
    %v2336 = vadd.f32 %v2332, %v2335
    %vm2337 = vweird.f32 %v1777
    %vm2338 = vweird.f32 %v2332
    %vm2339 = vmor %vm2337, %vm2338
    %v2340 = vsel %vm2339, %v2332, %v2336
    %v2341 = vand.u32 2147483647, %v1777
    %vm2342 = vcmp.eq.f32.partialorder %v2341, 8.507059e+37
    %v2343 = vand.u32 %v1777, 2147483648
    %v2344 = vor.u32 1.1754944e-38, %v2343
    %v2345 = vsel %vm2342, %v2344, %v2340
    %v2346 = vrcp.pop %v1779
    %v2347 = vmul.f32 %v1779, %v2346
    %v2348 = vsub.f32 1.0, %v2347
    %v2349 = vmul.f32 %v2346, %v2348
    %v2350 = vadd.f32 %v2346, %v2349
    %vm2351 = vweird.f32 %v1779
    %vm2352 = vweird.f32 %v2346
    %vm2353 = vmor %vm2351, %vm2352
    %v2354 = vsel %vm2353, %v2346, %v2350
    %v2355 = vand.u32 2147483647, %v1779
    %vm2356 = vcmp.eq.f32.partialorder %v2355, 8.507059e+37
    %v2357 = vand.u32 %v1779, 2147483648
    %v2358 = vor.u32 1.1754944e-38, %v2357
    %v2359 = vsel %vm2356, %v2358, %v2354
    %v2360 = vmul.f32 %v2254, %v2289
    %v2361 = vmul.f32 %v2258, %v2303
    %v2362 = vmul.f32 %v2262, %v2317
    %v2363 = vmul.f32 %v2266, %v2331
    %v2364 = vmul.f32 %v2270, %v2345
    %v2365 = vmul.f32 %v2274, %v2359
    %v2366 = vand.u32 %v83, 4294901760
    %2367 = vmatpush.msra.mxu0 %v2366
    %v2368 = vand.u32 %v82, 4294901760
    %2369 = vmatpush.msra.mxu0 %v2368
    %v2370 = vand.u32 %v81, 4294901760
    %2371 = vmatpush.msra.mxu0 %v2370
    %v2372 = vand.u32 %v80, 4294901760
    %2373 = vmatpush.msra.mxu0 %v2372
    %v2374 = vand.u32 %v79, 4294901760
    %2375 = vmatpush.msra.mxu0 %v2374
    %v2376 = vand.u32 %v78, 4294901760
    %2377 = vmatpush.msra.mxu0 %v2376
    %v2378 = vand.u32 %v77, 4294901760
    %2379 = vmatpush.msra.mxu0 %v2378
    %v2380 = vand.u32 %v76, 4294901760
    %2381 = vmatpush.msra.mxu0 %v2380
    %v2382 = vand.u32 %v75, 4294901760
    %2383 = vmatpush.msra.mxu0 %v2382
    %v2384 = vand.u32 %v74, 4294901760
    %2385 = vmatpush.msra.mxu0 %v2384
    %v2386 = vand.u32 %v73, 4294901760
    %2387 = vmatpush.msra.mxu0 %v2386
    %v2388 = vand.u32 %v72, 4294901760
    %2389 = vmatpush.msra.mxu0 %v2388
    %v2390 = vand.u32 %v71, 4294901760
    %2391 = vmatpush.msra.mxu0 %v2390
    %v2392 = vand.u32 %v70, 4294901760
    %2393 = vmatpush.msra.mxu0 %v2392
    %v2394 = vand.u32 %v69, 4294901760
    %2395 = vmatpush.msra.mxu0 %v2394
    %v2396 = vand.u32 %v68, 4294901760
    %2397 = vmatpush.msra.mxu0 %v2396
    %v2398 = vand.u32 %v2360, 4294901760
    %v2399 = vsub.f32 %v2360, %v2398
    %v2400 = vand.u32 %v2399, 4294901760
    %v2401 = vsub.f32 %v2399, %v2400
    %v2402 = vand.u32 %v2401, 4294901760
    %2403 = vmatmul.f32.gmra.mxu0 %v2402
    %v2404 = vpop.f32.mrf.mxu0
    %v2405 = vadd.f32 0.0, %v2404
    %v2406 = vand.u32 %v2361, 4294901760
    %v2407 = vsub.f32 %v2361, %v2406
    %v2408 = vand.u32 %v2407, 4294901760
    %v2409 = vsub.f32 %v2407, %v2408
    %v2410 = vand.u32 %v2409, 4294901760
    %2411 = vmatmul.f32.gmra.mxu0 %v2410
    %v2412 = vpop.f32.mrf.mxu0
    %v2413 = vadd.f32 0.0, %v2412
    %v2414 = vand.u32 %v2362, 4294901760
    %v2415 = vsub.f32 %v2362, %v2414
    %v2416 = vand.u32 %v2415, 4294901760
    %v2417 = vsub.f32 %v2415, %v2416
    %v2418 = vand.u32 %v2417, 4294901760
    %2419 = vmatmul.f32.gmra.mxu0 %v2418
    %v2420 = vpop.f32.mrf.mxu0
    %v2421 = vadd.f32 0.0, %v2420
    %v2422 = vand.u32 %v2363, 4294901760
    %v2423 = vsub.f32 %v2363, %v2422
    %v2424 = vand.u32 %v2423, 4294901760
    %v2425 = vsub.f32 %v2423, %v2424
    %v2426 = vand.u32 %v2425, 4294901760
    %2427 = vmatmul.f32.gmra.mxu0 %v2426
    %v2428 = vpop.f32.mrf.mxu0
    %v2429 = vadd.f32 0.0, %v2428
    %v2430 = vand.u32 %v2364, 4294901760
    %v2431 = vsub.f32 %v2364, %v2430
    %v2432 = vand.u32 %v2431, 4294901760
    %v2433 = vsub.f32 %v2431, %v2432
    %v2434 = vand.u32 %v2433, 4294901760
    %2435 = vmatmul.f32.gmra.mxu0 %v2434
    %v2436 = vpop.f32.mrf.mxu0
    %v2437 = vadd.f32 0.0, %v2436
    %v2438 = vand.u32 %v2365, 4294901760
    %v2439 = vsub.f32 %v2365, %v2438
    %v2440 = vand.u32 %v2439, 4294901760
    %v2441 = vsub.f32 %v2439, %v2440
    %v2442 = vand.u32 %v2441, 4294901760
    %2443 = vmatmul.f32.gmra.mxu0 %v2442
    %v2444 = vpop.f32.mrf.mxu0
    %v2445 = vadd.f32 0.0, %v2444
    %2446 = vdwg.mxu0
    %v2447 = vand.u32 %v83, 4294901760
    %v2448 = vsub.f32 %v83, %v2447
    %v2449 = vand.u32 %v2448, 4294901760
    %v2450 = vsub.f32 %v2448, %v2449
    %v2451 = vand.u32 %v2450, 4294901760
    %2452 = vmatpush.msra.mxu0 %v2451
    %v2453 = vand.u32 %v82, 4294901760
    %v2454 = vsub.f32 %v82, %v2453
    %v2455 = vand.u32 %v2454, 4294901760
    %v2456 = vsub.f32 %v2454, %v2455
    %v2457 = vand.u32 %v2456, 4294901760
    %2458 = vmatpush.msra.mxu0 %v2457
    %v2459 = vand.u32 %v81, 4294901760
    %v2460 = vsub.f32 %v81, %v2459
    %v2461 = vand.u32 %v2460, 4294901760
    %v2462 = vsub.f32 %v2460, %v2461
    %v2463 = vand.u32 %v2462, 4294901760
    %2464 = vmatpush.msra.mxu0 %v2463
    %v2465 = vand.u32 %v80, 4294901760
    %v2466 = vsub.f32 %v80, %v2465
    %v2467 = vand.u32 %v2466, 4294901760
    %v2468 = vsub.f32 %v2466, %v2467
    %v2469 = vand.u32 %v2468, 4294901760
    %2470 = vmatpush.msra.mxu0 %v2469
    %v2471 = vand.u32 %v79, 4294901760
    %v2472 = vsub.f32 %v79, %v2471
    %v2473 = vand.u32 %v2472, 4294901760
    %v2474 = vsub.f32 %v2472, %v2473
    %v2475 = vand.u32 %v2474, 4294901760
    %2476 = vmatpush.msra.mxu0 %v2475
    %v2477 = vand.u32 %v78, 4294901760
    %v2478 = vsub.f32 %v78, %v2477
    %v2479 = vand.u32 %v2478, 4294901760
    %v2480 = vsub.f32 %v2478, %v2479
    %v2481 = vand.u32 %v2480, 4294901760
    %2482 = vmatpush.msra.mxu0 %v2481
    %v2483 = vand.u32 %v77, 4294901760
    %v2484 = vsub.f32 %v77, %v2483
    %v2485 = vand.u32 %v2484, 4294901760
    %v2486 = vsub.f32 %v2484, %v2485
    %v2487 = vand.u32 %v2486, 4294901760
    %2488 = vmatpush.msra.mxu0 %v2487
    %v2489 = vand.u32 %v76, 4294901760
    %v2490 = vsub.f32 %v76, %v2489
    %v2491 = vand.u32 %v2490, 4294901760
    %v2492 = vsub.f32 %v2490, %v2491
    %v2493 = vand.u32 %v2492, 4294901760
    %2494 = vmatpush.msra.mxu0 %v2493
    %v2495 = vand.u32 %v75, 4294901760
    %v2496 = vsub.f32 %v75, %v2495
    %v2497 = vand.u32 %v2496, 4294901760
    %v2498 = vsub.f32 %v2496, %v2497
    %v2499 = vand.u32 %v2498, 4294901760
    %2500 = vmatpush.msra.mxu0 %v2499
    %v2501 = vand.u32 %v74, 4294901760
    %v2502 = vsub.f32 %v74, %v2501
    %v2503 = vand.u32 %v2502, 4294901760
    %v2504 = vsub.f32 %v2502, %v2503
    %v2505 = vand.u32 %v2504, 4294901760
    %2506 = vmatpush.msra.mxu0 %v2505
    %v2507 = vand.u32 %v73, 4294901760
    %v2508 = vsub.f32 %v73, %v2507
    %v2509 = vand.u32 %v2508, 4294901760
    %v2510 = vsub.f32 %v2508, %v2509
    %v2511 = vand.u32 %v2510, 4294901760
    %2512 = vmatpush.msra.mxu0 %v2511
    %v2513 = vand.u32 %v72, 4294901760
    %v2514 = vsub.f32 %v72, %v2513
    %v2515 = vand.u32 %v2514, 4294901760
    %v2516 = vsub.f32 %v2514, %v2515
    %v2517 = vand.u32 %v2516, 4294901760
    %2518 = vmatpush.msra.mxu0 %v2517
    %v2519 = vand.u32 %v71, 4294901760
    %v2520 = vsub.f32 %v71, %v2519
    %v2521 = vand.u32 %v2520, 4294901760
    %v2522 = vsub.f32 %v2520, %v2521
    %v2523 = vand.u32 %v2522, 4294901760
    %2524 = vmatpush.msra.mxu0 %v2523
    %v2525 = vand.u32 %v70, 4294901760
    %v2526 = vsub.f32 %v70, %v2525
    %v2527 = vand.u32 %v2526, 4294901760
    %v2528 = vsub.f32 %v2526, %v2527
    %v2529 = vand.u32 %v2528, 4294901760
    %2530 = vmatpush.msra.mxu0 %v2529
    %v2531 = vand.u32 %v69, 4294901760
    %v2532 = vsub.f32 %v69, %v2531
    %v2533 = vand.u32 %v2532, 4294901760
    %v2534 = vsub.f32 %v2532, %v2533
    %v2535 = vand.u32 %v2534, 4294901760
    %2536 = vmatpush.msra.mxu0 %v2535
    %v2537 = vand.u32 %v68, 4294901760
    %v2538 = vsub.f32 %v68, %v2537
    %v2539 = vand.u32 %v2538, 4294901760
    %v2540 = vsub.f32 %v2538, %v2539
    %v2541 = vand.u32 %v2540, 4294901760
    %2542 = vmatpush.msra.mxu0 %v2541
    %v2543 = vand.u32 %v2360, 4294901760
    %2544 = vmatmul.f32.gmra.mxu0 %v2543
    %v2545 = vpop.f32.mrf.mxu0
    %v2546 = vadd.f32 %v2405, %v2545
    %v2547 = vand.u32 %v2361, 4294901760
    %2548 = vmatmul.f32.gmra.mxu0 %v2547
    %v2549 = vpop.f32.mrf.mxu0
    %v2550 = vadd.f32 %v2413, %v2549
    %v2551 = vand.u32 %v2362, 4294901760
    %2552 = vmatmul.f32.gmra.mxu0 %v2551
    %v2553 = vpop.f32.mrf.mxu0
    %v2554 = vadd.f32 %v2421, %v2553
    %v2555 = vand.u32 %v2363, 4294901760
    %2556 = vmatmul.f32.gmra.mxu0 %v2555
    %v2557 = vpop.f32.mrf.mxu0
    %v2558 = vadd.f32 %v2429, %v2557
    %v2559 = vand.u32 %v2364, 4294901760
    %2560 = vmatmul.f32.gmra.mxu0 %v2559
    %v2561 = vpop.f32.mrf.mxu0
    %v2562 = vadd.f32 %v2437, %v2561
    %v2563 = vand.u32 %v2365, 4294901760
    %2564 = vmatmul.f32.gmra.mxu0 %v2563
    %v2565 = vpop.f32.mrf.mxu0
    %v2566 = vadd.f32 %v2445, %v2565
    %2567 = vdwg.mxu0
    %v2568 = vand.u32 %v83, 4294901760
    %v2569 = vsub.f32 %v83, %v2568
    %2570 = vmatpush.msra.mxu0 %v2569
    %v2571 = vand.u32 %v82, 4294901760
    %v2572 = vsub.f32 %v82, %v2571
    %2573 = vmatpush.msra.mxu0 %v2572
    %v2574 = vand.u32 %v81, 4294901760
    %v2575 = vsub.f32 %v81, %v2574
    %2576 = vmatpush.msra.mxu0 %v2575
    %v2577 = vand.u32 %v80, 4294901760
    %v2578 = vsub.f32 %v80, %v2577
    %2579 = vmatpush.msra.mxu0 %v2578
    %v2580 = vand.u32 %v79, 4294901760
    %v2581 = vsub.f32 %v79, %v2580
    %2582 = vmatpush.msra.mxu0 %v2581
    %v2583 = vand.u32 %v78, 4294901760
    %v2584 = vsub.f32 %v78, %v2583
    %2585 = vmatpush.msra.mxu0 %v2584
    %v2586 = vand.u32 %v77, 4294901760
    %v2587 = vsub.f32 %v77, %v2586
    %2588 = vmatpush.msra.mxu0 %v2587
    %v2589 = vand.u32 %v76, 4294901760
    %v2590 = vsub.f32 %v76, %v2589
    %2591 = vmatpush.msra.mxu0 %v2590
    %v2592 = vand.u32 %v75, 4294901760
    %v2593 = vsub.f32 %v75, %v2592
    %2594 = vmatpush.msra.mxu0 %v2593
    %v2595 = vand.u32 %v74, 4294901760
    %v2596 = vsub.f32 %v74, %v2595
    %2597 = vmatpush.msra.mxu0 %v2596
    %v2598 = vand.u32 %v73, 4294901760
    %v2599 = vsub.f32 %v73, %v2598
    %2600 = vmatpush.msra.mxu0 %v2599
    %v2601 = vand.u32 %v72, 4294901760
    %v2602 = vsub.f32 %v72, %v2601
    %2603 = vmatpush.msra.mxu0 %v2602
    %v2604 = vand.u32 %v71, 4294901760
    %v2605 = vsub.f32 %v71, %v2604
    %2606 = vmatpush.msra.mxu0 %v2605
    %v2607 = vand.u32 %v70, 4294901760
    %v2608 = vsub.f32 %v70, %v2607
    %2609 = vmatpush.msra.mxu0 %v2608
    %v2610 = vand.u32 %v69, 4294901760
    %v2611 = vsub.f32 %v69, %v2610
    %2612 = vmatpush.msra.mxu0 %v2611
    %v2613 = vand.u32 %v68, 4294901760
    %v2614 = vsub.f32 %v68, %v2613
    %2615 = vmatpush.msra.mxu0 %v2614
    %v2616 = vand.u32 %v2360, 4294901760
    %v2617 = vsub.f32 %v2360, %v2616
    %2618 = vmatmul.f32.gmra.mxu0 %v2617
    %v2619 = vpop.f32.mrf.mxu0
    %v2620 = vadd.f32 %v2546, %v2619
    %v2621 = vand.u32 %v2361, 4294901760
    %v2622 = vsub.f32 %v2361, %v2621
    %2623 = vmatmul.f32.gmra.mxu0 %v2622
    %v2624 = vpop.f32.mrf.mxu0
    %v2625 = vadd.f32 %v2550, %v2624
    %v2626 = vand.u32 %v2362, 4294901760
    %v2627 = vsub.f32 %v2362, %v2626
    %2628 = vmatmul.f32.gmra.mxu0 %v2627
    %v2629 = vpop.f32.mrf.mxu0
    %v2630 = vadd.f32 %v2554, %v2629
    %v2631 = vand.u32 %v2363, 4294901760
    %v2632 = vsub.f32 %v2363, %v2631
    %2633 = vmatmul.f32.gmra.mxu0 %v2632
    %v2634 = vpop.f32.mrf.mxu0
    %v2635 = vadd.f32 %v2558, %v2634
    %v2636 = vand.u32 %v2364, 4294901760
    %v2637 = vsub.f32 %v2364, %v2636
    %2638 = vmatmul.f32.gmra.mxu0 %v2637
    %v2639 = vpop.f32.mrf.mxu0
    %v2640 = vadd.f32 %v2562, %v2639
    %v2641 = vand.u32 %v2365, 4294901760
    %v2642 = vsub.f32 %v2365, %v2641
    %2643 = vmatmul.f32.gmra.mxu0 %v2642
    %v2644 = vpop.f32.mrf.mxu0
    %v2645 = vadd.f32 %v2566, %v2644
    %2646 = vdwg.mxu0
    %v2647 = vand.u32 %v83, 4294901760
    %2648 = vmatpush.msra.mxu0 %v2647
    %v2649 = vand.u32 %v82, 4294901760
    %2650 = vmatpush.msra.mxu0 %v2649
    %v2651 = vand.u32 %v81, 4294901760
    %2652 = vmatpush.msra.mxu0 %v2651
    %v2653 = vand.u32 %v80, 4294901760
    %2654 = vmatpush.msra.mxu0 %v2653
    %v2655 = vand.u32 %v79, 4294901760
    %2656 = vmatpush.msra.mxu0 %v2655
    %v2657 = vand.u32 %v78, 4294901760
    %2658 = vmatpush.msra.mxu0 %v2657
    %v2659 = vand.u32 %v77, 4294901760
    %2660 = vmatpush.msra.mxu0 %v2659
    %v2661 = vand.u32 %v76, 4294901760
    %2662 = vmatpush.msra.mxu0 %v2661
    %v2663 = vand.u32 %v75, 4294901760
    %2664 = vmatpush.msra.mxu0 %v2663
    %v2665 = vand.u32 %v74, 4294901760
    %2666 = vmatpush.msra.mxu0 %v2665
    %v2667 = vand.u32 %v73, 4294901760
    %2668 = vmatpush.msra.mxu0 %v2667
    %v2669 = vand.u32 %v72, 4294901760
    %2670 = vmatpush.msra.mxu0 %v2669
    %v2671 = vand.u32 %v71, 4294901760
    %2672 = vmatpush.msra.mxu0 %v2671
    %v2673 = vand.u32 %v70, 4294901760
    %2674 = vmatpush.msra.mxu0 %v2673
    %v2675 = vand.u32 %v69, 4294901760
    %2676 = vmatpush.msra.mxu0 %v2675
    %v2677 = vand.u32 %v68, 4294901760
    %2678 = vmatpush.msra.mxu0 %v2677
    %v2679 = vand.u32 %v2360, 4294901760
    %v2680 = vsub.f32 %v2360, %v2679
    %v2681 = vand.u32 %v2680, 4294901760
    %2682 = vmatmul.f32.gmra.mxu0 %v2681
    %v2683 = vpop.f32.mrf.mxu0
    %v2684 = vadd.f32 %v2620, %v2683
    %v2685 = vand.u32 %v2361, 4294901760
    %v2686 = vsub.f32 %v2361, %v2685
    %v2687 = vand.u32 %v2686, 4294901760
    %2688 = vmatmul.f32.gmra.mxu0 %v2687
    %v2689 = vpop.f32.mrf.mxu0
    %v2690 = vadd.f32 %v2625, %v2689
    %v2691 = vand.u32 %v2362, 4294901760
    %v2692 = vsub.f32 %v2362, %v2691
    %v2693 = vand.u32 %v2692, 4294901760
    %2694 = vmatmul.f32.gmra.mxu0 %v2693
    %v2695 = vpop.f32.mrf.mxu0
    %v2696 = vadd.f32 %v2630, %v2695
    %v2697 = vand.u32 %v2363, 4294901760
    %v2698 = vsub.f32 %v2363, %v2697
    %v2699 = vand.u32 %v2698, 4294901760
    %2700 = vmatmul.f32.gmra.mxu0 %v2699
    %v2701 = vpop.f32.mrf.mxu0
    %v2702 = vadd.f32 %v2635, %v2701
    %v2703 = vand.u32 %v2364, 4294901760
    %v2704 = vsub.f32 %v2364, %v2703
    %v2705 = vand.u32 %v2704, 4294901760
    %2706 = vmatmul.f32.gmra.mxu0 %v2705
    %v2707 = vpop.f32.mrf.mxu0
    %v2708 = vadd.f32 %v2640, %v2707
    %v2709 = vand.u32 %v2365, 4294901760
    %v2710 = vsub.f32 %v2365, %v2709
    %v2711 = vand.u32 %v2710, 4294901760
    %2712 = vmatmul.f32.gmra.mxu0 %v2711
    %v2713 = vpop.f32.mrf.mxu0
    %v2714 = vadd.f32 %v2645, %v2713
    %2715 = vdwg.mxu0
    %v2716 = vand.u32 %v83, 4294901760
    %v2717 = vsub.f32 %v83, %v2716
    %v2718 = vand.u32 %v2717, 4294901760
    %2719 = vmatpush.msra.mxu0 %v2718
    %v2720 = vand.u32 %v82, 4294901760
    %v2721 = vsub.f32 %v82, %v2720
    %v2722 = vand.u32 %v2721, 4294901760
    %2723 = vmatpush.msra.mxu0 %v2722
    %v2724 = vand.u32 %v81, 4294901760
    %v2725 = vsub.f32 %v81, %v2724
    %v2726 = vand.u32 %v2725, 4294901760
    %2727 = vmatpush.msra.mxu0 %v2726
    %v2728 = vand.u32 %v80, 4294901760
    %v2729 = vsub.f32 %v80, %v2728
    %v2730 = vand.u32 %v2729, 4294901760
    %2731 = vmatpush.msra.mxu0 %v2730
    %v2732 = vand.u32 %v79, 4294901760
    %v2733 = vsub.f32 %v79, %v2732
    %v2734 = vand.u32 %v2733, 4294901760
    %2735 = vmatpush.msra.mxu0 %v2734
    %v2736 = vand.u32 %v78, 4294901760
    %v2737 = vsub.f32 %v78, %v2736
    %v2738 = vand.u32 %v2737, 4294901760
    %2739 = vmatpush.msra.mxu0 %v2738
    %v2740 = vand.u32 %v77, 4294901760
    %v2741 = vsub.f32 %v77, %v2740
    %v2742 = vand.u32 %v2741, 4294901760
    %2743 = vmatpush.msra.mxu0 %v2742
    %v2744 = vand.u32 %v76, 4294901760
    %v2745 = vsub.f32 %v76, %v2744
    %v2746 = vand.u32 %v2745, 4294901760
    %2747 = vmatpush.msra.mxu0 %v2746
    %v2748 = vand.u32 %v75, 4294901760
    %v2749 = vsub.f32 %v75, %v2748
    %v2750 = vand.u32 %v2749, 4294901760
    %2751 = vmatpush.msra.mxu0 %v2750
    %v2752 = vand.u32 %v74, 4294901760
    %v2753 = vsub.f32 %v74, %v2752
    %v2754 = vand.u32 %v2753, 4294901760
    %2755 = vmatpush.msra.mxu0 %v2754
    %v2756 = vand.u32 %v73, 4294901760
    %v2757 = vsub.f32 %v73, %v2756
    %v2758 = vand.u32 %v2757, 4294901760
    %2759 = vmatpush.msra.mxu0 %v2758
    %v2760 = vand.u32 %v72, 4294901760
    %v2761 = vsub.f32 %v72, %v2760
    %v2762 = vand.u32 %v2761, 4294901760
    %2763 = vmatpush.msra.mxu0 %v2762
    %v2764 = vand.u32 %v71, 4294901760
    %v2765 = vsub.f32 %v71, %v2764
    %v2766 = vand.u32 %v2765, 4294901760
    %2767 = vmatpush.msra.mxu0 %v2766
    %v2768 = vand.u32 %v70, 4294901760
    %v2769 = vsub.f32 %v70, %v2768
    %v2770 = vand.u32 %v2769, 4294901760
    %2771 = vmatpush.msra.mxu0 %v2770
    %v2772 = vand.u32 %v69, 4294901760
    %v2773 = vsub.f32 %v69, %v2772
    %v2774 = vand.u32 %v2773, 4294901760
    %2775 = vmatpush.msra.mxu0 %v2774
    %v2776 = vand.u32 %v68, 4294901760
    %v2777 = vsub.f32 %v68, %v2776
    %v2778 = vand.u32 %v2777, 4294901760
    %2779 = vmatpush.msra.mxu0 %v2778
    %v2780 = vand.u32 %v2360, 4294901760
    %2781 = vmatmul.f32.gmra.mxu0 %v2780
    %v2782 = vpop.f32.mrf.mxu0
    %v2783 = vadd.f32 %v2684, %v2782
    %v2784 = vand.u32 %v2361, 4294901760
    %2785 = vmatmul.f32.gmra.mxu0 %v2784
    %v2786 = vpop.f32.mrf.mxu0
    %v2787 = vadd.f32 %v2690, %v2786
    %v2788 = vand.u32 %v2362, 4294901760
    %2789 = vmatmul.f32.gmra.mxu0 %v2788
    %v2790 = vpop.f32.mrf.mxu0
    %v2791 = vadd.f32 %v2696, %v2790
    %v2792 = vand.u32 %v2363, 4294901760
    %2793 = vmatmul.f32.gmra.mxu0 %v2792
    %v2794 = vpop.f32.mrf.mxu0
    %v2795 = vadd.f32 %v2702, %v2794
    %v2796 = vand.u32 %v2364, 4294901760
    %2797 = vmatmul.f32.gmra.mxu0 %v2796
    %v2798 = vpop.f32.mrf.mxu0
    %v2799 = vadd.f32 %v2708, %v2798
    %v2800 = vand.u32 %v2365, 4294901760
    %2801 = vmatmul.f32.gmra.mxu0 %v2800
    %v2802 = vpop.f32.mrf.mxu0
    %v2803 = vadd.f32 %v2714, %v2802
    %2804 = vdwg.mxu0
    %v2805 = vand.u32 %v83, 4294901760
    %2806 = vmatpush.msra.mxu0 %v2805
    %v2807 = vand.u32 %v82, 4294901760
    %2808 = vmatpush.msra.mxu0 %v2807
    %v2809 = vand.u32 %v81, 4294901760
    %2810 = vmatpush.msra.mxu0 %v2809
    %v2811 = vand.u32 %v80, 4294901760
    %2812 = vmatpush.msra.mxu0 %v2811
    %v2813 = vand.u32 %v79, 4294901760
    %2814 = vmatpush.msra.mxu0 %v2813
    %v2815 = vand.u32 %v78, 4294901760
    %2816 = vmatpush.msra.mxu0 %v2815
    %v2817 = vand.u32 %v77, 4294901760
    %2818 = vmatpush.msra.mxu0 %v2817
    %v2819 = vand.u32 %v76, 4294901760
    %2820 = vmatpush.msra.mxu0 %v2819
    %v2821 = vand.u32 %v75, 4294901760
    %2822 = vmatpush.msra.mxu0 %v2821
    %v2823 = vand.u32 %v74, 4294901760
    %2824 = vmatpush.msra.mxu0 %v2823
    %v2825 = vand.u32 %v73, 4294901760
    %2826 = vmatpush.msra.mxu0 %v2825
    %v2827 = vand.u32 %v72, 4294901760
    %2828 = vmatpush.msra.mxu0 %v2827
    %v2829 = vand.u32 %v71, 4294901760
    %2830 = vmatpush.msra.mxu0 %v2829
    %v2831 = vand.u32 %v70, 4294901760
    %2832 = vmatpush.msra.mxu0 %v2831
    %v2833 = vand.u32 %v69, 4294901760
    %2834 = vmatpush.msra.mxu0 %v2833
    %v2835 = vand.u32 %v68, 4294901760
    %2836 = vmatpush.msra.mxu0 %v2835
    %v2837 = vand.u32 %v2360, 4294901760
    %2838 = vmatmul.f32.gmra.mxu0 %v2837
    %v2839 = vpop.f32.mrf.mxu0
    %v2840 = vadd.f32 %v2783, %v2839
    %v2841 = vand.u32 %v2361, 4294901760
    %2842 = vmatmul.f32.gmra.mxu0 %v2841
    %v2843 = vpop.f32.mrf.mxu0
    %v2844 = vadd.f32 %v2787, %v2843
    %v2845 = vand.u32 %v2362, 4294901760
    %2846 = vmatmul.f32.gmra.mxu0 %v2845
    %v2847 = vpop.f32.mrf.mxu0
    %v2848 = vadd.f32 %v2791, %v2847
    %v2849 = vand.u32 %v2363, 4294901760
    %2850 = vmatmul.f32.gmra.mxu0 %v2849
    %v2851 = vpop.f32.mrf.mxu0
    %v2852 = vadd.f32 %v2795, %v2851
    %v2853 = vand.u32 %v2364, 4294901760
    %2854 = vmatmul.f32.gmra.mxu0 %v2853
    %v2855 = vpop.f32.mrf.mxu0
    %v2856 = vadd.f32 %v2799, %v2855
    %v2857 = vand.u32 %v2365, 4294901760
    %2858 = vmatmul.f32.gmra.mxu0 %v2857
    %v2859 = vpop.f32.mrf.mxu0
    %v2860 = vadd.f32 %v2803, %v2859
    %2861 = vdwg.mxu0
    %2862 = vmax.xlane.f32.xlu0 %v2840
    %v2863 = vpop.xlane.xlu0 %2862
    %2864 = vmax.xlane.f32.xlu0 %v2844
    %v2865 = vpop.xlane.xlu0 %2864
    %2866 = vmax.xlane.f32.xlu0 %v2848
    %v2867 = vpop.xlane.xlu0 %2866
    %2868 = vmax.xlane.f32.xlu0 %v2852
    %v2869 = vpop.xlane.xlu0 %2868
    %2870 = vmax.xlane.f32.xlu0 %v2856
    %v2871 = vpop.xlane.xlu0 %2870
    %2872 = vmax.xlane.f32.xlu0 %v2860
    %v2873 = vpop.xlane.xlu0 %2872
    %v2874 = vsub.f32 %v2840, %v2863
    %v2875 = vsub.f32 %v2844, %v2865
    %v2876 = vsub.f32 %v2848, %v2867
    %v2877 = vsub.f32 %v2852, %v2869
    %v2878 = vsub.f32 %v2856, %v2871
    %v2879 = vsub.f32 %v2860, %v2873
    %v2880 = vmul.f32 %v2874, 1.442695
    %v2881 = vpow.pop %v2880
    %v2882 = vmul.f32 %v2875, 1.442695
    %v2883 = vpow.pop %v2882
    %v2884 = vmul.f32 %v2876, 1.442695
    %v2885 = vpow.pop %v2884
    %v2886 = vmul.f32 %v2877, 1.442695
    %v2887 = vpow.pop %v2886
    %v2888 = vmul.f32 %v2878, 1.442695
    %v2889 = vpow.pop %v2888
    %v2890 = vmul.f32 %v2879, 1.442695
    %v2891 = vpow.pop %v2890
    %v2892 = vmul.f32 %v2881, %v105
    %v2893 = vmul.f32 %v2883, %v105
    %v2894 = vmul.f32 %v2885, %v105
    %v2895 = vmul.f32 %v2887, %v105
    %v2896 = vmul.f32 %v2889, %v105
    %v2897 = vmul.f32 %v2891, %v105
    %2898 = vadd.xlane.f32.xlu0 %v2892
    %v2899 = vpop.xlane.xlu0 %2898
    %2900 = vadd.xlane.f32.xlu0 %v2893
    %v2901 = vpop.xlane.xlu0 %2900
    %2902 = vadd.xlane.f32.xlu0 %v2894
    %v2903 = vpop.xlane.xlu0 %2902
    %2904 = vadd.xlane.f32.xlu0 %v2895
    %v2905 = vpop.xlane.xlu0 %2904
    %2906 = vadd.xlane.f32.xlu0 %v2896
    %v2907 = vpop.xlane.xlu0 %2906
    %2908 = vadd.xlane.f32.xlu0 %v2897
    %v2909 = vpop.xlane.xlu0 %2908
    %v2910 = vand.u32 %v99, 4294901760
    %2911 = vmatpush.msra.mxu0 %v2910
    %v2912 = vand.u32 %v98, 4294901760
    %2913 = vmatpush.msra.mxu0 %v2912
    %v2914 = vand.u32 %v97, 4294901760
    %2915 = vmatpush.msra.mxu0 %v2914
    %v2916 = vand.u32 %v96, 4294901760
    %2917 = vmatpush.msra.mxu0 %v2916
    %v2918 = vand.u32 %v95, 4294901760
    %2919 = vmatpush.msra.mxu0 %v2918
    %v2920 = vand.u32 %v94, 4294901760
    %2921 = vmatpush.msra.mxu0 %v2920
    %v2922 = vand.u32 %v93, 4294901760
    %2923 = vmatpush.msra.mxu0 %v2922
    %v2924 = vand.u32 %v92, 4294901760
    %2925 = vmatpush.msra.mxu0 %v2924
    %v2926 = vand.u32 %v91, 4294901760
    %2927 = vmatpush.msra.mxu0 %v2926
    %v2928 = vand.u32 %v90, 4294901760
    %2929 = vmatpush.msra.mxu0 %v2928
    %v2930 = vand.u32 %v89, 4294901760
    %2931 = vmatpush.msra.mxu0 %v2930
    %v2932 = vand.u32 %v88, 4294901760
    %2933 = vmatpush.msra.mxu0 %v2932
    %v2934 = vand.u32 %v87, 4294901760
    %2935 = vmatpush.msra.mxu0 %v2934
    %v2936 = vand.u32 %v86, 4294901760
    %2937 = vmatpush.msra.mxu0 %v2936
    %v2938 = vand.u32 %v85, 4294901760
    %2939 = vmatpush.msra.mxu0 %v2938
    %v2940 = vand.u32 %v84, 4294901760
    %2941 = vmatpush.msra.mxu0 %v2940
    %v2942 = vand.u32 %v2892, 4294901760
    %v2943 = vsub.f32 %v2892, %v2942
    %v2944 = vand.u32 %v2943, 4294901760
    %v2945 = vsub.f32 %v2943, %v2944
    %v2946 = vand.u32 %v2945, 4294901760
    %2947 = vmatmul.f32.gmra.mxu0 %v2946
    %v2948 = vpop.f32.mrf.mxu0
    %v2949 = vadd.f32 0.0, %v2948
    %v2950 = vand.u32 %v2893, 4294901760
    %v2951 = vsub.f32 %v2893, %v2950
    %v2952 = vand.u32 %v2951, 4294901760
    %v2953 = vsub.f32 %v2951, %v2952
    %v2954 = vand.u32 %v2953, 4294901760
    %2955 = vmatmul.f32.gmra.mxu0 %v2954
    %v2956 = vpop.f32.mrf.mxu0
    %v2957 = vadd.f32 0.0, %v2956
    %v2958 = vand.u32 %v2894, 4294901760
    %v2959 = vsub.f32 %v2894, %v2958
    %v2960 = vand.u32 %v2959, 4294901760
    %v2961 = vsub.f32 %v2959, %v2960
    %v2962 = vand.u32 %v2961, 4294901760
    %2963 = vmatmul.f32.gmra.mxu0 %v2962
    %v2964 = vpop.f32.mrf.mxu0
    %v2965 = vadd.f32 0.0, %v2964
    %v2966 = vand.u32 %v2895, 4294901760
    %v2967 = vsub.f32 %v2895, %v2966
    %v2968 = vand.u32 %v2967, 4294901760
    %v2969 = vsub.f32 %v2967, %v2968
    %v2970 = vand.u32 %v2969, 4294901760
    %2971 = vmatmul.f32.gmra.mxu0 %v2970
    %v2972 = vpop.f32.mrf.mxu0
    %v2973 = vadd.f32 0.0, %v2972
    %v2974 = vand.u32 %v2896, 4294901760
    %v2975 = vsub.f32 %v2896, %v2974
    %v2976 = vand.u32 %v2975, 4294901760
    %v2977 = vsub.f32 %v2975, %v2976
    %v2978 = vand.u32 %v2977, 4294901760
    %2979 = vmatmul.f32.gmra.mxu0 %v2978
    %v2980 = vpop.f32.mrf.mxu0
    %v2981 = vadd.f32 0.0, %v2980
    %v2982 = vand.u32 %v2897, 4294901760
    %v2983 = vsub.f32 %v2897, %v2982
    %v2984 = vand.u32 %v2983, 4294901760
    %v2985 = vsub.f32 %v2983, %v2984
    %v2986 = vand.u32 %v2985, 4294901760
    %2987 = vmatmul.f32.gmra.mxu0 %v2986
    %v2988 = vpop.f32.mrf.mxu0
    %v2989 = vadd.f32 0.0, %v2988
    %2990 = vdwg.mxu0
    %v2991 = vand.u32 %v99, 4294901760
    %v2992 = vsub.f32 %v99, %v2991
    %v2993 = vand.u32 %v2992, 4294901760
    %v2994 = vsub.f32 %v2992, %v2993
    %v2995 = vand.u32 %v2994, 4294901760
    %2996 = vmatpush.msra.mxu0 %v2995
    %v2997 = vand.u32 %v98, 4294901760
    %v2998 = vsub.f32 %v98, %v2997
    %v2999 = vand.u32 %v2998, 4294901760
    %v3000 = vsub.f32 %v2998, %v2999
    %v3001 = vand.u32 %v3000, 4294901760
    %3002 = vmatpush.msra.mxu0 %v3001
    %v3003 = vand.u32 %v97, 4294901760
    %v3004 = vsub.f32 %v97, %v3003
    %v3005 = vand.u32 %v3004, 4294901760
    %v3006 = vsub.f32 %v3004, %v3005
    %v3007 = vand.u32 %v3006, 4294901760
    %3008 = vmatpush.msra.mxu0 %v3007
    %v3009 = vand.u32 %v96, 4294901760
    %v3010 = vsub.f32 %v96, %v3009
    %v3011 = vand.u32 %v3010, 4294901760
    %v3012 = vsub.f32 %v3010, %v3011
    %v3013 = vand.u32 %v3012, 4294901760
    %3014 = vmatpush.msra.mxu0 %v3013
    %v3015 = vand.u32 %v95, 4294901760
    %v3016 = vsub.f32 %v95, %v3015
    %v3017 = vand.u32 %v3016, 4294901760
    %v3018 = vsub.f32 %v3016, %v3017
    %v3019 = vand.u32 %v3018, 4294901760
    %3020 = vmatpush.msra.mxu0 %v3019
    %v3021 = vand.u32 %v94, 4294901760
    %v3022 = vsub.f32 %v94, %v3021
    %v3023 = vand.u32 %v3022, 4294901760
    %v3024 = vsub.f32 %v3022, %v3023
    %v3025 = vand.u32 %v3024, 4294901760
    %3026 = vmatpush.msra.mxu0 %v3025
    %v3027 = vand.u32 %v93, 4294901760
    %v3028 = vsub.f32 %v93, %v3027
    %v3029 = vand.u32 %v3028, 4294901760
    %v3030 = vsub.f32 %v3028, %v3029
    %v3031 = vand.u32 %v3030, 4294901760
    %3032 = vmatpush.msra.mxu0 %v3031
    %v3033 = vand.u32 %v92, 4294901760
    %v3034 = vsub.f32 %v92, %v3033
    %v3035 = vand.u32 %v3034, 4294901760
    %v3036 = vsub.f32 %v3034, %v3035
    %v3037 = vand.u32 %v3036, 4294901760
    %3038 = vmatpush.msra.mxu0 %v3037
    %v3039 = vand.u32 %v91, 4294901760
    %v3040 = vsub.f32 %v91, %v3039
    %v3041 = vand.u32 %v3040, 4294901760
    %v3042 = vsub.f32 %v3040, %v3041
    %v3043 = vand.u32 %v3042, 4294901760
    %3044 = vmatpush.msra.mxu0 %v3043
    %v3045 = vand.u32 %v90, 4294901760
    %v3046 = vsub.f32 %v90, %v3045
    %v3047 = vand.u32 %v3046, 4294901760
    %v3048 = vsub.f32 %v3046, %v3047
    %v3049 = vand.u32 %v3048, 4294901760
    %3050 = vmatpush.msra.mxu0 %v3049
    %v3051 = vand.u32 %v89, 4294901760
    %v3052 = vsub.f32 %v89, %v3051
    %v3053 = vand.u32 %v3052, 4294901760
    %v3054 = vsub.f32 %v3052, %v3053
    %v3055 = vand.u32 %v3054, 4294901760
    %3056 = vmatpush.msra.mxu0 %v3055
    %v3057 = vand.u32 %v88, 4294901760
    %v3058 = vsub.f32 %v88, %v3057
    %v3059 = vand.u32 %v3058, 4294901760
    %v3060 = vsub.f32 %v3058, %v3059
    %v3061 = vand.u32 %v3060, 4294901760
    %3062 = vmatpush.msra.mxu0 %v3061
    %v3063 = vand.u32 %v87, 4294901760
    %v3064 = vsub.f32 %v87, %v3063
    %v3065 = vand.u32 %v3064, 4294901760
    %v3066 = vsub.f32 %v3064, %v3065
    %v3067 = vand.u32 %v3066, 4294901760
    %3068 = vmatpush.msra.mxu0 %v3067
    %v3069 = vand.u32 %v86, 4294901760
    %v3070 = vsub.f32 %v86, %v3069
    %v3071 = vand.u32 %v3070, 4294901760
    %v3072 = vsub.f32 %v3070, %v3071
    %v3073 = vand.u32 %v3072, 4294901760
    %3074 = vmatpush.msra.mxu0 %v3073
    %v3075 = vand.u32 %v85, 4294901760
    %v3076 = vsub.f32 %v85, %v3075
    %v3077 = vand.u32 %v3076, 4294901760
    %v3078 = vsub.f32 %v3076, %v3077
    %v3079 = vand.u32 %v3078, 4294901760
    %3080 = vmatpush.msra.mxu0 %v3079
    %v3081 = vand.u32 %v84, 4294901760
    %v3082 = vsub.f32 %v84, %v3081
    %v3083 = vand.u32 %v3082, 4294901760
    %v3084 = vsub.f32 %v3082, %v3083
    %v3085 = vand.u32 %v3084, 4294901760
    %3086 = vmatpush.msra.mxu0 %v3085
    %v3087 = vand.u32 %v2892, 4294901760
    %3088 = vmatmul.f32.gmra.mxu0 %v3087
    %v3089 = vpop.f32.mrf.mxu0
    %v3090 = vadd.f32 %v2949, %v3089
    %v3091 = vand.u32 %v2893, 4294901760
    %3092 = vmatmul.f32.gmra.mxu0 %v3091
    %v3093 = vpop.f32.mrf.mxu0
    %v3094 = vadd.f32 %v2957, %v3093
    %v3095 = vand.u32 %v2894, 4294901760
    %3096 = vmatmul.f32.gmra.mxu0 %v3095
    %v3097 = vpop.f32.mrf.mxu0
    %v3098 = vadd.f32 %v2965, %v3097
    %v3099 = vand.u32 %v2895, 4294901760
    %3100 = vmatmul.f32.gmra.mxu0 %v3099
    %v3101 = vpop.f32.mrf.mxu0
    %v3102 = vadd.f32 %v2973, %v3101
    %v3103 = vand.u32 %v2896, 4294901760
    %3104 = vmatmul.f32.gmra.mxu0 %v3103
    %v3105 = vpop.f32.mrf.mxu0
    %v3106 = vadd.f32 %v2981, %v3105
    %v3107 = vand.u32 %v2897, 4294901760
    %3108 = vmatmul.f32.gmra.mxu0 %v3107
    %v3109 = vpop.f32.mrf.mxu0
    %v3110 = vadd.f32 %v2989, %v3109
    %3111 = vdwg.mxu0
    %v3112 = vand.u32 %v99, 4294901760
    %v3113 = vsub.f32 %v99, %v3112
    %3114 = vmatpush.msra.mxu0 %v3113
    %v3115 = vand.u32 %v98, 4294901760
    %v3116 = vsub.f32 %v98, %v3115
    %3117 = vmatpush.msra.mxu0 %v3116
    %v3118 = vand.u32 %v97, 4294901760
    %v3119 = vsub.f32 %v97, %v3118
    %3120 = vmatpush.msra.mxu0 %v3119
    %v3121 = vand.u32 %v96, 4294901760
    %v3122 = vsub.f32 %v96, %v3121
    %3123 = vmatpush.msra.mxu0 %v3122
    %v3124 = vand.u32 %v95, 4294901760
    %v3125 = vsub.f32 %v95, %v3124
    %3126 = vmatpush.msra.mxu0 %v3125
    %v3127 = vand.u32 %v94, 4294901760
    %v3128 = vsub.f32 %v94, %v3127
    %3129 = vmatpush.msra.mxu0 %v3128
    %v3130 = vand.u32 %v93, 4294901760
    %v3131 = vsub.f32 %v93, %v3130
    %3132 = vmatpush.msra.mxu0 %v3131
    %v3133 = vand.u32 %v92, 4294901760
    %v3134 = vsub.f32 %v92, %v3133
    %3135 = vmatpush.msra.mxu0 %v3134
    %v3136 = vand.u32 %v91, 4294901760
    %v3137 = vsub.f32 %v91, %v3136
    %3138 = vmatpush.msra.mxu0 %v3137
    %v3139 = vand.u32 %v90, 4294901760
    %v3140 = vsub.f32 %v90, %v3139
    %3141 = vmatpush.msra.mxu0 %v3140
    %v3142 = vand.u32 %v89, 4294901760
    %v3143 = vsub.f32 %v89, %v3142
    %3144 = vmatpush.msra.mxu0 %v3143
    %v3145 = vand.u32 %v88, 4294901760
    %v3146 = vsub.f32 %v88, %v3145
    %3147 = vmatpush.msra.mxu0 %v3146
    %v3148 = vand.u32 %v87, 4294901760
    %v3149 = vsub.f32 %v87, %v3148
    %3150 = vmatpush.msra.mxu0 %v3149
    %v3151 = vand.u32 %v86, 4294901760
    %v3152 = vsub.f32 %v86, %v3151
    %3153 = vmatpush.msra.mxu0 %v3152
    %v3154 = vand.u32 %v85, 4294901760
    %v3155 = vsub.f32 %v85, %v3154
    %3156 = vmatpush.msra.mxu0 %v3155
    %v3157 = vand.u32 %v84, 4294901760
    %v3158 = vsub.f32 %v84, %v3157
    %3159 = vmatpush.msra.mxu0 %v3158
    %v3160 = vand.u32 %v2892, 4294901760
    %v3161 = vsub.f32 %v2892, %v3160
    %3162 = vmatmul.f32.gmra.mxu0 %v3161
    %v3163 = vpop.f32.mrf.mxu0
    %v3164 = vadd.f32 %v3090, %v3163
    %v3165 = vand.u32 %v2893, 4294901760
    %v3166 = vsub.f32 %v2893, %v3165
    %3167 = vmatmul.f32.gmra.mxu0 %v3166
    %v3168 = vpop.f32.mrf.mxu0
    %v3169 = vadd.f32 %v3094, %v3168
    %v3170 = vand.u32 %v2894, 4294901760
    %v3171 = vsub.f32 %v2894, %v3170
    %3172 = vmatmul.f32.gmra.mxu0 %v3171
    %v3173 = vpop.f32.mrf.mxu0
    %v3174 = vadd.f32 %v3098, %v3173
    %v3175 = vand.u32 %v2895, 4294901760
    %v3176 = vsub.f32 %v2895, %v3175
    %3177 = vmatmul.f32.gmra.mxu0 %v3176
    %v3178 = vpop.f32.mrf.mxu0
    %v3179 = vadd.f32 %v3102, %v3178
    %v3180 = vand.u32 %v2896, 4294901760
    %v3181 = vsub.f32 %v2896, %v3180
    %3182 = vmatmul.f32.gmra.mxu0 %v3181
    %v3183 = vpop.f32.mrf.mxu0
    %v3184 = vadd.f32 %v3106, %v3183
    %v3185 = vand.u32 %v2897, 4294901760
    %v3186 = vsub.f32 %v2897, %v3185
    %3187 = vmatmul.f32.gmra.mxu0 %v3186
    %v3188 = vpop.f32.mrf.mxu0
    %v3189 = vadd.f32 %v3110, %v3188
    %3190 = vdwg.mxu0
    %v3191 = vand.u32 %v99, 4294901760
    %3192 = vmatpush.msra.mxu0 %v3191
    %v3193 = vand.u32 %v98, 4294901760
    %3194 = vmatpush.msra.mxu0 %v3193
    %v3195 = vand.u32 %v97, 4294901760
    %3196 = vmatpush.msra.mxu0 %v3195
    %v3197 = vand.u32 %v96, 4294901760
    %3198 = vmatpush.msra.mxu0 %v3197
    %v3199 = vand.u32 %v95, 4294901760
    %3200 = vmatpush.msra.mxu0 %v3199
    %v3201 = vand.u32 %v94, 4294901760
    %3202 = vmatpush.msra.mxu0 %v3201
    %v3203 = vand.u32 %v93, 4294901760
    %3204 = vmatpush.msra.mxu0 %v3203
    %v3205 = vand.u32 %v92, 4294901760
    %3206 = vmatpush.msra.mxu0 %v3205
    %v3207 = vand.u32 %v91, 4294901760
    %3208 = vmatpush.msra.mxu0 %v3207
    %v3209 = vand.u32 %v90, 4294901760
    %3210 = vmatpush.msra.mxu0 %v3209
    %v3211 = vand.u32 %v89, 4294901760
    %3212 = vmatpush.msra.mxu0 %v3211
    %v3213 = vand.u32 %v88, 4294901760
    %3214 = vmatpush.msra.mxu0 %v3213
    %v3215 = vand.u32 %v87, 4294901760
    %3216 = vmatpush.msra.mxu0 %v3215
    %v3217 = vand.u32 %v86, 4294901760
    %3218 = vmatpush.msra.mxu0 %v3217
    %v3219 = vand.u32 %v85, 4294901760
    %3220 = vmatpush.msra.mxu0 %v3219
    %v3221 = vand.u32 %v84, 4294901760
    %3222 = vmatpush.msra.mxu0 %v3221
    %v3223 = vand.u32 %v2892, 4294901760
    %v3224 = vsub.f32 %v2892, %v3223
    %v3225 = vand.u32 %v3224, 4294901760
    %3226 = vmatmul.f32.gmra.mxu0 %v3225
    %v3227 = vpop.f32.mrf.mxu0
    %v3228 = vadd.f32 %v3164, %v3227
    %v3229 = vand.u32 %v2893, 4294901760
    %v3230 = vsub.f32 %v2893, %v3229
    %v3231 = vand.u32 %v3230, 4294901760
    %3232 = vmatmul.f32.gmra.mxu0 %v3231
    %v3233 = vpop.f32.mrf.mxu0
    %v3234 = vadd.f32 %v3169, %v3233
    %v3235 = vand.u32 %v2894, 4294901760
    %v3236 = vsub.f32 %v2894, %v3235
    %v3237 = vand.u32 %v3236, 4294901760
    %3238 = vmatmul.f32.gmra.mxu0 %v3237
    %v3239 = vpop.f32.mrf.mxu0
    %v3240 = vadd.f32 %v3174, %v3239
    %v3241 = vand.u32 %v2895, 4294901760
    %v3242 = vsub.f32 %v2895, %v3241
    %v3243 = vand.u32 %v3242, 4294901760
    %3244 = vmatmul.f32.gmra.mxu0 %v3243
    %v3245 = vpop.f32.mrf.mxu0
    %v3246 = vadd.f32 %v3179, %v3245
    %v3247 = vand.u32 %v2896, 4294901760
    %v3248 = vsub.f32 %v2896, %v3247
    %v3249 = vand.u32 %v3248, 4294901760
    %3250 = vmatmul.f32.gmra.mxu0 %v3249
    %v3251 = vpop.f32.mrf.mxu0
    %v3252 = vadd.f32 %v3184, %v3251
    %v3253 = vand.u32 %v2897, 4294901760
    %v3254 = vsub.f32 %v2897, %v3253
    %v3255 = vand.u32 %v3254, 4294901760
    %3256 = vmatmul.f32.gmra.mxu0 %v3255
    %v3257 = vpop.f32.mrf.mxu0
    %v3258 = vadd.f32 %v3189, %v3257
    %3259 = vdwg.mxu0
    %v3260 = vand.u32 %v99, 4294901760
    %v3261 = vsub.f32 %v99, %v3260
    %v3262 = vand.u32 %v3261, 4294901760
    %3263 = vmatpush.msra.mxu0 %v3262
    %v3264 = vand.u32 %v98, 4294901760
    %v3265 = vsub.f32 %v98, %v3264
    %v3266 = vand.u32 %v3265, 4294901760
    %3267 = vmatpush.msra.mxu0 %v3266
    %v3268 = vand.u32 %v97, 4294901760
    %v3269 = vsub.f32 %v97, %v3268
    %v3270 = vand.u32 %v3269, 4294901760
    %3271 = vmatpush.msra.mxu0 %v3270
    %v3272 = vand.u32 %v96, 4294901760
    %v3273 = vsub.f32 %v96, %v3272
    %v3274 = vand.u32 %v3273, 4294901760
    %3275 = vmatpush.msra.mxu0 %v3274
    %v3276 = vand.u32 %v95, 4294901760
    %v3277 = vsub.f32 %v95, %v3276
    %v3278 = vand.u32 %v3277, 4294901760
    %3279 = vmatpush.msra.mxu0 %v3278
    %v3280 = vand.u32 %v94, 4294901760
    %v3281 = vsub.f32 %v94, %v3280
    %v3282 = vand.u32 %v3281, 4294901760
    %3283 = vmatpush.msra.mxu0 %v3282
    %v3284 = vand.u32 %v93, 4294901760
    %v3285 = vsub.f32 %v93, %v3284
    %v3286 = vand.u32 %v3285, 4294901760
    %3287 = vmatpush.msra.mxu0 %v3286
    %v3288 = vand.u32 %v92, 4294901760
    %v3289 = vsub.f32 %v92, %v3288
    %v3290 = vand.u32 %v3289, 4294901760
    %3291 = vmatpush.msra.mxu0 %v3290
    %v3292 = vand.u32 %v91, 4294901760
    %v3293 = vsub.f32 %v91, %v3292
    %v3294 = vand.u32 %v3293, 4294901760
    %3295 = vmatpush.msra.mxu0 %v3294
    %v3296 = vand.u32 %v90, 4294901760
    %v3297 = vsub.f32 %v90, %v3296
    %v3298 = vand.u32 %v3297, 4294901760
    %3299 = vmatpush.msra.mxu0 %v3298
    %v3300 = vand.u32 %v89, 4294901760
    %v3301 = vsub.f32 %v89, %v3300
    %v3302 = vand.u32 %v3301, 4294901760
    %3303 = vmatpush.msra.mxu0 %v3302
    %v3304 = vand.u32 %v88, 4294901760
    %v3305 = vsub.f32 %v88, %v3304
    %v3306 = vand.u32 %v3305, 4294901760
    %3307 = vmatpush.msra.mxu0 %v3306
    %v3308 = vand.u32 %v87, 4294901760
    %v3309 = vsub.f32 %v87, %v3308
    %v3310 = vand.u32 %v3309, 4294901760
    %3311 = vmatpush.msra.mxu0 %v3310
    %v3312 = vand.u32 %v86, 4294901760
    %v3313 = vsub.f32 %v86, %v3312
    %v3314 = vand.u32 %v3313, 4294901760
    %3315 = vmatpush.msra.mxu0 %v3314
    %v3316 = vand.u32 %v85, 4294901760
    %v3317 = vsub.f32 %v85, %v3316
    %v3318 = vand.u32 %v3317, 4294901760
    %3319 = vmatpush.msra.mxu0 %v3318
    %v3320 = vand.u32 %v84, 4294901760
    %v3321 = vsub.f32 %v84, %v3320
    %v3322 = vand.u32 %v3321, 4294901760
    %3323 = vmatpush.msra.mxu0 %v3322
    %v3324 = vand.u32 %v2892, 4294901760
    %3325 = vmatmul.f32.gmra.mxu0 %v3324
    %v3326 = vpop.f32.mrf.mxu0
    %v3327 = vadd.f32 %v3228, %v3326
    %v3328 = vand.u32 %v2893, 4294901760
    %3329 = vmatmul.f32.gmra.mxu0 %v3328
    %v3330 = vpop.f32.mrf.mxu0
    %v3331 = vadd.f32 %v3234, %v3330
    %v3332 = vand.u32 %v2894, 4294901760
    %3333 = vmatmul.f32.gmra.mxu0 %v3332
    %v3334 = vpop.f32.mrf.mxu0
    %v3335 = vadd.f32 %v3240, %v3334
    %v3336 = vand.u32 %v2895, 4294901760
    %3337 = vmatmul.f32.gmra.mxu0 %v3336
    %v3338 = vpop.f32.mrf.mxu0
    %v3339 = vadd.f32 %v3246, %v3338
    %v3340 = vand.u32 %v2896, 4294901760
    %3341 = vmatmul.f32.gmra.mxu0 %v3340
    %v3342 = vpop.f32.mrf.mxu0
    %v3343 = vadd.f32 %v3252, %v3342
    %v3344 = vand.u32 %v2897, 4294901760
    %3345 = vmatmul.f32.gmra.mxu0 %v3344
    %v3346 = vpop.f32.mrf.mxu0
    %v3347 = vadd.f32 %v3258, %v3346
    %3348 = vdwg.mxu0
    %v3349 = vand.u32 %v99, 4294901760
    %3350 = vmatpush.msra.mxu0 %v3349
    %v3351 = vand.u32 %v98, 4294901760
    %3352 = vmatpush.msra.mxu0 %v3351
    %v3353 = vand.u32 %v97, 4294901760
    %3354 = vmatpush.msra.mxu0 %v3353
    %v3355 = vand.u32 %v96, 4294901760
    %3356 = vmatpush.msra.mxu0 %v3355
    %v3357 = vand.u32 %v95, 4294901760
    %3358 = vmatpush.msra.mxu0 %v3357
    %v3359 = vand.u32 %v94, 4294901760
    %3360 = vmatpush.msra.mxu0 %v3359
    %v3361 = vand.u32 %v93, 4294901760
    %3362 = vmatpush.msra.mxu0 %v3361
    %v3363 = vand.u32 %v92, 4294901760
    %3364 = vmatpush.msra.mxu0 %v3363
    %v3365 = vand.u32 %v91, 4294901760
    %3366 = vmatpush.msra.mxu0 %v3365
    %v3367 = vand.u32 %v90, 4294901760
    %3368 = vmatpush.msra.mxu0 %v3367
    %v3369 = vand.u32 %v89, 4294901760
    %3370 = vmatpush.msra.mxu0 %v3369
    %v3371 = vand.u32 %v88, 4294901760
    %3372 = vmatpush.msra.mxu0 %v3371
    %v3373 = vand.u32 %v87, 4294901760
    %3374 = vmatpush.msra.mxu0 %v3373
    %v3375 = vand.u32 %v86, 4294901760
    %3376 = vmatpush.msra.mxu0 %v3375
    %v3377 = vand.u32 %v85, 4294901760
    %3378 = vmatpush.msra.mxu0 %v3377
    %v3379 = vand.u32 %v84, 4294901760
    %3380 = vmatpush.msra.mxu0 %v3379
    %v3381 = vand.u32 %v2892, 4294901760
    %3382 = vmatmul.f32.gmra.mxu0 %v3381
    %v3383 = vpop.f32.mrf.mxu0
    %v3384 = vadd.f32 %v3327, %v3383
    %v3385 = vand.u32 %v2893, 4294901760
    %3386 = vmatmul.f32.gmra.mxu0 %v3385
    %v3387 = vpop.f32.mrf.mxu0
    %v3388 = vadd.f32 %v3331, %v3387
    %v3389 = vand.u32 %v2894, 4294901760
    %3390 = vmatmul.f32.gmra.mxu0 %v3389
    %v3391 = vpop.f32.mrf.mxu0
    %v3392 = vadd.f32 %v3335, %v3391
    %v3393 = vand.u32 %v2895, 4294901760
    %3394 = vmatmul.f32.gmra.mxu0 %v3393
    %v3395 = vpop.f32.mrf.mxu0
    %v3396 = vadd.f32 %v3339, %v3395
    %v3397 = vand.u32 %v2896, 4294901760
    %3398 = vmatmul.f32.gmra.mxu0 %v3397
    %v3399 = vpop.f32.mrf.mxu0
    %v3400 = vadd.f32 %v3343, %v3399
    %v3401 = vand.u32 %v2897, 4294901760
    %3402 = vmatmul.f32.gmra.mxu0 %v3401
    %v3403 = vpop.f32.mrf.mxu0
    %v3404 = vadd.f32 %v3347, %v3403
    %3405 = vdwg.mxu0
    %v3406 = vrcp.pop %v2899
    %v3407 = vmul.f32 %v2899, %v3406
    %v3408 = vsub.f32 1.0, %v3407
    %v3409 = vmul.f32 %v3406, %v3408
    %v3410 = vadd.f32 %v3406, %v3409
    %vm3411 = vweird.f32 %v2899
    %vm3412 = vweird.f32 %v3406
    %vm3413 = vmor %vm3411, %vm3412
    %v3414 = vsel %vm3413, %v3406, %v3410
    %v3415 = vand.u32 2147483647, %v2899
    %vm3416 = vcmp.eq.f32.partialorder %v3415, 8.507059e+37
    %v3417 = vand.u32 %v2899, 2147483648
    %v3418 = vor.u32 1.1754944e-38, %v3417
    %v3419 = vsel %vm3416, %v3418, %v3414
    %v3420 = vrcp.pop %v2901
    %v3421 = vmul.f32 %v2901, %v3420
    %v3422 = vsub.f32 1.0, %v3421
    %v3423 = vmul.f32 %v3420, %v3422
    %v3424 = vadd.f32 %v3420, %v3423
    %vm3425 = vweird.f32 %v2901
    %vm3426 = vweird.f32 %v3420
    %vm3427 = vmor %vm3425, %vm3426
    %v3428 = vsel %vm3427, %v3420, %v3424
    %v3429 = vand.u32 2147483647, %v2901
    %vm3430 = vcmp.eq.f32.partialorder %v3429, 8.507059e+37
    %v3431 = vand.u32 %v2901, 2147483648
    %v3432 = vor.u32 1.1754944e-38, %v3431
    %v3433 = vsel %vm3430, %v3432, %v3428
    %v3434 = vrcp.pop %v2903
    %v3435 = vmul.f32 %v2903, %v3434
    %v3436 = vsub.f32 1.0, %v3435
    %v3437 = vmul.f32 %v3434, %v3436
    %v3438 = vadd.f32 %v3434, %v3437
    %vm3439 = vweird.f32 %v2903
    %vm3440 = vweird.f32 %v3434
    %vm3441 = vmor %vm3439, %vm3440
    %v3442 = vsel %vm3441, %v3434, %v3438
    %v3443 = vand.u32 2147483647, %v2903
    %vm3444 = vcmp.eq.f32.partialorder %v3443, 8.507059e+37
    %v3445 = vand.u32 %v2903, 2147483648
    %v3446 = vor.u32 1.1754944e-38, %v3445
    %v3447 = vsel %vm3444, %v3446, %v3442
    %v3448 = vrcp.pop %v2905
    %v3449 = vmul.f32 %v2905, %v3448
    %v3450 = vsub.f32 1.0, %v3449
    %v3451 = vmul.f32 %v3448, %v3450
    %v3452 = vadd.f32 %v3448, %v3451
    %vm3453 = vweird.f32 %v2905
    %vm3454 = vweird.f32 %v3448
    %vm3455 = vmor %vm3453, %vm3454
    %v3456 = vsel %vm3455, %v3448, %v3452
    %v3457 = vand.u32 2147483647, %v2905
    %vm3458 = vcmp.eq.f32.partialorder %v3457, 8.507059e+37
    %v3459 = vand.u32 %v2905, 2147483648
    %v3460 = vor.u32 1.1754944e-38, %v3459
    %v3461 = vsel %vm3458, %v3460, %v3456
    %v3462 = vrcp.pop %v2907
    %v3463 = vmul.f32 %v2907, %v3462
    %v3464 = vsub.f32 1.0, %v3463
    %v3465 = vmul.f32 %v3462, %v3464
    %v3466 = vadd.f32 %v3462, %v3465
    %vm3467 = vweird.f32 %v2907
    %vm3468 = vweird.f32 %v3462
    %vm3469 = vmor %vm3467, %vm3468
    %v3470 = vsel %vm3469, %v3462, %v3466
    %v3471 = vand.u32 2147483647, %v2907
    %vm3472 = vcmp.eq.f32.partialorder %v3471, 8.507059e+37
    %v3473 = vand.u32 %v2907, 2147483648
    %v3474 = vor.u32 1.1754944e-38, %v3473
    %v3475 = vsel %vm3472, %v3474, %v3470
    %v3476 = vrcp.pop %v2909
    %v3477 = vmul.f32 %v2909, %v3476
    %v3478 = vsub.f32 1.0, %v3477
    %v3479 = vmul.f32 %v3476, %v3478
    %v3480 = vadd.f32 %v3476, %v3479
    %vm3481 = vweird.f32 %v2909
    %vm3482 = vweird.f32 %v3476
    %vm3483 = vmor %vm3481, %vm3482
    %v3484 = vsel %vm3483, %v3476, %v3480
    %v3485 = vand.u32 2147483647, %v2909
    %vm3486 = vcmp.eq.f32.partialorder %v3485, 8.507059e+37
    %v3487 = vand.u32 %v2909, 2147483648
    %v3488 = vor.u32 1.1754944e-38, %v3487
    %v3489 = vsel %vm3486, %v3488, %v3484
    %v3490 = vmul.f32 %v3384, %v3419
    %v3491 = vmul.f32 %v3388, %v3433
    %v3492 = vmul.f32 %v3392, %v3447
    %v3493 = vmul.f32 %v3396, %v3461
    %v3494 = vmul.f32 %v3400, %v3475
    %v3495 = vmul.f32 %v3404, %v3489
    %3496 = vst [vmem:[#allocation8] sm:$0xff] %v3490
    %3497 = vst [vmem:[#allocation8 + $0x8] sm:$0xff] %v3491
    %3498 = vst [vmem:[#allocation8 + $0x10] sm:$0xff] %v3492
    %3499 = vst [vmem:[#allocation8 + $0x18] sm:$0xff] %v3493
    %3500 = vst [vmem:[#allocation8 + $0x20] sm:$0xff] %v3494
    %3501 = vst [vmem:[#allocation8 + $0x28] sm:$0xff] %v3495
    // Predicated region
    $region26: #{tpu_custom_call.1} parent=1 // pred_check
      _
    $region27: #{tpu_custom_call.1} parent=1 // pred_check_branch
      %3503 = sbr.rel (0) target = $region29
    $region28: #{tpu_custom_call.1} parent=1 // pred_region
      %3505 = vsyncadd [#allocation4], 0
      %s3506 = sshll.u32 [#allocation8], 4
      %s3507 = int_to_ptr.vmem [resolvable:$true] %s3506
      %s3508 = sshll.u32 %s3, 4
      %s3509 = int_to_ptr.hbm [resolvable:$true] %s3508
      %3514 = dma.vmem_to_hbm [thread:$0]  %s3507, 768, %s3509, [#allocation4], 128, 128, 8
    $region29: #{tpu_custom_call.1} parent=1 // pred_fallthru
      _
    // Predicated region
    $region30: #{tpu_custom_call.1} parent=1 // pred_check
      _
    $region31: #{tpu_custom_call.1} parent=1 // pred_check_branch
      %3516 = sbr.rel (0) target = $region33
    $region32: #{tpu_custom_call.1} parent=1 // pred_region
      %3518 = dma.done [#allocation4], 768
    $region33: #{tpu_custom_call.1} parent=1 // pred_fallthru
      _
    %3519 = vsyncpa [#allocation3], 1
    %3520 = vsyncpa [#allocation6], 1
    %3521 = vsyncpa [#allocation4], 1

</llo_original>
